<compile_context>
chip_gen: v7x
topology: tpu7x:2x2x1
jax: 0.10.0
libtpu: 0.0.40
codegen_flags: <defaults>
</compile_context>

<pallas_src>
import jax
import jax.numpy as jnp
from jax.experimental import pallas as pl
from jax.experimental.pallas import tpu as pltpu


Z_DIM = 2       # Encoder z_dim (fixed by the PyTorch module)
ENC_IN = 512    # Encoder first Linear in_features (nn.Linear(512, 440))
ENC_HID = 440

_VMEM_LIMIT = 64 * 1024 * 1024   # explicit scoped-VMEM cap (review item 7)


# ---------------------------------------------------------------------------
# Shared in-kernel helpers.
# ---------------------------------------------------------------------------
def _dot_t(x, w):
    """x @ w.T with f32 accumulation; w stays in PyTorch [out, in] layout."""
    return jax.lax.dot_general(
        x.astype(w.dtype), w,
        dimension_numbers=(((1,), (1,)), ((), ())),
        preferred_element_type=jnp.float32)


def _linear_relu(x, w_ref, b_ref, i):
    """ReLU(x @ W[i].T + b[i]) for one branch i (i is a static Python int)."""
    y = _dot_t(x, w_ref[i]) + b_ref[i:i + 1, :]
    return jnp.maximum(y, 0.0)


def _fusion_branches(m1, m2, m3,
                     w1_ref, b1_ref, w2_ref, b2_ref, w3_ref, b3_ref, multi):
    """The whole `multi` loop, unrolled at trace time (short fixed trip count)."""
    acc = None
    x2 = x3 = None
    for i in range(multi):
        x1 = _linear_relu(m1, w1_ref, b1_ref, i)
        x2 = _linear_relu(m2, w2_ref, b2_ref, i)
        x3 = _linear_relu(m3, w3_ref, b3_ref, i)
        prod = x1 * x2 * x3                       # f32 elementwise (VPU)
        acc = prod if acc is None else acc + prod
    # Last-branch x2/x3 feed the KL head (PyTorch leaks the loop variables).
    return jnp.maximum(acc, 0.0), x2, x3


def _kl_loss(x2, x3, wa1, ba1, wb1, bb1, wa2, ba2, wb2, bb2):
    """AmbiguityLearning: two encoders + analytic KL + batch mean -> (1, 1)."""

    def encoder(x, wa, ba, wb, bb):
        h = jnp.maximum(_dot_t(x, wa) + ba, 0.0)
        p = _dot_t(h, wb) + bb                    # one [bs, 4] matmul: (mu | pre)
        mu = p[:, :Z_DIM]
        pre = p[:, Z_DIM:]
        # Numerically stable softplus (exp/log run on the EUP).
        sp = jnp.maximum(pre, 0.0) + jnp.log(1.0 + jnp.exp(-jnp.abs(pre)))
        return mu, sp + 1e-6

    mu1, s1 = encoder(x2, wa1, ba1, wb1, bb1)
    mu2, s2 = encoder(x3, wa2, ba2, wb2, bb2)
    kl = 0.5 * (2.0 * jnp.log(s2) - 2.0 * jnp.log(s1)
                + (s1 * s1 + (mu1 - mu2) ** 2) / (s2 * s2) - 1.0)
    bs = x2.shape[0]
    return (jnp.sum(kl) * (1.0 / bs)) * jnp.ones((1, 1), jnp.float32)


# ---------------------------------------------------------------------------
# Kernels.
# ---------------------------------------------------------------------------
def make_fusion_kernel(multi: int):
    """Tiled fusion kernel: grid = (dim // tn,), `multi` folded into the body."""

    def kernel(m1_ref, m2_ref, m3_ref,
               w1_ref, b1_ref, w2_ref, b2_ref, w3_ref, b3_ref,
               xmm_ref, x2_ref, x3_ref):
        x_mm, x2, x3 = _fusion_branches(
            m1_ref[...], m2_ref[...], m3_ref[...],
            w1_ref, b1_ref, w2_ref, b2_ref, w3_ref, b3_ref, multi)
        xmm_ref[...] = x_mm.astype(xmm_ref.dtype)
        x2_ref[...] = x2.astype(x2_ref.dtype)
        x3_ref[...] = x3.astype(x3_ref.dtype)

    return kernel


def make_fused_kernel(multi: int):
    """Whole-problem kernel (tn == dim): fusion loop + KL head in one launch."""

    def kernel(m1_ref, m2_ref, m3_ref,
               w1_ref, b1_ref, w2_ref, b2_ref, w3_ref, b3_ref,
               wa1_ref, ba1_ref, wb1_ref, bb1_ref,
               wa2_ref, ba2_ref, wb2_ref, bb2_ref,
               xmm_ref, kl_ref):
        x_mm, x2, x3 = _fusion_branches(
            m1_ref[...], m2_ref[...], m3_ref[...],
            w1_ref, b1_ref, w2_ref, b2_ref, w3_ref, b3_ref, multi)
        xmm_ref[...] = x_mm.astype(xmm_ref.dtype)
        kl_ref[...] = _kl_loss(
            x2, x3,
            wa1_ref[...], ba1_ref[...], wb1_ref[...], bb1_ref[...],
            wa2_ref[...], ba2_ref[...], wb2_ref[...], bb2_ref[...])

    return kernel


def kl_head_kernel(x2_ref, x3_ref,
                   wa1_ref, ba1_ref, wb1_ref, bb1_ref,
                   wa2_ref, ba2_ref, wb2_ref, bb2_ref, kl_ref):
    kl_ref[...] = _kl_loss(
        x2_ref[...], x3_ref[...],
        wa1_ref[...], ba1_ref[...], wb1_ref[...], bb1_ref[...],
        wa2_ref[...], ba2_ref[...], wb2_ref[...], bb2_ref[...])


# ---------------------------------------------------------------------------
# Wrapper
# ---------------------------------------------------------------------------
def _single_tensorcore_chip() -> bool:
    """True for known single-TensorCore TPUs (v5e / v6e)."""
    try:
        kind = jax.devices()[0].device_kind.lower()
    except Exception:
        return False
    return any(t in kind for t in
               ("v5e", "v5 lite", "v5lite", "v6e", "v6 lite", "v6lite"))


def mutan_layer_kl(modal1_emb, modal2_emb, modal3_emb, params, *,
                   tn=None, fuse_kl=None, weight_dtype=None):
    """Forward of MutanLayer_kl (eval mode). Returns (x_mm [bs, dim], kl_loss)."""
    (W1, b1, W2, b2, W3, b3,
     Wa1, ba1, Wb1, bb1, Wa2, ba2, Wb2, bb2) = params

    multi, dim, _ = W1.shape
    bs = modal1_emb.shape[0]
    assert dim == ENC_IN, "Encoder expects dim == 512 (nn.Linear(512, 440))"

    if fuse_kl is None:
        # Single-TC chips (v5e/v6e): one grid step + fused KL head.
        # Megacore chips (v7x / unknown): keep >= 2 parallel feature tiles.
        fuse_kl = _single_tensorcore_chip()
    if fuse_kl:
        tn = dim                        # KL head needs full-width x2 / x3
    elif tn is None:
        tn = min(dim, 256)
    assert dim % tn == 0 and tn % 128 == 0, "feature tile must be lane-dense (x128)"

    # Optional bf16 weight streaming: the kernel is weight-bandwidth bound, so
    # halving the weight bytes is ~2x wall time.  In a real model the weights
    # would be stored in bf16 so this cast would be free.
    if weight_dtype is not None:
        W1, W2, W3 = (w.astype(weight_dtype) for w in (W1, W2, W3))

    # NOTE: no per-call transposes of the 9.4 MB modal weights — the kernels
    # contract the last dims (x @ W.T) directly on the [multi, out, in] layout.
    ba1r, bb1r = ba1.reshape(1, -1), bb1.reshape(1, -1)
    ba2r, bb2r = ba2.reshape(1, -1), bb2.reshape(1, -1)

    if fuse_kl:
        # Everything (weights ~11 MB) fits in VMEM: one whole-block launch.
        x_mm, kl = pl.pallas_call(
            make_fused_kernel(multi),
            out_shape=(jax.ShapeDtypeStruct((bs, dim), jnp.float32),
                       jax.ShapeDtypeStruct((1, 1), jnp.float32)),
            compiler_params=pltpu.CompilerParams(vmem_limit_bytes=_VMEM_LIMIT),
        )(modal1_emb, modal2_emb, modal3_emb, W1, b1, W2, b2, W3, b3,
          Wa1, ba1r, Wb1, bb1r, Wa2, ba2r, Wb2, bb2r)
        return x_mm, kl[0, 0]

    # Tiled path: grid only over lane-dense feature tiles (parallel axis), the
    # full `multi` axis of the weights is streamed per tile and unrolled in-body.
    emb_spec = pl.BlockSpec((bs, dim), lambda j: (0, 0))
    w_spec = pl.BlockSpec((multi, tn, dim), lambda j: (0, j, 0))
    b_spec = pl.BlockSpec((multi, tn), lambda j: (0, j))
    out_spec = pl.BlockSpec((bs, tn), lambda j: (0, j))

    x_mm, x2_last, x3_last = pl.pallas_call(
        make_fusion_kernel(multi),
        out_shape=(jax.ShapeDtypeStruct((bs, dim), jnp.float32),
                   jax.ShapeDtypeStruct((bs, dim), jnp.float32),
                   jax.ShapeDtypeStruct((bs, dim), jnp.float32)),
        grid=(dim // tn,),
        in_specs=[emb_spec, emb_spec, emb_spec,
                  w_spec, b_spec, w_spec, b_spec, w_spec, b_spec],
        out_specs=(out_spec, out_spec, out_spec),
        compiler_params=pltpu.CompilerParams(
            dimension_semantics=("parallel",),
            vmem_limit_bytes=_VMEM_LIMIT),
    )(modal1_emb, modal2_emb, modal3_emb, W1, b1, W2, b2, W3, b3)

    # KL head: tiny, whole-block kernel (x2/x3 are only 8 KB each).
    kl = pl.pallas_call(
        kl_head_kernel,
        out_shape=jax.ShapeDtypeStruct((1, 1), jnp.float32),
        compiler_params=pltpu.CompilerParams(vmem_limit_bytes=_VMEM_LIMIT),
    )(x2_last, x3_last, Wa1, ba1r, Wb1, bb1r, Wa2, ba2r, Wb2, bb2r)
    return x_mm, kl[0, 0]


# ---------------------------------------------------------------------------
# Pure-JAX reference mirroring the PyTorch forward (eval mode).
# ---------------------------------------------------------------------------
def reference_jax(modal1_emb, modal2_emb, modal3_emb, params):
    P = jax.lax.Precision.HIGHEST
    (W1, b1, W2, b2, W3, b3,
     Wa1, ba1, Wb1, bb1, Wa2, ba2, Wb2, bb2) = params
    multi, dim, _ = W1.shape
    bs = modal1_emb.shape[0]

    acc = jnp.zeros((bs, dim), jnp.float32)
    x2 = x3 = None
    for i in range(multi):
        x1 = jax.nn.relu(jnp.dot(modal1_emb, W1[i].T, precision=P) + b1[i])
        x2 = jax.nn.relu(jnp.dot(modal2_emb, W2[i].T, precision=P) + b2[i])
        x3 = jax.nn.relu(jnp.dot(modal3_emb, W3[i].T, precision=P) + b3[i])
        acc = acc + x1 * x2 * x3
    x_mm = jax.nn.relu(acc)

    def encoder(x, Wa, ba, Wb, bb):
        h = jax.nn.relu(jnp.dot(x, Wa.T, precision=P) + ba)
        p = jnp.dot(h, Wb.T, precision=P) + bb
        mu = p[:, :Z_DIM]
        pre = p[:, Z_DIM:]
        sp = jnp.maximum(pre, 0.0) + jnp.log(1.0 + jnp.exp(-jnp.abs(pre)))
        return mu, sp + 1e-6

    mu1, s1 = encoder(x2, Wa1, ba1, Wb1, bb1)
    mu2, s2 = encoder(x3, Wa2, ba2, Wb2, bb2)
    kl = 0.5 * (2.0 * jnp.log(s2) - 2.0 * jnp.log(s1)
                + (s1 ** 2 + (mu1 - mu2) ** 2) / s2 ** 2 - 1.0)
    return x_mm, jnp.mean(jnp.sum(kl, axis=-1))


if __name__ == "__main__":
    # dim must be 512 because the Encoder's first Linear is nn.Linear(512, 440).
    dim = ENC_IN
    multi = 3
    bs = 4

    key = jax.random.PRNGKey(0)
    ks = jax.random.split(key, 17)
    s_lin = 1.0 / (dim ** 0.5)
    s_hid = 1.0 / (ENC_HID ** 0.5)

    W1 = s_lin * jax.random.normal(ks[0], (multi, dim, dim), jnp.float32)
    b1 = 0.1 * jax.random.normal(ks[1], (multi, dim), jnp.float32)
    W2 = s_lin * jax.random.normal(ks[2], (multi, dim, dim), jnp.float32)
    b2 = 0.1 * jax.random.normal(ks[3], (multi, dim), jnp.float32)
    W3 = s_lin * jax.random.normal(ks[4], (multi, dim, dim), jnp.float32)
    b3 = 0.1 * jax.random.normal(ks[5], (multi, dim), jnp.float32)

    Wa1 = s_lin * jax.random.normal(ks[6], (ENC_HID, ENC_IN), jnp.float32)
    ba1 = 0.1 * jax.random.normal(ks[7], (ENC_HID,), jnp.float32)
    Wb1 = s_hid * jax.random.normal(ks[8], (2 * Z_DIM, ENC_HID), jnp.float32)
    bb1 = 0.1 * jax.random.normal(ks[9], (2 * Z_DIM,), jnp.float32)
    Wa2 = s_lin * jax.random.normal(ks[10], (ENC_HID, ENC_IN), jnp.float32)
    ba2 = 0.1 * jax.random.normal(ks[11], (ENC_HID,), jnp.float32)
    Wb2 = s_hid * jax.random.normal(ks[12], (2 * Z_DIM, ENC_HID), jnp.float32)
    bb2 = 0.1 * jax.random.normal(ks[13], (2 * Z_DIM,), jnp.float32)

    m1 = jax.random.normal(ks[14], (bs, dim), jnp.float32)
    m2 = jax.random.normal(ks[15], (bs, dim), jnp.float32)
    m3 = jax.random.normal(ks[16], (bs, dim), jnp.float32)

    params = (W1, b1, W2, b2, W3, b3, Wa1, ba1, Wb1, bb1, Wa2, ba2, Wb2, bb2)

    # Path A: tiled fusion (>= 2 parallel feature tiles, v7x-friendly) +
    #         separate whole-block KL head.
    xa, kla = mutan_layer_kl(m1, m2, m3, params, fuse_kl=False, tn=256)
    # Path B: single fused kernel (tn == dim, single-TC v5e/v6e-friendly).
    xb, klb = mutan_layer_kl(m1, m2, m3, params, fuse_kl=True)
    # Path C: bf16 weight streaming (~2x less HBM traffic on the fusion weights).
    xc, klc = mutan_layer_kl(m1, m2, m3, params, fuse_kl=False, tn=256,
                             weight_dtype=jnp.bfloat16)
    jax.block_until_ready((xa, kla, xb, klb, xc, klc))

    ref_xmm, ref_kl = reference_jax(m1, m2, m3, params)

    for name, xm, kl in (("tiled", xa, kla), ("fused", xb, klb)):
        assert xm.shape == (bs, dim)
        assert jnp.allclose(xm, ref_xmm, rtol=1e-3, atol=1e-3), f"x_mm mismatch ({name})"
        assert jnp.allclose(kl, ref_kl, rtol=1e-3, atol=1e-3), f"kl_loss mismatch ({name})"
    # bf16 weight streaming trades ~1e-2 relative accuracy for ~2x bandwidth.
    assert jnp.allclose(xc, ref_xmm, rtol=5e-2, atol=5e-2), "x_mm mismatch (bf16)"
    assert jnp.allclose(klc, ref_kl, rtol=1.5e-1, atol=5e-2), "kl_loss mismatch (bf16)"

    print("KERNEL_OK")
</pallas_src>

<mosaic_0001>
module attributes {stable_mosaic.version = 11 : i64} {
  func.func @kernel(%arg0: i32, %arg1: memref<4x512xf32, #tpu.memory_space<vmem>>, %arg2: memref<4x512xf32, #tpu.memory_space<vmem>>, %arg3: memref<4x512xf32, #tpu.memory_space<vmem>>, %arg4: memref<3x256x512xf32, #tpu.memory_space<vmem>>, %arg5: memref<3x256xf32, #tpu.memory_space<vmem>>, %arg6: memref<3x256x512xf32, #tpu.memory_space<vmem>>, %arg7: memref<3x256xf32, #tpu.memory_space<vmem>>, %arg8: memref<3x256x512xf32, #tpu.memory_space<vmem>>, %arg9: memref<3x256xf32, #tpu.memory_space<vmem>>, %arg10: memref<4x256xf32, #tpu.memory_space<vmem>>, %arg11: memref<4x256xf32, #tpu.memory_space<vmem>>, %arg12: memref<4x256xf32, #tpu.memory_space<vmem>>) attributes {dimension_semantics = [#tpu.dimension_semantics<parallel>], iteration_bounds = array<i64: 2>, scalar_prefetch = 0 : i64, scratch_operands = 0 : i64, tpu.core_type = #tpu.core_type<tc>, window_params = [{pipeline_mode = #tpu.pipeline_mode<synchronous>, transform_indices = @transform_0, window_bounds = array<i64: 4, 512>}, {pipeline_mode = #tpu.pipeline_mode<synchronous>, transform_indices = @transform_1, window_bounds = array<i64: 4, 512>}, {pipeline_mode = #tpu.pipeline_mode<synchronous>, transform_indices = @transform_2, window_bounds = array<i64: 4, 512>}, {transform_indices = @transform_3, window_bounds = array<i64: 3, 256, 512>}, {transform_indices = @transform_4, window_bounds = array<i64: 3, 256>}, {transform_indices = @transform_5, window_bounds = array<i64: 3, 256, 512>}, {transform_indices = @transform_6, window_bounds = array<i64: 3, 256>}, {transform_indices = @transform_7, window_bounds = array<i64: 3, 256, 512>}, {transform_indices = @transform_8, window_bounds = array<i64: 3, 256>}, {transform_indices = @transform_9, window_bounds = array<i64: 4, 256>}, {transform_indices = @transform_10, window_bounds = array<i64: 4, 256>}, {transform_indices = @transform_11, window_bounds = array<i64: 4, 256>}]} {
    %c0 = arith.constant 0 : index
    %c0_0 = arith.constant 0 : index
    %0 = vector.load %arg1[%c0, %c0_0] : memref<4x512xf32, #tpu.memory_space<vmem>>, vector<4x512xf32>
    %c0_1 = arith.constant 0 : index
    %c0_2 = arith.constant 0 : index
    %1 = vector.load %arg2[%c0_1, %c0_2] : memref<4x512xf32, #tpu.memory_space<vmem>>, vector<4x512xf32>
    %c0_3 = arith.constant 0 : index
    %c0_4 = arith.constant 0 : index
    %2 = vector.load %arg3[%c0_3, %c0_4] : memref<4x512xf32, #tpu.memory_space<vmem>>, vector<4x512xf32>
    %c0_5 = arith.constant 0 : index
    %c0_6 = arith.constant 0 : index
    %c0_7 = arith.constant 0 : index
    %3 = vector.load %arg4[%c0_5, %c0_6, %c0_7] : memref<3x256x512xf32, #tpu.memory_space<vmem>>, vector<1x256x512xf32>
    %4 = vector.shape_cast %3 : vector<1x256x512xf32> to vector<256x512xf32>
    %cst = arith.constant dense<0.000000e+00> : vector<4x256xf32>
    %5 = tpu.matmul %0, %4, %cst {dimension_numbers = #tpu.dot_dimension_numbers<[1], [1], [0], [0], [0, 0, 1, 0], [], []>} : vector<4x512xf32>, vector<256x512xf32>, vector<4x256xf32> -> vector<4x256xf32>
    %c0_8 = arith.constant 0 : index
    %c0_9 = arith.constant 0 : index
    %6 = vector.load %arg5[%c0_8, %c0_9] : memref<3x256xf32, #tpu.memory_space<vmem>>, vector<1x256xf32>
    %7 = vector.broadcast %6 : vector<1x256xf32> to vector<4x256xf32>
    %8 = arith.addf %5, %7 : vector<4x256xf32>
    %cst_10 = arith.constant 0.000000e+00 : f32
    %9 = vector.broadcast %cst_10 : f32 to vector<4x256xf32>
    %10 = arith.maximumf %8, %9 : vector<4x256xf32>
    %c0_11 = arith.constant 0 : index
    %c0_12 = arith.constant 0 : index
    %c0_13 = arith.constant 0 : index
    %11 = vector.load %arg6[%c0_11, %c0_12, %c0_13] : memref<3x256x512xf32, #tpu.memory_space<vmem>>, vector<1x256x512xf32>
    %12 = vector.shape_cast %11 : vector<1x256x512xf32> to vector<256x512xf32>
    %cst_14 = arith.constant dense<0.000000e+00> : vector<4x256xf32>
    %13 = tpu.matmul %1, %12, %cst_14 {dimension_numbers = #tpu.dot_dimension_numbers<[1], [1], [0], [0], [0, 0, 1, 0], [], []>} : vector<4x512xf32>, vector<256x512xf32>, vector<4x256xf32> -> vector<4x256xf32>
    %c0_15 = arith.constant 0 : index
    %c0_16 = arith.constant 0 : index
    %14 = vector.load %arg7[%c0_15, %c0_16] : memref<3x256xf32, #tpu.memory_space<vmem>>, vector<1x256xf32>
    %15 = vector.broadcast %14 : vector<1x256xf32> to vector<4x256xf32>
    %16 = arith.addf %13, %15 : vector<4x256xf32>
    %cst_17 = arith.constant 0.000000e+00 : f32
    %17 = vector.broadcast %cst_17 : f32 to vector<4x256xf32>
    %18 = arith.maximumf %16, %17 : vector<4x256xf32>
    %c0_18 = arith.constant 0 : index
    %c0_19 = arith.constant 0 : index
    %c0_20 = arith.constant 0 : index
    %19 = vector.load %arg8[%c0_18, %c0_19, %c0_20] : memref<3x256x512xf32, #tpu.memory_space<vmem>>, vector<1x256x512xf32>
    %20 = vector.shape_cast %19 : vector<1x256x512xf32> to vector<256x512xf32>
    %cst_21 = arith.constant dense<0.000000e+00> : vector<4x256xf32>
    %21 = tpu.matmul %2, %20, %cst_21 {dimension_numbers = #tpu.dot_dimension_numbers<[1], [1], [0], [0], [0, 0, 1, 0], [], []>} : vector<4x512xf32>, vector<256x512xf32>, vector<4x256xf32> -> vector<4x256xf32>
    %c0_22 = arith.constant 0 : index
    %c0_23 = arith.constant 0 : index
    %22 = vector.load %arg9[%c0_22, %c0_23] : memref<3x256xf32, #tpu.memory_space<vmem>>, vector<1x256xf32>
    %23 = vector.broadcast %22 : vector<1x256xf32> to vector<4x256xf32>
    %24 = arith.addf %21, %23 : vector<4x256xf32>
    %cst_24 = arith.constant 0.000000e+00 : f32
    %25 = vector.broadcast %cst_24 : f32 to vector<4x256xf32>
    %26 = arith.maximumf %24, %25 : vector<4x256xf32>
    %27 = arith.mulf %10, %18 : vector<4x256xf32>
    %28 = arith.mulf %27, %26 : vector<4x256xf32>
    %c1 = arith.constant 1 : index
    %c0_25 = arith.constant 0 : index
    %c0_26 = arith.constant 0 : index
    %29 = vector.load %arg4[%c1, %c0_25, %c0_26] : memref<3x256x512xf32, #tpu.memory_space<vmem>>, vector<1x256x512xf32>
    %30 = vector.shape_cast %29 : vector<1x256x512xf32> to vector<256x512xf32>
    %cst_27 = arith.constant dense<0.000000e+00> : vector<4x256xf32>
    %31 = tpu.matmul %0, %30, %cst_27 {dimension_numbers = #tpu.dot_dimension_numbers<[1], [1], [0], [0], [0, 0, 1, 0], [], []>} : vector<4x512xf32>, vector<256x512xf32>, vector<4x256xf32> -> vector<4x256xf32>
    %c1_28 = arith.constant 1 : index
    %c0_29 = arith.constant 0 : index
    %32 = vector.load %arg5[%c1_28, %c0_29] : memref<3x256xf32, #tpu.memory_space<vmem>>, vector<1x256xf32>
    %33 = vector.broadcast %32 : vector<1x256xf32> to vector<4x256xf32>
    %34 = arith.addf %31, %33 : vector<4x256xf32>
    %cst_30 = arith.constant 0.000000e+00 : f32
    %35 = vector.broadcast %cst_30 : f32 to vector<4x256xf32>
    %36 = arith.maximumf %34, %35 : vector<4x256xf32>
    %c1_31 = arith.constant 1 : index
    %c0_32 = arith.constant 0 : index
    %c0_33 = arith.constant 0 : index
    %37 = vector.load %arg6[%c1_31, %c0_32, %c0_33] : memref<3x256x512xf32, #tpu.memory_space<vmem>>, vector<1x256x512xf32>
    %38 = vector.shape_cast %37 : vector<1x256x512xf32> to vector<256x512xf32>
    %cst_34 = arith.constant dense<0.000000e+00> : vector<4x256xf32>
    %39 = tpu.matmul %1, %38, %cst_34 {dimension_numbers = #tpu.dot_dimension_numbers<[1], [1], [0], [0], [0, 0, 1, 0], [], []>} : vector<4x512xf32>, vector<256x512xf32>, vector<4x256xf32> -> vector<4x256xf32>
    %c1_35 = arith.constant 1 : index
    %c0_36 = arith.constant 0 : index
    %40 = vector.load %arg7[%c1_35, %c0_36] : memref<3x256xf32, #tpu.memory_space<vmem>>, vector<1x256xf32>
    %41 = vector.broadcast %40 : vector<1x256xf32> to vector<4x256xf32>
    %42 = arith.addf %39, %41 : vector<4x256xf32>
    %cst_37 = arith.constant 0.000000e+00 : f32
    %43 = vector.broadcast %cst_37 : f32 to vector<4x256xf32>
    %44 = arith.maximumf %42, %43 : vector<4x256xf32>
    %c1_38 = arith.constant 1 : index
    %c0_39 = arith.constant 0 : index
    %c0_40 = arith.constant 0 : index
    %45 = vector.load %arg8[%c1_38, %c0_39, %c0_40] : memref<3x256x512xf32, #tpu.memory_space<vmem>>, vector<1x256x512xf32>
    %46 = vector.shape_cast %45 : vector<1x256x512xf32> to vector<256x512xf32>
    %cst_41 = arith.constant dense<0.000000e+00> : vector<4x256xf32>
    %47 = tpu.matmul %2, %46, %cst_41 {dimension_numbers = #tpu.dot_dimension_numbers<[1], [1], [0], [0], [0, 0, 1, 0], [], []>} : vector<4x512xf32>, vector<256x512xf32>, vector<4x256xf32> -> vector<4x256xf32>
    %c1_42 = arith.constant 1 : index
    %c0_43 = arith.constant 0 : index
    %48 = vector.load %arg9[%c1_42, %c0_43] : memref<3x256xf32, #tpu.memory_space<vmem>>, vector<1x256xf32>
    %49 = vector.broadcast %48 : vector<1x256xf32> to vector<4x256xf32>
    %50 = arith.addf %47, %49 : vector<4x256xf32>
    %cst_44 = arith.constant 0.000000e+00 : f32
    %51 = vector.broadcast %cst_44 : f32 to vector<4x256xf32>
    %52 = arith.maximumf %50, %51 : vector<4x256xf32>
    %53 = arith.mulf %36, %44 : vector<4x256xf32>
    %54 = arith.mulf %53, %52 : vector<4x256xf32>
    %55 = arith.addf %28, %54 : vector<4x256xf32>
    %c2 = arith.constant 2 : index
    %c0_45 = arith.constant 0 : index
    %c0_46 = arith.constant 0 : index
    %56 = vector.load %arg4[%c2, %c0_45, %c0_46] : memref<3x256x512xf32, #tpu.memory_space<vmem>>, vector<1x256x512xf32>
    %57 = vector.shape_cast %56 : vector<1x256x512xf32> to vector<256x512xf32>
    %cst_47 = arith.constant dense<0.000000e+00> : vector<4x256xf32>
    %58 = tpu.matmul %0, %57, %cst_47 {dimension_numbers = #tpu.dot_dimension_numbers<[1], [1], [0], [0], [0, 0, 1, 0], [], []>} : vector<4x512xf32>, vector<256x512xf32>, vector<4x256xf32> -> vector<4x256xf32>
    %c2_48 = arith.constant 2 : index
    %c0_49 = arith.constant 0 : index
    %59 = vector.load %arg5[%c2_48, %c0_49] : memref<3x256xf32, #tpu.memory_space<vmem>>, vector<1x256xf32>
    %60 = vector.broadcast %59 : vector<1x256xf32> to vector<4x256xf32>
    %61 = arith.addf %58, %60 : vector<4x256xf32>
    %cst_50 = arith.constant 0.000000e+00 : f32
    %62 = vector.broadcast %cst_50 : f32 to vector<4x256xf32>
    %63 = arith.maximumf %61, %62 : vector<4x256xf32>
    %c2_51 = arith.constant 2 : index
    %c0_52 = arith.constant 0 : index
    %c0_53 = arith.constant 0 : index
    %64 = vector.load %arg6[%c2_51, %c0_52, %c0_53] : memref<3x256x512xf32, #tpu.memory_space<vmem>>, vector<1x256x512xf32>
    %65 = vector.shape_cast %64 : vector<1x256x512xf32> to vector<256x512xf32>
    %cst_54 = arith.constant dense<0.000000e+00> : vector<4x256xf32>
    %66 = tpu.matmul %1, %65, %cst_54 {dimension_numbers = #tpu.dot_dimension_numbers<[1], [1], [0], [0], [0, 0, 1, 0], [], []>} : vector<4x512xf32>, vector<256x512xf32>, vector<4x256xf32> -> vector<4x256xf32>
    %c2_55 = arith.constant 2 : index
    %c0_56 = arith.constant 0 : index
    %67 = vector.load %arg7[%c2_55, %c0_56] : memref<3x256xf32, #tpu.memory_space<vmem>>, vector<1x256xf32>
    %68 = vector.broadcast %67 : vector<1x256xf32> to vector<4x256xf32>
    %69 = arith.addf %66, %68 : vector<4x256xf32>
    %cst_57 = arith.constant 0.000000e+00 : f32
    %70 = vector.broadcast %cst_57 : f32 to vector<4x256xf32>
    %71 = arith.maximumf %69, %70 : vector<4x256xf32>
    %c2_58 = arith.constant 2 : index
    %c0_59 = arith.constant 0 : index
    %c0_60 = arith.constant 0 : index
    %72 = vector.load %arg8[%c2_58, %c0_59, %c0_60] : memref<3x256x512xf32, #tpu.memory_space<vmem>>, vector<1x256x512xf32>
    %73 = vector.shape_cast %72 : vector<1x256x512xf32> to vector<256x512xf32>
    %cst_61 = arith.constant dense<0.000000e+00> : vector<4x256xf32>
    %74 = tpu.matmul %2, %73, %cst_61 {dimension_numbers = #tpu.dot_dimension_numbers<[1], [1], [0], [0], [0, 0, 1, 0], [], []>} : vector<4x512xf32>, vector<256x512xf32>, vector<4x256xf32> -> vector<4x256xf32>
    %c2_62 = arith.constant 2 : index
    %c0_63 = arith.constant 0 : index
    %75 = vector.load %arg9[%c2_62, %c0_63] : memref<3x256xf32, #tpu.memory_space<vmem>>, vector<1x256xf32>
    %76 = vector.broadcast %75 : vector<1x256xf32> to vector<4x256xf32>
    %77 = arith.addf %74, %76 : vector<4x256xf32>
    %cst_64 = arith.constant 0.000000e+00 : f32
    %78 = vector.broadcast %cst_64 : f32 to vector<4x256xf32>
    %79 = arith.maximumf %77, %78 : vector<4x256xf32>
    %80 = arith.mulf %63, %71 : vector<4x256xf32>
    %81 = arith.mulf %80, %79 : vector<4x256xf32>
    %82 = arith.addf %55, %81 : vector<4x256xf32>
    %cst_65 = arith.constant 0.000000e+00 : f32
    %83 = vector.broadcast %cst_65 : f32 to vector<4x256xf32>
    %84 = arith.maximumf %82, %83 : vector<4x256xf32>
    %c0_66 = arith.constant 0 : index
    %c0_67 = arith.constant 0 : index
    %85 = vector.load %arg10[%c0_66, %c0_67] : memref<4x256xf32, #tpu.memory_space<vmem>>, vector<4x256xf32>
    tpu.vector_store %arg10[%c0_66, %c0_67], %84 {strides = array<i32>} : memref<4x256xf32, #tpu.memory_space<vmem>>, vector<4x256xf32>,
    %c0_68 = arith.constant 0 : index
    %c0_69 = arith.constant 0 : index
    %86 = vector.load %arg11[%c0_68, %c0_69] : memref<4x256xf32, #tpu.memory_space<vmem>>, vector<4x256xf32>
    tpu.vector_store %arg11[%c0_68, %c0_69], %71 {strides = array<i32>} : memref<4x256xf32, #tpu.memory_space<vmem>>, vector<4x256xf32>,
    %c0_70 = arith.constant 0 : index
    %c0_71 = arith.constant 0 : index
    %87 = vector.load %arg12[%c0_70, %c0_71] : memref<4x256xf32, #tpu.memory_space<vmem>>, vector<4x256xf32>
    tpu.vector_store %arg12[%c0_70, %c0_71], %79 {strides = array<i32>} : memref<4x256xf32, #tpu.memory_space<vmem>>, vector<4x256xf32>,
    return
  }
  func.func @transform_0(%arg0: i32) -> (i32, i32) {
    %c0_i32 = arith.constant 0 : i32
    %c0_i32_0 = arith.constant 0 : i32
    %c0_i32_1 = arith.constant 0 : i32
    return %c0_i32, %c0_i32_0 : i32, i32
  }
  func.func @transform_1(%arg0: i32) -> (i32, i32) {
    %c0_i32 = arith.constant 0 : i32
    %c0_i32_0 = arith.constant 0 : i32
    %c0_i32_1 = arith.constant 0 : i32
    return %c0_i32, %c0_i32_0 : i32, i32
  }
  func.func @transform_2(%arg0: i32) -> (i32, i32) {
    %c0_i32 = arith.constant 0 : i32
    %c0_i32_0 = arith.constant 0 : i32
    %c0_i32_1 = arith.constant 0 : i32
    return %c0_i32, %c0_i32_0 : i32, i32
  }
  func.func @transform_3(%arg0: i32) -> (i32, i32, i32) {
    %c0_i32 = arith.constant 0 : i32
    %c0_i32_0 = arith.constant 0 : i32
    %c0_i32_1 = arith.constant 0 : i32
    return %c0_i32, %arg0, %c0_i32_0 : i32, i32, i32
  }
  func.func @transform_4(%arg0: i32) -> (i32, i32) {
    %c0_i32 = arith.constant 0 : i32
    %c0_i32_0 = arith.constant 0 : i32
    return %c0_i32, %arg0 : i32, i32
  }
  func.func @transform_5(%arg0: i32) -> (i32, i32, i32) {
    %c0_i32 = arith.constant 0 : i32
    %c0_i32_0 = arith.constant 0 : i32
    %c0_i32_1 = arith.constant 0 : i32
    return %c0_i32, %arg0, %c0_i32_0 : i32, i32, i32
  }
  func.func @transform_6(%arg0: i32) -> (i32, i32) {
    %c0_i32 = arith.constant 0 : i32
    %c0_i32_0 = arith.constant 0 : i32
    return %c0_i32, %arg0 : i32, i32
  }
  func.func @transform_7(%arg0: i32) -> (i32, i32, i32) {
    %c0_i32 = arith.constant 0 : i32
    %c0_i32_0 = arith.constant 0 : i32
    %c0_i32_1 = arith.constant 0 : i32
    return %c0_i32, %arg0, %c0_i32_0 : i32, i32, i32
  }
  func.func @transform_8(%arg0: i32) -> (i32, i32) {
    %c0_i32 = arith.constant 0 : i32
    %c0_i32_0 = arith.constant 0 : i32
    return %c0_i32, %arg0 : i32, i32
  }
  func.func @transform_9(%arg0: i32) -> (i32, i32) {
    %c0_i32 = arith.constant 0 : i32
    %c0_i32_0 = arith.constant 0 : i32
    return %c0_i32, %arg0 : i32, i32
  }
  func.func @transform_10(%arg0: i32) -> (i32, i32) {
    %c0_i32 = arith.constant 0 : i32
    %c0_i32_0 = arith.constant 0 : i32
    return %c0_i32, %arg0 : i32, i32
  }
  func.func @transform_11(%arg0: i32) -> (i32, i32) {
    %c0_i32 = arith.constant 0 : i32
    %c0_i32_0 = arith.constant 0 : i32
    return %c0_i32, %arg0 : i32, i32
  }
}

</mosaic_0001>

<llo_original>
// kernel: tpu_custom_call.1
$region0: #{tpu_custom_call.1}
  #allocation0 [shape = 'u32[]', space=smem, size = 0x4, offset = 0x4, fixed_abs, tag = 'smem constant byte address 0x4 - core index']
  #allocation1 [shape = 'u32[144,128]{1,0:T(1,128)}', space=vmem, size = 0x12000, scoped, tag = 'internal scratch']
  #allocation21 [shape = 's32[]', space=sflag, size = 0x4, offset = 0, fixed_abs, tag = 'sflag constant byte address 0x0 - dummy sync flag']
  #allocation23 [shape = 's32[]', space=sflag, size = 0x4, offset = 0, fixed_abs, tag = 'sflag constant byte address 0x0 - dummy sync flag']
  #allocation25 [shape = 's32[]', space=sflag, size = 0x4, offset = 0, fixed_abs, tag = 'sflag constant byte address 0x0 - dummy sync flag']
  %s0 = inlined_call_operand.hbm [shape: f32[4,512], index: 0, kind: input, shape index: {}]
  %s1 = inlined_call_operand.hbm [shape: f32[4,512], index: 1, kind: input, shape index: {}]
  %s2 = inlined_call_operand.hbm [shape: f32[4,512], index: 2, kind: input, shape index: {}]
  %s3 = inlined_call_operand.hbm [shape: f32[3,512,512], index: 3, kind: input, shape index: {}]
  %s4 = inlined_call_operand.hbm [shape: f32[3,512], index: 4, kind: input, shape index: {}]
  %s5 = inlined_call_operand.hbm [shape: f32[3,512,512], index: 5, kind: input, shape index: {}]
  %s6 = inlined_call_operand.hbm [shape: f32[3,512], index: 6, kind: input, shape index: {}]
  %s7 = inlined_call_operand.hbm [shape: f32[3,512,512], index: 7, kind: input, shape index: {}]
  %s8 = inlined_call_operand.hbm [shape: f32[3,512], index: 8, kind: input, shape index: {}]
  %s9 = inlined_call_operand.hbm [shape: f32[4,512], index: 9, kind: output, shape index: {0}]
  %s10 = inlined_call_operand.hbm [shape: f32[4,512], index: 10, kind: output, shape index: {1}]
  %s11 = inlined_call_operand.hbm [shape: f32[4,512], index: 11, kind: output, shape index: {2}]
  %12 = xla_tuple %s9, %s10, %s11
  %s13 = sld [smem:[#allocation0]]
  $region121: #{tpu_custom_call.1} parent=0
    _
  %s15 = ssub.s32 1, %s13
  %s16 = scalar_select 0, %s15, %s13
  $region1: #{tpu_custom_call.1} parent=0
    #allocation2 [shape = 'u8[8192]{0}', space=vmem, size = 0x2000, scoped, tag = 'input window, operand 0, single buffered']
    #allocation3 [shape = 's32[2]{0}', space=sflag, size = 0x8, scoped, tag = 'scoped memory for tpu_custom_call.1']
    #allocation4 [shape = 's32[2]{0}', space=sflag, size = 0x8, scoped, tag = 'scoped memory for tpu_custom_call.1']
    #allocation5 [shape = 'u8[8192]{0}', space=vmem, size = 0x2000, scoped, tag = 'input window, operand 1, single buffered']
    #allocation6 [shape = 's32[1]{0}', space=sflag, size = 0x4, scoped, tag = 'scoped memory for tpu_custom_call.1']
    #allocation7 [shape = 'u8[8192]{0}', space=vmem, size = 0x2000, scoped, tag = 'input window, operand 2, single buffered']
    #allocation8 [shape = 'u8[3145728]{0}', space=vmem, size = 0x300000, scoped, tag = 'input window, operand 3']
    #allocation9 [shape = 's32[2]{0}', space=sflag, size = 0x8, scoped, tag = 'scoped memory for tpu_custom_call.1']
    #allocation10 [shape = 'u8[8192]{0}', space=vmem, size = 0x2000, scoped, tag = 'input window, operand 4']
    #allocation11 [shape = 'u8[3145728]{0}', space=vmem, size = 0x300000, scoped, tag = 'input window, operand 5']
    #allocation12 [shape = 's32[2]{0}', space=sflag, size = 0x8, scoped, tag = 'scoped memory for tpu_custom_call.1']
    #allocation13 [shape = 'u8[8192]{0}', space=vmem, size = 0x2000, scoped, tag = 'input window, operand 6']
    #allocation14 [shape = 'u8[3145728]{0}', space=vmem, size = 0x300000, scoped, tag = 'input window, operand 7']
    #allocation15 [shape = 's32[2]{0}', space=sflag, size = 0x8, scoped, tag = 'scoped memory for tpu_custom_call.1']
    #allocation16 [shape = 'u8[8192]{0}', space=vmem, size = 0x2000, scoped, tag = 'input window, operand 8']
    #allocation17 [shape = 'u8[8192]{0}', space=vmem, size = 0x2000, scoped, tag = 'output window, operand 0']
    #allocation18 [shape = 'u8[8192]{0}', space=vmem, size = 0x2000, scoped, tag = 'output window, operand 1']
    #allocation19 [shape = 's32[2]{0}', space=sflag, size = 0x8, scoped, tag = 'scoped memory for tpu_custom_call.1']
    #allocation20 [shape = 'u8[8192]{0}', space=vmem, size = 0x2000, scoped, tag = 'output window, operand 2']
    %17 = vsyncpa [#allocation3], 0
    %18 = vsyncpa [#allocation6], 0
    %19 = vsyncpa [#allocation9], 0
    %s20 = scalar_lea.sflag [#allocation9], 1
    %21 = vsyncpa %s20, 0
    %22 = vsyncpa [#allocation12], 0
    %s23 = scalar_lea.sflag [#allocation12], 1
    %24 = vsyncpa %s23, 0
    %25 = vsyncpa [#allocation15], 0
    %s26 = scalar_lea.sflag [#allocation15], 1
    %27 = vsyncpa %s26, 0
    %28 = vsyncpa [#allocation4], 0
    %s29 = scalar_lea.sflag [#allocation4], 1
    %30 = vsyncpa %s29, 0
    %31 = vsyncpa [#allocation19], 0
    %s32 = scalar_lea.sflag [#allocation19], 1
    %33 = vsyncpa %s32, 0
    loop: start=0, step=1, limit=4
    $region2: #{tpu_custom_call.1} parent=1 // loop_pre_header
      _
    $region3: #{tpu_custom_call.1} parent=1 // loop_header
      %s35 = sphi 0, %s39
      %p36 = scmp.ge.s32.totalorder %s35, 4
      %s43 = sphi 0, %s43
      %s45 = sphi 0, %s43
      %s46 = sphi 0, %s45
      %s60 = sphi 0, %s46
      %s64 = sphi 0, %s64
      %s66 = sphi 0, %s64
      %s67 = sphi 0, %s66
      %s81 = sphi 0, %s67
      %s85 = sphi 0, %s85
      %s87 = sphi 0, %s85
      %s88 = sphi 0, %s87
      %s102 = sphi 0, %s88
      %s108 = sphi 0, %s110
      %s111 = sphi 0, %s108
      %s112 = sphi 0, %s111
      %s128 = sphi 0, %s112
      %s134 = sphi 0, %s136
      %s137 = sphi 0, %s134
      %s138 = sphi 0, %s137
      %s154 = sphi 0, %s138
      %s160 = sphi 0, %s162
      %s163 = sphi 0, %s160
      %s164 = sphi 0, %s163
      %s180 = sphi 0, %s164
      %s186 = sphi 0, %s188
      %s189 = sphi 0, %s186
      %s190 = sphi 0, %s189
      %s206 = sphi 0, %s190
      %s212 = sphi 0, %s214
      %s215 = sphi 0, %s212
      %s216 = sphi 0, %s215
      %s232 = sphi 0, %s216
      %s238 = sphi 0, %s240
      %s241 = sphi 0, %s238
      %s242 = sphi 0, %s241
      %s258 = sphi 0, %s242
      %s264 = sphi 0, %s266
      %s267 = sphi 0, %s264
      %s268 = sphi 0, %s267
      %s284 = sphi 0, %s268
      %s290 = sphi 0, %s292
      %s293 = sphi 0, %s290
      %s294 = sphi 0, %s293
      %s310 = sphi 0, %s294
      %s316 = sphi 0, %s318
      %s319 = sphi 0, %s316
      %s320 = sphi 0, %s319
      %s336 = sphi 0, %s320
    $region4: #{tpu_custom_call.1} parent=1 // loop_header_branch
      %38 = sbr.rel (%p36) target = $region8
    $region5: #{tpu_custom_call.1} parent=1 // loop_body
      %s40 = ssub.s32 %s35, 1
      %s41 = ssub.s32 %s35, 2
      %s42 = sadd.s32 %s35, 1
      %s44 = sadd.s32 %s43, 1
      %p47 = scmp.eq.s32.totalorder %s35, 1
      %p48 = scmp.ne.s32.totalorder %s43, %s45
      %p49 = scmp.eq.s32.totalorder %s35, 0
      %p50 = por %p48, %p49
      %p51 = scmp.ne.s32.totalorder %s43, %s45
      %p52 = scmp.eq.s32.totalorder %s40, 1
      %p53 = por %p51, %p52
      %p54 = scmp.ne.s32.totalorder %s45, %s46
      %p55 = scmp.eq.s32.totalorder %s40, 0
      %p56 = por %p54, %p55
      %p57 = scmp.ne.s32.totalorder %s45, %s46
      %p58 = scmp.eq.s32.totalorder %s41, 1
      %p59 = por %p57, %p58
      %p61 = scmp.ne.s32.totalorder %s46, %s60
      %p62 = scmp.eq.s32.totalorder %s41, 0
      %p63 = por %p61, %p62
      %s65 = sadd.s32 %s64, 1
      %p68 = scmp.eq.s32.totalorder %s35, 1
      %p69 = scmp.ne.s32.totalorder %s64, %s66
      %p70 = scmp.eq.s32.totalorder %s35, 0
      %p71 = por %p69, %p70
      %p72 = scmp.ne.s32.totalorder %s64, %s66
      %p73 = scmp.eq.s32.totalorder %s40, 1
      %p74 = por %p72, %p73
      %p75 = scmp.ne.s32.totalorder %s66, %s67
      %p76 = scmp.eq.s32.totalorder %s40, 0
      %p77 = por %p75, %p76
      %p78 = scmp.ne.s32.totalorder %s66, %s67
      %p79 = scmp.eq.s32.totalorder %s41, 1
      %p80 = por %p78, %p79
      %p82 = scmp.ne.s32.totalorder %s67, %s81
      %p83 = scmp.eq.s32.totalorder %s41, 0
      %p84 = por %p82, %p83
      %s86 = sadd.s32 %s85, 1
      %p89 = scmp.eq.s32.totalorder %s35, 1
      %p90 = scmp.ne.s32.totalorder %s85, %s87
      %p91 = scmp.eq.s32.totalorder %s35, 0
      %p92 = por %p90, %p91
      %p93 = scmp.ne.s32.totalorder %s85, %s87
      %p94 = scmp.eq.s32.totalorder %s40, 1
      %p95 = por %p93, %p94
      %p96 = scmp.ne.s32.totalorder %s87, %s88
      %p97 = scmp.eq.s32.totalorder %s40, 0
      %p98 = por %p96, %p97
      %p99 = scmp.ne.s32.totalorder %s87, %s88
      %p100 = scmp.eq.s32.totalorder %s41, 1
      %p101 = por %p99, %p100
      %p103 = scmp.ne.s32.totalorder %s88, %s102
      %p104 = scmp.eq.s32.totalorder %s41, 0
      %p105 = por %p103, %p104
      %s106 = ssub.s32 %s35, %s42
      %p107 = scmp.eq.s32.totalorder %s106, 0
      %s109 = sadd.s32 %s108, 1
      %s110 = scalar_select %p107, %s108, %s109
      %p113 = pneg %p107
      %p114 = scmp.eq.s32.totalorder %s35, 1
      %p115 = por %p113, %p114
      %p116 = scmp.ne.s32.totalorder %s108, %s111
      %p117 = scmp.eq.s32.totalorder %s35, 0
      %p118 = por %p116, %p117
      %p119 = scmp.ne.s32.totalorder %s108, %s111
      %p120 = scmp.eq.s32.totalorder %s40, 1
      %p121 = por %p119, %p120
      %p122 = scmp.ne.s32.totalorder %s111, %s112
      %p123 = scmp.eq.s32.totalorder %s40, 0
      %p124 = por %p122, %p123
      %p125 = scmp.ne.s32.totalorder %s111, %s112
      %p126 = scmp.eq.s32.totalorder %s41, 1
      %p127 = por %p125, %p126
      %p129 = scmp.ne.s32.totalorder %s112, %s128
      %p130 = scmp.eq.s32.totalorder %s41, 0
      %p131 = por %p129, %p130
      %s132 = ssub.s32 %s35, %s42
      %p133 = scmp.eq.s32.totalorder %s132, 0
      %s135 = sadd.s32 %s134, 1
      %s136 = scalar_select %p133, %s134, %s135
      %p139 = pneg %p133
      %p140 = scmp.eq.s32.totalorder %s35, 1
      %p141 = por %p139, %p140
      %p142 = scmp.ne.s32.totalorder %s134, %s137
      %p143 = scmp.eq.s32.totalorder %s35, 0
      %p144 = por %p142, %p143
      %p145 = scmp.ne.s32.totalorder %s134, %s137
      %p146 = scmp.eq.s32.totalorder %s40, 1
      %p147 = por %p145, %p146
      %p148 = scmp.ne.s32.totalorder %s137, %s138
      %p149 = scmp.eq.s32.totalorder %s40, 0
      %p150 = por %p148, %p149
      %p151 = scmp.ne.s32.totalorder %s137, %s138
      %p152 = scmp.eq.s32.totalorder %s41, 1
      %p153 = por %p151, %p152
      %p155 = scmp.ne.s32.totalorder %s138, %s154
      %p156 = scmp.eq.s32.totalorder %s41, 0
      %p157 = por %p155, %p156
      %s158 = ssub.s32 %s35, %s42
      %p159 = scmp.eq.s32.totalorder %s158, 0
      %s161 = sadd.s32 %s160, 1
      %s162 = scalar_select %p159, %s160, %s161
      %p165 = pneg %p159
      %p166 = scmp.eq.s32.totalorder %s35, 1
      %p167 = por %p165, %p166
      %p168 = scmp.ne.s32.totalorder %s160, %s163
      %p169 = scmp.eq.s32.totalorder %s35, 0
      %p170 = por %p168, %p169
      %p171 = scmp.ne.s32.totalorder %s160, %s163
      %p172 = scmp.eq.s32.totalorder %s40, 1
      %p173 = por %p171, %p172
      %p174 = scmp.ne.s32.totalorder %s163, %s164
      %p175 = scmp.eq.s32.totalorder %s40, 0
      %p176 = por %p174, %p175
      %p177 = scmp.ne.s32.totalorder %s163, %s164
      %p178 = scmp.eq.s32.totalorder %s41, 1
      %p179 = por %p177, %p178
      %p181 = scmp.ne.s32.totalorder %s164, %s180
      %p182 = scmp.eq.s32.totalorder %s41, 0
      %p183 = por %p181, %p182
      %s184 = ssub.s32 %s35, %s42
      %p185 = scmp.eq.s32.totalorder %s184, 0
      %s187 = sadd.s32 %s186, 1
      %s188 = scalar_select %p185, %s186, %s187
      %p191 = pneg %p185
      %p192 = scmp.eq.s32.totalorder %s35, 1
      %p193 = por %p191, %p192
      %p194 = scmp.ne.s32.totalorder %s186, %s189
      %p195 = scmp.eq.s32.totalorder %s35, 0
      %p196 = por %p194, %p195
      %p197 = scmp.ne.s32.totalorder %s186, %s189
      %p198 = scmp.eq.s32.totalorder %s40, 1
      %p199 = por %p197, %p198
      %p200 = scmp.ne.s32.totalorder %s189, %s190
      %p201 = scmp.eq.s32.totalorder %s40, 0
      %p202 = por %p200, %p201
      %p203 = scmp.ne.s32.totalorder %s189, %s190
      %p204 = scmp.eq.s32.totalorder %s41, 1
      %p205 = por %p203, %p204
      %p207 = scmp.ne.s32.totalorder %s190, %s206
      %p208 = scmp.eq.s32.totalorder %s41, 0
      %p209 = por %p207, %p208
      %s210 = ssub.s32 %s35, %s42
      %p211 = scmp.eq.s32.totalorder %s210, 0
      %s213 = sadd.s32 %s212, 1
      %s214 = scalar_select %p211, %s212, %s213
      %p217 = pneg %p211
      %p218 = scmp.eq.s32.totalorder %s35, 1
      %p219 = por %p217, %p218
      %p220 = scmp.ne.s32.totalorder %s212, %s215
      %p221 = scmp.eq.s32.totalorder %s35, 0
      %p222 = por %p220, %p221
      %p223 = scmp.ne.s32.totalorder %s212, %s215
      %p224 = scmp.eq.s32.totalorder %s40, 1
      %p225 = por %p223, %p224
      %p226 = scmp.ne.s32.totalorder %s215, %s216
      %p227 = scmp.eq.s32.totalorder %s40, 0
      %p228 = por %p226, %p227
      %p229 = scmp.ne.s32.totalorder %s215, %s216
      %p230 = scmp.eq.s32.totalorder %s41, 1
      %p231 = por %p229, %p230
      %p233 = scmp.ne.s32.totalorder %s216, %s232
      %p234 = scmp.eq.s32.totalorder %s41, 0
      %p235 = por %p233, %p234
      %s236 = ssub.s32 %s35, %s42
      %p237 = scmp.eq.s32.totalorder %s236, 0
      %s239 = sadd.s32 %s238, 1
      %s240 = scalar_select %p237, %s238, %s239
      %p243 = pneg %p237
      %p244 = scmp.eq.s32.totalorder %s35, 1
      %p245 = por %p243, %p244
      %p246 = scmp.ne.s32.totalorder %s238, %s241
      %p247 = scmp.eq.s32.totalorder %s35, 0
      %p248 = por %p246, %p247
      %p249 = scmp.ne.s32.totalorder %s238, %s241
      %p250 = scmp.eq.s32.totalorder %s40, 1
      %p251 = por %p249, %p250
      %p252 = scmp.ne.s32.totalorder %s241, %s242
      %p253 = scmp.eq.s32.totalorder %s40, 0
      %p254 = por %p252, %p253
      %p255 = scmp.ne.s32.totalorder %s241, %s242
      %p256 = scmp.eq.s32.totalorder %s41, 1
      %p257 = por %p255, %p256
      %p259 = scmp.ne.s32.totalorder %s242, %s258
      %p260 = scmp.eq.s32.totalorder %s41, 0
      %p261 = por %p259, %p260
      %s262 = ssub.s32 %s35, %s42
      %p263 = scmp.eq.s32.totalorder %s262, 0
      %s265 = sadd.s32 %s264, 1
      %s266 = scalar_select %p263, %s264, %s265
      %p269 = pneg %p263
      %p270 = scmp.eq.s32.totalorder %s35, 1
      %p271 = por %p269, %p270
      %p272 = scmp.ne.s32.totalorder %s264, %s267
      %p273 = scmp.eq.s32.totalorder %s35, 0
      %p274 = por %p272, %p273
      %p275 = scmp.ne.s32.totalorder %s264, %s267
      %p276 = scmp.eq.s32.totalorder %s40, 1
      %p277 = por %p275, %p276
      %p278 = scmp.ne.s32.totalorder %s267, %s268
      %p279 = scmp.eq.s32.totalorder %s40, 0
      %p280 = por %p278, %p279
      %p281 = scmp.ne.s32.totalorder %s267, %s268
      %p282 = scmp.eq.s32.totalorder %s41, 1
      %p283 = por %p281, %p282
      %p285 = scmp.ne.s32.totalorder %s268, %s284
      %p286 = scmp.eq.s32.totalorder %s41, 0
      %p287 = por %p285, %p286
      %s288 = ssub.s32 %s35, %s42
      %p289 = scmp.eq.s32.totalorder %s288, 0
      %s291 = sadd.s32 %s290, 1
      %s292 = scalar_select %p289, %s290, %s291
      %p295 = pneg %p289
      %p296 = scmp.eq.s32.totalorder %s35, 1
      %p297 = por %p295, %p296
      %p298 = scmp.ne.s32.totalorder %s290, %s293
      %p299 = scmp.eq.s32.totalorder %s35, 0
      %p300 = por %p298, %p299
      %p301 = scmp.ne.s32.totalorder %s290, %s293
      %p302 = scmp.eq.s32.totalorder %s40, 1
      %p303 = por %p301, %p302
      %p304 = scmp.ne.s32.totalorder %s293, %s294
      %p305 = scmp.eq.s32.totalorder %s40, 0
      %p306 = por %p304, %p305
      %p307 = scmp.ne.s32.totalorder %s293, %s294
      %p308 = scmp.eq.s32.totalorder %s41, 1
      %p309 = por %p307, %p308
      %p311 = scmp.ne.s32.totalorder %s294, %s310
      %p312 = scmp.eq.s32.totalorder %s41, 0
      %p313 = por %p311, %p312
      %s314 = ssub.s32 %s35, %s42
      %p315 = scmp.eq.s32.totalorder %s314, 0
      %s317 = sadd.s32 %s316, 1
      %s318 = scalar_select %p315, %s316, %s317
      %p321 = pneg %p315
      %p322 = scmp.eq.s32.totalorder %s35, 1
      %p323 = por %p321, %p322
      %p324 = scmp.ne.s32.totalorder %s316, %s319
      %p325 = scmp.eq.s32.totalorder %s35, 0
      %p326 = por %p324, %p325
      %p327 = scmp.ne.s32.totalorder %s316, %s319
      %p328 = scmp.eq.s32.totalorder %s40, 1
      %p329 = por %p327, %p328
      %p330 = scmp.ne.s32.totalorder %s319, %s320
      %p331 = scmp.eq.s32.totalorder %s40, 0
      %p332 = por %p330, %p331
      %p333 = scmp.ne.s32.totalorder %s319, %s320
      %p334 = scmp.eq.s32.totalorder %s41, 1
      %p335 = por %p333, %p334
      %p337 = scmp.ne.s32.totalorder %s320, %s336
      %p338 = scmp.eq.s32.totalorder %s41, 0
      %p339 = por %p337, %p338
      %p340 = scmp.le.s32.totalorder 1, %s35
      %p341 = scmp.lt.s32.totalorder %s35, 3
      %p342 = pnand %p340, %p341
      %p343 = pneg %p342
      // Predicated region
      $region9: #{tpu_custom_call.1} parent=5 // pred_check
        _
      $region10: #{tpu_custom_call.1} parent=5 // pred_check_branch
        %345 = sbr.rel (%p342) target = $region12
      $region11: #{tpu_custom_call.1} parent=5 // pred_region
        %s346 = ssub.s32 %s35, 1
        // Predicated region
        $region13: #{tpu_custom_call.1} parent=11 // pred_check
          %p347 = pneg %p56
        $region14: #{tpu_custom_call.1} parent=11 // pred_check_branch
          %349 = sbr.rel (%p347) target = $region16
        $region15: #{tpu_custom_call.1} parent=11 // pred_region
          %s351 = ssub.s32 256, 256
          %352 = vsyncadd [#allocation3], %s351
          %s354 = sshll.u32 [#allocation2], 4
          %s355 = int_to_ptr.vmem [resolvable:$true] %s354
          %357 = dma.hbm_to_vmem [thread:$0]  %s0, 256, %s355, [#allocation3]
        $region16: #{tpu_custom_call.1} parent=11 // pred_fallthru
          _
        // Predicated region
        $region17: #{tpu_custom_call.1} parent=11 // pred_check
          %p358 = pneg %p77
        $region18: #{tpu_custom_call.1} parent=11 // pred_check_branch
          %360 = sbr.rel (%p358) target = $region20
        $region19: #{tpu_custom_call.1} parent=11 // pred_region
          %s362 = ssub.s32 256, 256
          %363 = vsyncadd [#allocation6], %s362
          %s365 = sshll.u32 [#allocation5], 4
          %s366 = int_to_ptr.vmem [resolvable:$true] %s365
          %368 = dma.hbm_to_vmem [thread:$0]  %s1, 256, %s366, [#allocation6]
        $region20: #{tpu_custom_call.1} parent=11 // pred_fallthru
          _
        // Predicated region
        $region21: #{tpu_custom_call.1} parent=11 // pred_check
          %p369 = pneg %p98
        $region22: #{tpu_custom_call.1} parent=11 // pred_check_branch
          %371 = sbr.rel (%p369) target = $region24
        $region23: #{tpu_custom_call.1} parent=11 // pred_region
          %s373 = ssub.s32 256, 256
          %374 = vsyncadd [#allocation6], %s373
          %s376 = sshll.u32 [#allocation7], 4
          %s377 = int_to_ptr.vmem [resolvable:$true] %s376
          %379 = dma.hbm_to_vmem [thread:$0]  %s2, 256, %s377, [#allocation6]
        $region24: #{tpu_custom_call.1} parent=11 // pred_fallthru
          _
      $region12: #{tpu_custom_call.1} parent=5 // pred_fallthru
        _
      %p380 = scmp.lt.s32.totalorder %s35, 2
      // Predicated region
      $region25: #{tpu_custom_call.1} parent=5 // pred_check
        %p381 = pneg %p380
      $region26: #{tpu_custom_call.1} parent=5 // pred_check_branch
        %383 = sbr.rel (%p381) target = $region28
      $region27: #{tpu_custom_call.1} parent=5 // pred_region
        // Predicated region
        $region29: #{tpu_custom_call.1} parent=27 // pred_check
          %p384 = pneg %p118
        $region30: #{tpu_custom_call.1} parent=27 // pred_check_branch
          %386 = sbr.rel (%p384) target = $region32
        $region31: #{tpu_custom_call.1} parent=27 // pred_region
          #allocation22 [shape = 'u32[6]{0}', space=smem, size = 0x18, scoped, tag = 'DMA stride descriptor']
          %s387 = sand.u32 %s35, 1
          %s388 = scalar_lea.sflag [#allocation9], %s387
          %s389 = sand.u32 %s108, 1
          %s390 = smul.addr %s389, 3072
          %s391 = scalar_lea.vmem [#allocation8], %s390
          %s392 = smul.u32 32, %s35
          %s394 = ssub.s32 49152, 49152
          %395 = vsyncadd %s388, %s394
          %s396 = smul.addr %s392, 4
          %s397 = smul.addr %s396, 128
          %s398 = scalar_lea.hbm %s3, %s397
          %s400 = sshll.u32 1, 14
          %s401 = sxor.u32 4294967295, %s400
          %s403 = sld [smem:[#allocation0]]
          %s404 = sadd.s32 2, %s403
          %s406 = sshll.u32 7, 26
          %s407 = sxor.u32 4294967295, %s406
          %s408 = sand.u32 0, %s407
          %s409 = sshll.u32 %s404, 26
          %s410 = sor.u32 %s408, %s409
          %s411 = sshll.u32 %s391, 4
          %s412 = int_to_ptr.vmem [resolvable:$true] %s411
          %418 = sst [smem:[#allocation22]] 32768
          %s419 = scalar_lea.smem [#allocation22], 1
          %420 = sst [smem:[%s419]] 16384
          %s421 = scalar_lea.smem [#allocation22], 2
          %422 = sst [smem:[%s421]] 32
          %s423 = scalar_lea.smem [#allocation22], 3
          %424 = sst [smem:[%s423]] 512
          %s425 = scalar_lea.smem [#allocation22], 4
          %426 = sst [smem:[%s425]] 512
          %s427 = scalar_lea.smem [#allocation22], 5
          %428 = sst [smem:[%s427]] 32
          %430 = dma.general %s398, 49152, %s412, %s388, [#allocation21], [#allocation22], %s410, 0
        $region32: #{tpu_custom_call.1} parent=27 // pred_fallthru
          _
        // Predicated region
        $region33: #{tpu_custom_call.1} parent=27 // pred_check
          %p431 = pneg %p144
        $region34: #{tpu_custom_call.1} parent=27 // pred_check_branch
          %433 = sbr.rel (%p431) target = $region36
        $region35: #{tpu_custom_call.1} parent=27 // pred_region
          %s434 = sand.u32 %s35, 1
          %s435 = scalar_lea.sflag [#allocation9], %s434
          %s436 = sand.u32 %s134, 1
          %s437 = smul.addr %s436, 8
          %s438 = scalar_lea.vmem [#allocation10], %s437
          %s439 = smul.u32 2, %s35
          %s441 = ssub.s32 128, 128
          %442 = vsyncadd %s435, %s441
          %s443 = smul.addr %s439, 64
          %s444 = scalar_lea.hbm %s4, %s443
          %s446 = sshll.u32 %s438, 4
          %s447 = int_to_ptr.vmem [resolvable:$true] %s446
          %449 = dma.hbm_to_vmem [thread:$0]  %s444, 128, %s447, %s435
        $region36: #{tpu_custom_call.1} parent=27 // pred_fallthru
          _
        // Predicated region
        $region37: #{tpu_custom_call.1} parent=27 // pred_check
          %p450 = pneg %p170
        $region38: #{tpu_custom_call.1} parent=27 // pred_check_branch
          %452 = sbr.rel (%p450) target = $region40
        $region39: #{tpu_custom_call.1} parent=27 // pred_region
          #allocation24 [shape = 'u32[6]{0}', space=smem, size = 0x18, scoped, tag = 'DMA stride descriptor']
          %s453 = sand.u32 %s35, 1
          %s454 = scalar_lea.sflag [#allocation12], %s453
          %s455 = sand.u32 %s160, 1
          %s456 = smul.addr %s455, 3072
          %s457 = scalar_lea.vmem [#allocation11], %s456
          %s458 = smul.u32 32, %s35
          %s460 = ssub.s32 49152, 49152
          %461 = vsyncadd %s454, %s460
          %s462 = smul.addr %s458, 4
          %s463 = smul.addr %s462, 128
          %s464 = scalar_lea.hbm %s5, %s463
          %s466 = sshll.u32 1, 14
          %s467 = sxor.u32 4294967295, %s466
          %s469 = sld [smem:[#allocation0]]
          %s470 = sadd.s32 2, %s469
          %s472 = sshll.u32 7, 26
          %s473 = sxor.u32 4294967295, %s472
          %s474 = sand.u32 0, %s473
          %s475 = sshll.u32 %s470, 26
          %s476 = sor.u32 %s474, %s475
          %s477 = sshll.u32 %s457, 4
          %s478 = int_to_ptr.vmem [resolvable:$true] %s477
          %484 = sst [smem:[#allocation24]] 32768
          %s485 = scalar_lea.smem [#allocation24], 1
          %486 = sst [smem:[%s485]] 16384
          %s487 = scalar_lea.smem [#allocation24], 2
          %488 = sst [smem:[%s487]] 32
          %s489 = scalar_lea.smem [#allocation24], 3
          %490 = sst [smem:[%s489]] 512
          %s491 = scalar_lea.smem [#allocation24], 4
          %492 = sst [smem:[%s491]] 512
          %s493 = scalar_lea.smem [#allocation24], 5
          %494 = sst [smem:[%s493]] 32
          %496 = dma.general %s464, 49152, %s478, %s454, [#allocation23], [#allocation24], %s476, 0
        $region40: #{tpu_custom_call.1} parent=27 // pred_fallthru
          _
        // Predicated region
        $region41: #{tpu_custom_call.1} parent=27 // pred_check
          %p497 = pneg %p196
        $region42: #{tpu_custom_call.1} parent=27 // pred_check_branch
          %499 = sbr.rel (%p497) target = $region44
        $region43: #{tpu_custom_call.1} parent=27 // pred_region
          %s500 = sand.u32 %s35, 1
          %s501 = scalar_lea.sflag [#allocation12], %s500
          %s502 = sand.u32 %s186, 1
          %s503 = smul.addr %s502, 8
          %s504 = scalar_lea.vmem [#allocation13], %s503
          %s505 = smul.u32 2, %s35
          %s507 = ssub.s32 128, 128
          %508 = vsyncadd %s501, %s507
          %s509 = smul.addr %s505, 64
          %s510 = scalar_lea.hbm %s6, %s509
          %s512 = sshll.u32 %s504, 4
          %s513 = int_to_ptr.vmem [resolvable:$true] %s512
          %515 = dma.hbm_to_vmem [thread:$0]  %s510, 128, %s513, %s501
        $region44: #{tpu_custom_call.1} parent=27 // pred_fallthru
          _
        // Predicated region
        $region45: #{tpu_custom_call.1} parent=27 // pred_check
          %p516 = pneg %p222
        $region46: #{tpu_custom_call.1} parent=27 // pred_check_branch
          %518 = sbr.rel (%p516) target = $region48
        $region47: #{tpu_custom_call.1} parent=27 // pred_region
          #allocation26 [shape = 'u32[6]{0}', space=smem, size = 0x18, scoped, tag = 'DMA stride descriptor']
          %s519 = sand.u32 %s35, 1
          %s520 = scalar_lea.sflag [#allocation15], %s519
          %s521 = sand.u32 %s212, 1
          %s522 = smul.addr %s521, 3072
          %s523 = scalar_lea.vmem [#allocation14], %s522
          %s524 = smul.u32 32, %s35
          %s526 = ssub.s32 49152, 49152
          %527 = vsyncadd %s520, %s526
          %s528 = smul.addr %s524, 4
          %s529 = smul.addr %s528, 128
          %s530 = scalar_lea.hbm %s7, %s529
          %s532 = sshll.u32 1, 14
          %s533 = sxor.u32 4294967295, %s532
          %s535 = sld [smem:[#allocation0]]
          %s536 = sadd.s32 2, %s535
          %s538 = sshll.u32 7, 26
          %s539 = sxor.u32 4294967295, %s538
          %s540 = sand.u32 0, %s539
          %s541 = sshll.u32 %s536, 26
          %s542 = sor.u32 %s540, %s541
          %s543 = sshll.u32 %s523, 4
          %s544 = int_to_ptr.vmem [resolvable:$true] %s543
          %550 = sst [smem:[#allocation26]] 32768
          %s551 = scalar_lea.smem [#allocation26], 1
          %552 = sst [smem:[%s551]] 16384
          %s553 = scalar_lea.smem [#allocation26], 2
          %554 = sst [smem:[%s553]] 32
          %s555 = scalar_lea.smem [#allocation26], 3
          %556 = sst [smem:[%s555]] 512
          %s557 = scalar_lea.smem [#allocation26], 4
          %558 = sst [smem:[%s557]] 512
          %s559 = scalar_lea.smem [#allocation26], 5
          %560 = sst [smem:[%s559]] 32
          %562 = dma.general %s530, 49152, %s544, %s520, [#allocation25], [#allocation26], %s542, 0
        $region48: #{tpu_custom_call.1} parent=27 // pred_fallthru
          _
        // Predicated region
        $region49: #{tpu_custom_call.1} parent=27 // pred_check
          %p563 = pneg %p248
        $region50: #{tpu_custom_call.1} parent=27 // pred_check_branch
          %565 = sbr.rel (%p563) target = $region52
        $region51: #{tpu_custom_call.1} parent=27 // pred_region
          %s566 = sand.u32 %s35, 1
          %s567 = scalar_lea.sflag [#allocation15], %s566
          %s568 = sand.u32 %s238, 1
          %s569 = smul.addr %s568, 8
          %s570 = scalar_lea.vmem [#allocation16], %s569
          %s571 = smul.u32 2, %s35
          %s573 = ssub.s32 128, 128
          %574 = vsyncadd %s567, %s573
          %s575 = smul.addr %s571, 64
          %s576 = scalar_lea.hbm %s8, %s575
          %s578 = sshll.u32 %s570, 4
          %s579 = int_to_ptr.vmem [resolvable:$true] %s578
          %581 = dma.hbm_to_vmem [thread:$0]  %s576, 128, %s579, %s567
        $region52: #{tpu_custom_call.1} parent=27 // pred_fallthru
          _
      $region28: #{tpu_custom_call.1} parent=5 // pred_fallthru
        _
      %p582 = scmp.le.s32.totalorder 1, %s35
      %p583 = scmp.lt.s32.totalorder %s35, 3
      %p584 = pnand %p582, %p583
      %p585 = pneg %p584
      // Predicated region
      $region53: #{tpu_custom_call.1} parent=5 // pred_check
        _
      $region54: #{tpu_custom_call.1} parent=5 // pred_check_branch
        %587 = sbr.rel (%p584) target = $region56
      $region55: #{tpu_custom_call.1} parent=5 // pred_region
        %s588 = ssub.s32 %s35, 1
        // Predicated region
        $region57: #{tpu_custom_call.1} parent=55 // pred_check
          %p589 = pneg %p56
        $region58: #{tpu_custom_call.1} parent=55 // pred_check_branch
          %591 = sbr.rel (%p589) target = $region60
        $region59: #{tpu_custom_call.1} parent=55 // pred_region
          %592 = dma.done [#allocation3], 256
        $region60: #{tpu_custom_call.1} parent=55 // pred_fallthru
          _
        // Predicated region
        $region61: #{tpu_custom_call.1} parent=55 // pred_check
          %p593 = pneg %p77
        $region62: #{tpu_custom_call.1} parent=55 // pred_check_branch
          %595 = sbr.rel (%p593) target = $region64
        $region63: #{tpu_custom_call.1} parent=55 // pred_region
          %596 = dma.done [#allocation6], 256
        $region64: #{tpu_custom_call.1} parent=55 // pred_fallthru
          _
        // Predicated region
        $region65: #{tpu_custom_call.1} parent=55 // pred_check
          %p597 = pneg %p98
        $region66: #{tpu_custom_call.1} parent=55 // pred_check_branch
          %599 = sbr.rel (%p597) target = $region68
        $region67: #{tpu_custom_call.1} parent=55 // pred_region
          %600 = dma.done [#allocation6], 256
        $region68: #{tpu_custom_call.1} parent=55 // pred_fallthru
          _
        %s601 = sand.u32 %s40, 1
        %s602 = scalar_lea.sflag [#allocation9], %s601
        %s603 = sand.u32 %s111, 1
        %s604 = smul.addr %s603, 3072
        %s605 = scalar_lea.vmem [#allocation8], %s604
        // Predicated region
        $region69: #{tpu_custom_call.1} parent=55 // pred_check
          %p606 = pneg %p124
        $region70: #{tpu_custom_call.1} parent=55 // pred_check_branch
          %608 = sbr.rel (%p606) target = $region72
        $region71: #{tpu_custom_call.1} parent=55 // pred_region
          %609 = dma.done %s602, 49152
        $region72: #{tpu_custom_call.1} parent=55 // pred_fallthru
          _
        %s610 = sand.u32 %s40, 1
        %s611 = scalar_lea.sflag [#allocation9], %s610
        %s612 = sand.u32 %s137, 1
        %s613 = smul.addr %s612, 8
        %s614 = scalar_lea.vmem [#allocation10], %s613
        // Predicated region
        $region73: #{tpu_custom_call.1} parent=55 // pred_check
          %p615 = pneg %p150
        $region74: #{tpu_custom_call.1} parent=55 // pred_check_branch
          %617 = sbr.rel (%p615) target = $region76
        $region75: #{tpu_custom_call.1} parent=55 // pred_region
          %618 = dma.done %s611, 128
        $region76: #{tpu_custom_call.1} parent=55 // pred_fallthru
          _
        %s619 = sand.u32 %s40, 1
        %s620 = scalar_lea.sflag [#allocation12], %s619
        %s621 = sand.u32 %s163, 1
        %s622 = smul.addr %s621, 3072
        %s623 = scalar_lea.vmem [#allocation11], %s622
        // Predicated region
        $region77: #{tpu_custom_call.1} parent=55 // pred_check
          %p624 = pneg %p176
        $region78: #{tpu_custom_call.1} parent=55 // pred_check_branch
          %626 = sbr.rel (%p624) target = $region80
        $region79: #{tpu_custom_call.1} parent=55 // pred_region
          %627 = dma.done %s620, 49152
        $region80: #{tpu_custom_call.1} parent=55 // pred_fallthru
          _
        %s628 = sand.u32 %s40, 1
        %s629 = scalar_lea.sflag [#allocation12], %s628
        %s630 = sand.u32 %s189, 1
        %s631 = smul.addr %s630, 8
        %s632 = scalar_lea.vmem [#allocation13], %s631
        // Predicated region
        $region81: #{tpu_custom_call.1} parent=55 // pred_check
          %p633 = pneg %p202
        $region82: #{tpu_custom_call.1} parent=55 // pred_check_branch
          %635 = sbr.rel (%p633) target = $region84
        $region83: #{tpu_custom_call.1} parent=55 // pred_region
          %636 = dma.done %s629, 128
        $region84: #{tpu_custom_call.1} parent=55 // pred_fallthru
          _
        %s637 = sand.u32 %s40, 1
        %s638 = scalar_lea.sflag [#allocation15], %s637
        %s639 = sand.u32 %s215, 1
        %s640 = smul.addr %s639, 3072
        %s641 = scalar_lea.vmem [#allocation14], %s640
        // Predicated region
        $region85: #{tpu_custom_call.1} parent=55 // pred_check
          %p642 = pneg %p228
        $region86: #{tpu_custom_call.1} parent=55 // pred_check_branch
          %644 = sbr.rel (%p642) target = $region88
        $region87: #{tpu_custom_call.1} parent=55 // pred_region
          %645 = dma.done %s638, 49152
        $region88: #{tpu_custom_call.1} parent=55 // pred_fallthru
          _
        %s646 = sand.u32 %s40, 1
        %s647 = scalar_lea.sflag [#allocation15], %s646
        %s648 = sand.u32 %s241, 1
        %s649 = smul.addr %s648, 8
        %s650 = scalar_lea.vmem [#allocation16], %s649
        // Predicated region
        $region89: #{tpu_custom_call.1} parent=55 // pred_check
          %p651 = pneg %p254
        $region90: #{tpu_custom_call.1} parent=55 // pred_check_branch
          %653 = sbr.rel (%p651) target = $region92
        $region91: #{tpu_custom_call.1} parent=55 // pred_region
          %654 = dma.done %s647, 128
        $region92: #{tpu_custom_call.1} parent=55 // pred_fallthru
          _
        %p655 = pneg %p56
        %p656 = pneg %p53
        %p657 = pneg %p77
        %p658 = pneg %p74
        %p659 = pneg %p98
        %p660 = pneg %p95
        %s661 = sand.u32 %s40, 1
        %s662 = scalar_lea.sflag [#allocation9], %s661
        %s663 = sand.u32 %s111, 1
        %s664 = smul.addr %s663, 3072
        %s665 = scalar_lea.vmem [#allocation8], %s664
        %p666 = pneg %p124
        %p667 = pneg %p121
        %s668 = sand.u32 %s40, 1
        %s669 = scalar_lea.sflag [#allocation9], %s668
        %s670 = sand.u32 %s137, 1
        %s671 = smul.addr %s670, 8
        %s672 = scalar_lea.vmem [#allocation10], %s671
        %p673 = pneg %p150
        %p674 = pneg %p147
        %s675 = sand.u32 %s40, 1
        %s676 = scalar_lea.sflag [#allocation12], %s675
        %s677 = sand.u32 %s163, 1
        %s678 = smul.addr %s677, 3072
        %s679 = scalar_lea.vmem [#allocation11], %s678
        %p680 = pneg %p176
        %p681 = pneg %p173
        %s682 = sand.u32 %s40, 1
        %s683 = scalar_lea.sflag [#allocation12], %s682
        %s684 = sand.u32 %s189, 1
        %s685 = smul.addr %s684, 8
        %s686 = scalar_lea.vmem [#allocation13], %s685
        %p687 = pneg %p202
        %p688 = pneg %p199
        %s689 = sand.u32 %s40, 1
        %s690 = scalar_lea.sflag [#allocation15], %s689
        %s691 = sand.u32 %s215, 1
        %s692 = smul.addr %s691, 3072
        %s693 = scalar_lea.vmem [#allocation14], %s692
        %p694 = pneg %p228
        %p695 = pneg %p225
        %s696 = sand.u32 %s40, 1
        %s697 = scalar_lea.sflag [#allocation15], %s696
        %s698 = sand.u32 %s241, 1
        %s699 = smul.addr %s698, 8
        %s700 = scalar_lea.vmem [#allocation16], %s699
        %p701 = pneg %p254
        %p702 = pneg %p251
        %p703 = pneg %p280
        %p704 = pneg %p277
        %s705 = sand.u32 %s267, 1
        %s706 = scalar_lea.sflag [#allocation4], %s705
        %s707 = sand.u32 %s267, 1
        %s708 = smul.addr %s707, 8
        %s709 = scalar_lea.vmem [#allocation17], %s708
        %p710 = pneg %p306
        %p711 = pneg %p303
        %s712 = sand.u32 %s40, 1
        %s713 = scalar_lea.sflag [#allocation19], %s712
        %s714 = sand.u32 %s293, 1
        %s715 = smul.addr %s714, 8
        %s716 = scalar_lea.vmem [#allocation18], %s715
        %p717 = pneg %p332
        %p718 = pneg %p329
        %s719 = sand.u32 %s40, 1
        %s720 = scalar_lea.sflag [#allocation19], %s719
        %s721 = sand.u32 %s319, 1
        %s722 = smul.addr %s721, 8
        %s723 = scalar_lea.vmem [#allocation20], %s722
        %s724 = smul.u32 32, %s40
        %s725 = smul.u32 2, %s40
        %s726 = smul.u32 32, %s40
        %s727 = smul.u32 2, %s40
        %s728 = smul.u32 32, %s40
        %s729 = smul.u32 2, %s40
        %s730 = smul.u32 2, %s40
        %s731 = smul.u32 2, %s40
        %s732 = smul.u32 2, %s40
        %v733 = vld [vmem:[#allocation2] sm:$0xff]
        %v734 = vld [vmem:[#allocation2 + $0x8] sm:$0xff]
        %v735 = vld [vmem:[#allocation5] sm:$0xff]
        %v736 = vld [vmem:[#allocation5 + $0x8] sm:$0xff]
        %v737 = vld [vmem:[#allocation7] sm:$0xff]
        %v738 = vld [vmem:[#allocation7 + $0x8] sm:$0xff]
        %v739 = vld [vmem:[%s605] sm:$0xff]
        %v740 = vld [vmem:[%s605 + $0x8] sm:$0xff]
        %v741 = vld [vmem:[%s605 + $0x10] sm:$0xff]
        %v742 = vld [vmem:[%s605 + $0x18] sm:$0xff]
        %v743 = vld [vmem:[%s605 + $0x20] sm:$0xff]
        %v744 = vld [vmem:[%s605 + $0x28] sm:$0xff]
        %v745 = vld [vmem:[%s605 + $0x30] sm:$0xff]
        %v746 = vld [vmem:[%s605 + $0x38] sm:$0xff]
        %v747 = vld [vmem:[%s605 + $0x40] sm:$0xff]
        %v748 = vld [vmem:[%s605 + $0x48] sm:$0xff]
        %v749 = vld [vmem:[%s605 + $0x50] sm:$0xff]
        %v750 = vld [vmem:[%s605 + $0x58] sm:$0xff]
        %v751 = vld [vmem:[%s605 + $0x60] sm:$0xff]
        %v752 = vld [vmem:[%s605 + $0x68] sm:$0xff]
        %v753 = vld [vmem:[%s605 + $0x70] sm:$0xff]
        %v754 = vld [vmem:[%s605 + $0x78] sm:$0xff]
        %v755 = vld [vmem:[%s605 + $0x80] sm:$0xff]
        %v756 = vld [vmem:[%s605 + $0x88] sm:$0xff]
        %v757 = vld [vmem:[%s605 + $0x90] sm:$0xff]
        %v758 = vld [vmem:[%s605 + $0x98] sm:$0xff]
        %v759 = vld [vmem:[%s605 + $0xa0] sm:$0xff]
        %v760 = vld [vmem:[%s605 + $0xa8] sm:$0xff]
        %v761 = vld [vmem:[%s605 + $0xb0] sm:$0xff]
        %v762 = vld [vmem:[%s605 + $0xb8] sm:$0xff]
        %v763 = vld [vmem:[%s605 + $0xc0] sm:$0xff]
        %v764 = vld [vmem:[%s605 + $0xc8] sm:$0xff]
        %v765 = vld [vmem:[%s605 + $0xd0] sm:$0xff]
        %v766 = vld [vmem:[%s605 + $0xd8] sm:$0xff]
        %v767 = vld [vmem:[%s605 + $0xe0] sm:$0xff]
        %v768 = vld [vmem:[%s605 + $0xe8] sm:$0xff]
        %v769 = vld [vmem:[%s605 + $0xf0] sm:$0xff]
        %v770 = vld [vmem:[%s605 + $0xf8] sm:$0xff]
        %v771 = vld [vmem:[%s605 + $0x100] sm:$0xff]
        %v772 = vld [vmem:[%s605 + $0x108] sm:$0xff]
        %v773 = vld [vmem:[%s605 + $0x110] sm:$0xff]
        %v774 = vld [vmem:[%s605 + $0x118] sm:$0xff]
        %v775 = vld [vmem:[%s605 + $0x120] sm:$0xff]
        %v776 = vld [vmem:[%s605 + $0x128] sm:$0xff]
        %v777 = vld [vmem:[%s605 + $0x130] sm:$0xff]
        %v778 = vld [vmem:[%s605 + $0x138] sm:$0xff]
        %v779 = vld [vmem:[%s605 + $0x140] sm:$0xff]
        %v780 = vld [vmem:[%s605 + $0x148] sm:$0xff]
        %v781 = vld [vmem:[%s605 + $0x150] sm:$0xff]
        %v782 = vld [vmem:[%s605 + $0x158] sm:$0xff]
        %v783 = vld [vmem:[%s605 + $0x160] sm:$0xff]
        %v784 = vld [vmem:[%s605 + $0x168] sm:$0xff]
        %v785 = vld [vmem:[%s605 + $0x170] sm:$0xff]
        %v786 = vld [vmem:[%s605 + $0x178] sm:$0xff]
        %v787 = vld [vmem:[%s605 + $0x180] sm:$0xff]
        %v788 = vld [vmem:[%s605 + $0x188] sm:$0xff]
        %v789 = vld [vmem:[%s605 + $0x190] sm:$0xff]
        %v790 = vld [vmem:[%s605 + $0x198] sm:$0xff]
        %v791 = vld [vmem:[%s605 + $0x1a0] sm:$0xff]
        %v792 = vld [vmem:[%s605 + $0x1a8] sm:$0xff]
        %v793 = vld [vmem:[%s605 + $0x1b0] sm:$0xff]
        %v794 = vld [vmem:[%s605 + $0x1b8] sm:$0xff]
        %v795 = vld [vmem:[%s605 + $0x1c0] sm:$0xff]
        %v796 = vld [vmem:[%s605 + $0x1c8] sm:$0xff]
        %v797 = vld [vmem:[%s605 + $0x1d0] sm:$0xff]
        %v798 = vld [vmem:[%s605 + $0x1d8] sm:$0xff]
        %v799 = vld [vmem:[%s605 + $0x1e0] sm:$0xff]
        %v800 = vld [vmem:[%s605 + $0x1e8] sm:$0xff]
        %v801 = vld [vmem:[%s605 + $0x1f0] sm:$0xff]
        %v802 = vld [vmem:[%s605 + $0x1f8] sm:$0xff]
        %v803 = vld [vmem:[%s605 + $0x200] sm:$0xff]
        %v804 = vld [vmem:[%s605 + $0x208] sm:$0xff]
        %v805 = vld [vmem:[%s605 + $0x210] sm:$0xff]
        %v806 = vld [vmem:[%s605 + $0x218] sm:$0xff]
        %v807 = vld [vmem:[%s605 + $0x220] sm:$0xff]
        %v808 = vld [vmem:[%s605 + $0x228] sm:$0xff]
        %v809 = vld [vmem:[%s605 + $0x230] sm:$0xff]
        %v810 = vld [vmem:[%s605 + $0x238] sm:$0xff]
        %v811 = vld [vmem:[%s605 + $0x240] sm:$0xff]
        %v812 = vld [vmem:[%s605 + $0x248] sm:$0xff]
        %v813 = vld [vmem:[%s605 + $0x250] sm:$0xff]
        %v814 = vld [vmem:[%s605 + $0x258] sm:$0xff]
        %v815 = vld [vmem:[%s605 + $0x260] sm:$0xff]
        %v816 = vld [vmem:[%s605 + $0x268] sm:$0xff]
        %v817 = vld [vmem:[%s605 + $0x270] sm:$0xff]
        %v818 = vld [vmem:[%s605 + $0x278] sm:$0xff]
        %v819 = vld [vmem:[%s605 + $0x280] sm:$0xff]
        %v820 = vld [vmem:[%s605 + $0x288] sm:$0xff]
        %v821 = vld [vmem:[%s605 + $0x290] sm:$0xff]
        %v822 = vld [vmem:[%s605 + $0x298] sm:$0xff]
        %v823 = vld [vmem:[%s605 + $0x2a0] sm:$0xff]
        %v824 = vld [vmem:[%s605 + $0x2a8] sm:$0xff]
        %v825 = vld [vmem:[%s605 + $0x2b0] sm:$0xff]
        %v826 = vld [vmem:[%s605 + $0x2b8] sm:$0xff]
        %v827 = vld [vmem:[%s605 + $0x2c0] sm:$0xff]
        %v828 = vld [vmem:[%s605 + $0x2c8] sm:$0xff]
        %v829 = vld [vmem:[%s605 + $0x2d0] sm:$0xff]
        %v830 = vld [vmem:[%s605 + $0x2d8] sm:$0xff]
        %v831 = vld [vmem:[%s605 + $0x2e0] sm:$0xff]
        %v832 = vld [vmem:[%s605 + $0x2e8] sm:$0xff]
        %v833 = vld [vmem:[%s605 + $0x2f0] sm:$0xff]
        %v834 = vld [vmem:[%s605 + $0x2f8] sm:$0xff]
        %v835 = vld [vmem:[%s605 + $0x300] sm:$0xff]
        %v836 = vld [vmem:[%s605 + $0x308] sm:$0xff]
        %v837 = vld [vmem:[%s605 + $0x310] sm:$0xff]
        %v838 = vld [vmem:[%s605 + $0x318] sm:$0xff]
        %v839 = vld [vmem:[%s605 + $0x320] sm:$0xff]
        %v840 = vld [vmem:[%s605 + $0x328] sm:$0xff]
        %v841 = vld [vmem:[%s605 + $0x330] sm:$0xff]
        %v842 = vld [vmem:[%s605 + $0x338] sm:$0xff]
        %v843 = vld [vmem:[%s605 + $0x340] sm:$0xff]
        %v844 = vld [vmem:[%s605 + $0x348] sm:$0xff]
        %v845 = vld [vmem:[%s605 + $0x350] sm:$0xff]
        %v846 = vld [vmem:[%s605 + $0x358] sm:$0xff]
        %v847 = vld [vmem:[%s605 + $0x360] sm:$0xff]
        %v848 = vld [vmem:[%s605 + $0x368] sm:$0xff]
        %v849 = vld [vmem:[%s605 + $0x370] sm:$0xff]
        %v850 = vld [vmem:[%s605 + $0x378] sm:$0xff]
        %v851 = vld [vmem:[%s605 + $0x380] sm:$0xff]
        %v852 = vld [vmem:[%s605 + $0x388] sm:$0xff]
        %v853 = vld [vmem:[%s605 + $0x390] sm:$0xff]
        %v854 = vld [vmem:[%s605 + $0x398] sm:$0xff]
        %v855 = vld [vmem:[%s605 + $0x3a0] sm:$0xff]
        %v856 = vld [vmem:[%s605 + $0x3a8] sm:$0xff]
        %v857 = vld [vmem:[%s605 + $0x3b0] sm:$0xff]
        %v858 = vld [vmem:[%s605 + $0x3b8] sm:$0xff]
        %v859 = vld [vmem:[%s605 + $0x3c0] sm:$0xff]
        %v860 = vld [vmem:[%s605 + $0x3c8] sm:$0xff]
        %v861 = vld [vmem:[%s605 + $0x3d0] sm:$0xff]
        %v862 = vld [vmem:[%s605 + $0x3d8] sm:$0xff]
        %v863 = vld [vmem:[%s605 + $0x3e0] sm:$0xff]
        %v864 = vld [vmem:[%s605 + $0x3e8] sm:$0xff]
        %v865 = vld [vmem:[%s605 + $0x3f0] sm:$0xff]
        %v866 = vld [vmem:[%s605 + $0x3f8] sm:$0xff]
        %v867 = vld [vmem:[%s614] ss:$4 sm:$0x3]
        %v869 = vlaneseq
        %v870 = vshrl.u32 %v869, 7
        %v871 = vsub.s32 0, %v870
        %v872 = vrot.slane %v867, %v871
        %v873 = vlaneseq
        %v874 = vshrl.u32 %v873, 7
        %v875 = vsub.s32 1, %v874
        %v876 = vrot.slane %v867, %v875
        %v881 = vcombine.high %v733, %v733
        %v882 = vcombine.high %v734, %v734
        %885 = vmatprep.subr.mxu0 %v740
        %886 = vmatpush1.xpose.msra.mxu0 %v739
        %887 = vmatprep.subr.mxu0 %v744
        %888 = vmatpush1.xpose.msra.mxu0 %v743
        %889 = vmatprep.subr.mxu0 %v748
        %890 = vmatpush1.xpose.msra.mxu0 %v747
        %891 = vmatprep.subr.mxu0 %v752
        %892 = vmatpush1.xpose.msra.mxu0 %v751
        %893 = vmatprep.subr.mxu0 %v756
        %894 = vmatpush1.xpose.msra.mxu0 %v755
        %895 = vmatprep.subr.mxu0 %v760
        %896 = vmatpush1.xpose.msra.mxu0 %v759
        %897 = vmatprep.subr.mxu0 %v764
        %898 = vmatpush1.xpose.msra.mxu0 %v763
        %899 = vmatprep.subr.mxu0 %v768
        %900 = vmatpush1.xpose.msra.mxu0 %v767
        %901 = vmatprep.subr.mxu0 %v772
        %902 = vmatpush1.xpose.msra.mxu0 %v771
        %903 = vmatprep.subr.mxu0 %v776
        %904 = vmatpush1.xpose.msra.mxu0 %v775
        %905 = vmatprep.subr.mxu0 %v780
        %906 = vmatpush1.xpose.msra.mxu0 %v779
        %907 = vmatprep.subr.mxu0 %v784
        %908 = vmatpush1.xpose.msra.mxu0 %v783
        %909 = vmatprep.subr.mxu0 %v788
        %910 = vmatpush1.xpose.msra.mxu0 %v787
        %911 = vmatprep.subr.mxu0 %v792
        %912 = vmatpush1.xpose.msra.mxu0 %v791
        %913 = vmatprep.subr.mxu0 %v796
        %914 = vmatpush1.xpose.msra.mxu0 %v795
        %915 = vmatprep.subr.mxu0 %v800
        %916 = vmatpush1.xpose.msra.mxu0 %v799
        %917 = vmatprep.subr.mxu0 %v804
        %918 = vmatpush1.xpose.msra.mxu0 %v803
        %919 = vmatprep.subr.mxu0 %v808
        %920 = vmatpush1.xpose.msra.mxu0 %v807
        %921 = vmatprep.subr.mxu0 %v812
        %922 = vmatpush1.xpose.msra.mxu0 %v811
        %923 = vmatprep.subr.mxu0 %v816
        %924 = vmatpush1.xpose.msra.mxu0 %v815
        %925 = vmatprep.subr.mxu0 %v820
        %926 = vmatpush1.xpose.msra.mxu0 %v819
        %927 = vmatprep.subr.mxu0 %v824
        %928 = vmatpush1.xpose.msra.mxu0 %v823
        %929 = vmatprep.subr.mxu0 %v828
        %930 = vmatpush1.xpose.msra.mxu0 %v827
        %931 = vmatprep.subr.mxu0 %v832
        %932 = vmatpush1.xpose.msra.mxu0 %v831
        %933 = vmatprep.subr.mxu0 %v836
        %934 = vmatpush1.xpose.msra.mxu0 %v835
        %935 = vmatprep.subr.mxu0 %v840
        %936 = vmatpush1.xpose.msra.mxu0 %v839
        %937 = vmatprep.subr.mxu0 %v844
        %938 = vmatpush1.xpose.msra.mxu0 %v843
        %939 = vmatprep.subr.mxu0 %v848
        %940 = vmatpush1.xpose.msra.mxu0 %v847
        %941 = vmatprep.subr.mxu0 %v852
        %942 = vmatpush1.xpose.msra.mxu0 %v851
        %943 = vmatprep.subr.mxu0 %v856
        %944 = vmatpush1.xpose.msra.mxu0 %v855
        %945 = vmatprep.subr.mxu0 %v860
        %946 = vmatpush1.xpose.msra.mxu0 %v859
        %947 = vmatprep.subr.mxu0 %v864
        %948 = vmatpush1.xpose.msra.mxu0 %v863
        %949 = vmatprep.mubr.f32.mxu0 %v881
        %950 = vmatmul.mubr.f32.gmra.mrb[0].mxu0 %v733
        %v951 = vpop.f32.mrb[0].mxu0
        %v952 = vadd.f32 %v872, %v951
        %v953 = vpop.f32.mrb[0].mxu0
        %v954 = vadd.f32 %v876, %v953
        %955 = vdwg.mxu0
        %956 = vmatprep.subr.mxu0 %v742
        %957 = vmatpush1.xpose.msra.mxu0 %v741
        %958 = vmatprep.subr.mxu0 %v746
        %959 = vmatpush1.xpose.msra.mxu0 %v745
        %960 = vmatprep.subr.mxu0 %v750
        %961 = vmatpush1.xpose.msra.mxu0 %v749
        %962 = vmatprep.subr.mxu0 %v754
        %963 = vmatpush1.xpose.msra.mxu0 %v753
        %964 = vmatprep.subr.mxu0 %v758
        %965 = vmatpush1.xpose.msra.mxu0 %v757
        %966 = vmatprep.subr.mxu0 %v762
        %967 = vmatpush1.xpose.msra.mxu0 %v761
        %968 = vmatprep.subr.mxu0 %v766
        %969 = vmatpush1.xpose.msra.mxu0 %v765
        %970 = vmatprep.subr.mxu0 %v770
        %971 = vmatpush1.xpose.msra.mxu0 %v769
        %972 = vmatprep.subr.mxu0 %v774
        %973 = vmatpush1.xpose.msra.mxu0 %v773
        %974 = vmatprep.subr.mxu0 %v778
        %975 = vmatpush1.xpose.msra.mxu0 %v777
        %976 = vmatprep.subr.mxu0 %v782
        %977 = vmatpush1.xpose.msra.mxu0 %v781
        %978 = vmatprep.subr.mxu0 %v786
        %979 = vmatpush1.xpose.msra.mxu0 %v785
        %980 = vmatprep.subr.mxu0 %v790
        %981 = vmatpush1.xpose.msra.mxu0 %v789
        %982 = vmatprep.subr.mxu0 %v794
        %983 = vmatpush1.xpose.msra.mxu0 %v793
        %984 = vmatprep.subr.mxu0 %v798
        %985 = vmatpush1.xpose.msra.mxu0 %v797
        %986 = vmatprep.subr.mxu0 %v802
        %987 = vmatpush1.xpose.msra.mxu0 %v801
        %988 = vmatprep.subr.mxu0 %v806
        %989 = vmatpush1.xpose.msra.mxu0 %v805
        %990 = vmatprep.subr.mxu0 %v810
        %991 = vmatpush1.xpose.msra.mxu0 %v809
        %992 = vmatprep.subr.mxu0 %v814
        %993 = vmatpush1.xpose.msra.mxu0 %v813
        %994 = vmatprep.subr.mxu0 %v818
        %995 = vmatpush1.xpose.msra.mxu0 %v817
        %996 = vmatprep.subr.mxu0 %v822
        %997 = vmatpush1.xpose.msra.mxu0 %v821
        %998 = vmatprep.subr.mxu0 %v826
        %999 = vmatpush1.xpose.msra.mxu0 %v825
        %1000 = vmatprep.subr.mxu0 %v830
        %1001 = vmatpush1.xpose.msra.mxu0 %v829
        %1002 = vmatprep.subr.mxu0 %v834
        %1003 = vmatpush1.xpose.msra.mxu0 %v833
        %1004 = vmatprep.subr.mxu0 %v838
        %1005 = vmatpush1.xpose.msra.mxu0 %v837
        %1006 = vmatprep.subr.mxu0 %v842
        %1007 = vmatpush1.xpose.msra.mxu0 %v841
        %1008 = vmatprep.subr.mxu0 %v846
        %1009 = vmatpush1.xpose.msra.mxu0 %v845
        %1010 = vmatprep.subr.mxu0 %v850
        %1011 = vmatpush1.xpose.msra.mxu0 %v849
        %1012 = vmatprep.subr.mxu0 %v854
        %1013 = vmatpush1.xpose.msra.mxu0 %v853
        %1014 = vmatprep.subr.mxu0 %v858
        %1015 = vmatpush1.xpose.msra.mxu0 %v857
        %1016 = vmatprep.subr.mxu0 %v862
        %1017 = vmatpush1.xpose.msra.mxu0 %v861
        %1018 = vmatprep.subr.mxu0 %v866
        %1019 = vmatpush1.xpose.msra.mxu0 %v865
        %1020 = vmatprep.mubr.f32.mxu0 %v882
        %1021 = vmatmul.mubr.f32.gmra.mrb[0].mxu0 %v734
        %v1022 = vpop.f32.mrb[0].mxu0
        %v1023 = vadd.f32 %v952, %v1022
        %v1024 = vpop.f32.mrb[0].mxu0
        %v1025 = vadd.f32 %v954, %v1024
        %1026 = vdwg.mxu0
        %v1027 = vmax.f32 %v1023, 0.0
        %v1028 = vmax.f32 %v1025, 0.0
        %v1029 = vld [vmem:[%s623] sm:$0xff]
        %v1030 = vld [vmem:[%s623 + $0x8] sm:$0xff]
        %v1031 = vld [vmem:[%s623 + $0x10] sm:$0xff]
        %v1032 = vld [vmem:[%s623 + $0x18] sm:$0xff]
        %v1033 = vld [vmem:[%s623 + $0x20] sm:$0xff]
        %v1034 = vld [vmem:[%s623 + $0x28] sm:$0xff]
        %v1035 = vld [vmem:[%s623 + $0x30] sm:$0xff]
        %v1036 = vld [vmem:[%s623 + $0x38] sm:$0xff]
        %v1037 = vld [vmem:[%s623 + $0x40] sm:$0xff]
        %v1038 = vld [vmem:[%s623 + $0x48] sm:$0xff]
        %v1039 = vld [vmem:[%s623 + $0x50] sm:$0xff]
        %v1040 = vld [vmem:[%s623 + $0x58] sm:$0xff]
        %v1041 = vld [vmem:[%s623 + $0x60] sm:$0xff]
        %v1042 = vld [vmem:[%s623 + $0x68] sm:$0xff]
        %v1043 = vld [vmem:[%s623 + $0x70] sm:$0xff]
        %v1044 = vld [vmem:[%s623 + $0x78] sm:$0xff]
        %v1045 = vld [vmem:[%s623 + $0x80] sm:$0xff]
        %v1046 = vld [vmem:[%s623 + $0x88] sm:$0xff]
        %v1047 = vld [vmem:[%s623 + $0x90] sm:$0xff]
        %v1048 = vld [vmem:[%s623 + $0x98] sm:$0xff]
        %v1049 = vld [vmem:[%s623 + $0xa0] sm:$0xff]
        %v1050 = vld [vmem:[%s623 + $0xa8] sm:$0xff]
        %v1051 = vld [vmem:[%s623 + $0xb0] sm:$0xff]
        %v1052 = vld [vmem:[%s623 + $0xb8] sm:$0xff]
        %v1053 = vld [vmem:[%s623 + $0xc0] sm:$0xff]
        %v1054 = vld [vmem:[%s623 + $0xc8] sm:$0xff]
        %v1055 = vld [vmem:[%s623 + $0xd0] sm:$0xff]
        %v1056 = vld [vmem:[%s623 + $0xd8] sm:$0xff]
        %v1057 = vld [vmem:[%s623 + $0xe0] sm:$0xff]
        %v1058 = vld [vmem:[%s623 + $0xe8] sm:$0xff]
        %v1059 = vld [vmem:[%s623 + $0xf0] sm:$0xff]
        %v1060 = vld [vmem:[%s623 + $0xf8] sm:$0xff]
        %v1061 = vld [vmem:[%s623 + $0x100] sm:$0xff]
        %v1062 = vld [vmem:[%s623 + $0x108] sm:$0xff]
        %v1063 = vld [vmem:[%s623 + $0x110] sm:$0xff]
        %v1064 = vld [vmem:[%s623 + $0x118] sm:$0xff]
        %v1065 = vld [vmem:[%s623 + $0x120] sm:$0xff]
        %v1066 = vld [vmem:[%s623 + $0x128] sm:$0xff]
        %v1067 = vld [vmem:[%s623 + $0x130] sm:$0xff]
        %v1068 = vld [vmem:[%s623 + $0x138] sm:$0xff]
        %v1069 = vld [vmem:[%s623 + $0x140] sm:$0xff]
        %v1070 = vld [vmem:[%s623 + $0x148] sm:$0xff]
        %v1071 = vld [vmem:[%s623 + $0x150] sm:$0xff]
        %v1072 = vld [vmem:[%s623 + $0x158] sm:$0xff]
        %v1073 = vld [vmem:[%s623 + $0x160] sm:$0xff]
        %v1074 = vld [vmem:[%s623 + $0x168] sm:$0xff]
        %v1075 = vld [vmem:[%s623 + $0x170] sm:$0xff]
        %v1076 = vld [vmem:[%s623 + $0x178] sm:$0xff]
        %v1077 = vld [vmem:[%s623 + $0x180] sm:$0xff]
        %v1078 = vld [vmem:[%s623 + $0x188] sm:$0xff]
        %v1079 = vld [vmem:[%s623 + $0x190] sm:$0xff]
        %v1080 = vld [vmem:[%s623 + $0x198] sm:$0xff]
        %v1081 = vld [vmem:[%s623 + $0x1a0] sm:$0xff]
        %v1082 = vld [vmem:[%s623 + $0x1a8] sm:$0xff]
        %v1083 = vld [vmem:[%s623 + $0x1b0] sm:$0xff]
        %v1084 = vld [vmem:[%s623 + $0x1b8] sm:$0xff]
        %v1085 = vld [vmem:[%s623 + $0x1c0] sm:$0xff]
        %v1086 = vld [vmem:[%s623 + $0x1c8] sm:$0xff]
        %v1087 = vld [vmem:[%s623 + $0x1d0] sm:$0xff]
        %v1088 = vld [vmem:[%s623 + $0x1d8] sm:$0xff]
        %v1089 = vld [vmem:[%s623 + $0x1e0] sm:$0xff]
        %v1090 = vld [vmem:[%s623 + $0x1e8] sm:$0xff]
        %v1091 = vld [vmem:[%s623 + $0x1f0] sm:$0xff]
        %v1092 = vld [vmem:[%s623 + $0x1f8] sm:$0xff]
        %v1093 = vld [vmem:[%s623 + $0x200] sm:$0xff]
        %v1094 = vld [vmem:[%s623 + $0x208] sm:$0xff]
        %v1095 = vld [vmem:[%s623 + $0x210] sm:$0xff]
        %v1096 = vld [vmem:[%s623 + $0x218] sm:$0xff]
        %v1097 = vld [vmem:[%s623 + $0x220] sm:$0xff]
        %v1098 = vld [vmem:[%s623 + $0x228] sm:$0xff]
        %v1099 = vld [vmem:[%s623 + $0x230] sm:$0xff]
        %v1100 = vld [vmem:[%s623 + $0x238] sm:$0xff]
        %v1101 = vld [vmem:[%s623 + $0x240] sm:$0xff]
        %v1102 = vld [vmem:[%s623 + $0x248] sm:$0xff]
        %v1103 = vld [vmem:[%s623 + $0x250] sm:$0xff]
        %v1104 = vld [vmem:[%s623 + $0x258] sm:$0xff]
        %v1105 = vld [vmem:[%s623 + $0x260] sm:$0xff]
        %v1106 = vld [vmem:[%s623 + $0x268] sm:$0xff]
        %v1107 = vld [vmem:[%s623 + $0x270] sm:$0xff]
        %v1108 = vld [vmem:[%s623 + $0x278] sm:$0xff]
        %v1109 = vld [vmem:[%s623 + $0x280] sm:$0xff]
        %v1110 = vld [vmem:[%s623 + $0x288] sm:$0xff]
        %v1111 = vld [vmem:[%s623 + $0x290] sm:$0xff]
        %v1112 = vld [vmem:[%s623 + $0x298] sm:$0xff]
        %v1113 = vld [vmem:[%s623 + $0x2a0] sm:$0xff]
        %v1114 = vld [vmem:[%s623 + $0x2a8] sm:$0xff]
        %v1115 = vld [vmem:[%s623 + $0x2b0] sm:$0xff]
        %v1116 = vld [vmem:[%s623 + $0x2b8] sm:$0xff]
        %v1117 = vld [vmem:[%s623 + $0x2c0] sm:$0xff]
        %v1118 = vld [vmem:[%s623 + $0x2c8] sm:$0xff]
        %v1119 = vld [vmem:[%s623 + $0x2d0] sm:$0xff]
        %v1120 = vld [vmem:[%s623 + $0x2d8] sm:$0xff]
        %v1121 = vld [vmem:[%s623 + $0x2e0] sm:$0xff]
        %v1122 = vld [vmem:[%s623 + $0x2e8] sm:$0xff]
        %v1123 = vld [vmem:[%s623 + $0x2f0] sm:$0xff]
        %v1124 = vld [vmem:[%s623 + $0x2f8] sm:$0xff]
        %v1125 = vld [vmem:[%s623 + $0x300] sm:$0xff]
        %v1126 = vld [vmem:[%s623 + $0x308] sm:$0xff]
        %v1127 = vld [vmem:[%s623 + $0x310] sm:$0xff]
        %v1128 = vld [vmem:[%s623 + $0x318] sm:$0xff]
        %v1129 = vld [vmem:[%s623 + $0x320] sm:$0xff]
        %v1130 = vld [vmem:[%s623 + $0x328] sm:$0xff]
        %v1131 = vld [vmem:[%s623 + $0x330] sm:$0xff]
        %v1132 = vld [vmem:[%s623 + $0x338] sm:$0xff]
        %v1133 = vld [vmem:[%s623 + $0x340] sm:$0xff]
        %v1134 = vld [vmem:[%s623 + $0x348] sm:$0xff]
        %v1135 = vld [vmem:[%s623 + $0x350] sm:$0xff]
        %v1136 = vld [vmem:[%s623 + $0x358] sm:$0xff]
        %v1137 = vld [vmem:[%s623 + $0x360] sm:$0xff]
        %v1138 = vld [vmem:[%s623 + $0x368] sm:$0xff]
        %v1139 = vld [vmem:[%s623 + $0x370] sm:$0xff]
        %v1140 = vld [vmem:[%s623 + $0x378] sm:$0xff]
        %v1141 = vld [vmem:[%s623 + $0x380] sm:$0xff]
        %v1142 = vld [vmem:[%s623 + $0x388] sm:$0xff]
        %v1143 = vld [vmem:[%s623 + $0x390] sm:$0xff]
        %v1144 = vld [vmem:[%s623 + $0x398] sm:$0xff]
        %v1145 = vld [vmem:[%s623 + $0x3a0] sm:$0xff]
        %v1146 = vld [vmem:[%s623 + $0x3a8] sm:$0xff]
        %v1147 = vld [vmem:[%s623 + $0x3b0] sm:$0xff]
        %v1148 = vld [vmem:[%s623 + $0x3b8] sm:$0xff]
        %v1149 = vld [vmem:[%s623 + $0x3c0] sm:$0xff]
        %v1150 = vld [vmem:[%s623 + $0x3c8] sm:$0xff]
        %v1151 = vld [vmem:[%s623 + $0x3d0] sm:$0xff]
        %v1152 = vld [vmem:[%s623 + $0x3d8] sm:$0xff]
        %v1153 = vld [vmem:[%s623 + $0x3e0] sm:$0xff]
        %v1154 = vld [vmem:[%s623 + $0x3e8] sm:$0xff]
        %v1155 = vld [vmem:[%s623 + $0x3f0] sm:$0xff]
        %v1156 = vld [vmem:[%s623 + $0x3f8] sm:$0xff]
        %v1157 = vld [vmem:[%s632] ss:$4 sm:$0x3]
        %v1159 = vlaneseq
        %v1160 = vshrl.u32 %v1159, 7
        %v1161 = vsub.s32 0, %v1160
        %v1162 = vrot.slane %v1157, %v1161
        %v1163 = vlaneseq
        %v1164 = vshrl.u32 %v1163, 7
        %v1165 = vsub.s32 1, %v1164
        %v1166 = vrot.slane %v1157, %v1165
        %v1171 = vcombine.high %v735, %v735
        %v1172 = vcombine.high %v736, %v736
        %1175 = vmatprep.subr.mxu0 %v1030
        %1176 = vmatpush1.xpose.msra.mxu0 %v1029
        %1177 = vmatprep.subr.mxu0 %v1034
        %1178 = vmatpush1.xpose.msra.mxu0 %v1033
        %1179 = vmatprep.subr.mxu0 %v1038
        %1180 = vmatpush1.xpose.msra.mxu0 %v1037
        %1181 = vmatprep.subr.mxu0 %v1042
        %1182 = vmatpush1.xpose.msra.mxu0 %v1041
        %1183 = vmatprep.subr.mxu0 %v1046
        %1184 = vmatpush1.xpose.msra.mxu0 %v1045
        %1185 = vmatprep.subr.mxu0 %v1050
        %1186 = vmatpush1.xpose.msra.mxu0 %v1049
        %1187 = vmatprep.subr.mxu0 %v1054
        %1188 = vmatpush1.xpose.msra.mxu0 %v1053
        %1189 = vmatprep.subr.mxu0 %v1058
        %1190 = vmatpush1.xpose.msra.mxu0 %v1057
        %1191 = vmatprep.subr.mxu0 %v1062
        %1192 = vmatpush1.xpose.msra.mxu0 %v1061
        %1193 = vmatprep.subr.mxu0 %v1066
        %1194 = vmatpush1.xpose.msra.mxu0 %v1065
        %1195 = vmatprep.subr.mxu0 %v1070
        %1196 = vmatpush1.xpose.msra.mxu0 %v1069
        %1197 = vmatprep.subr.mxu0 %v1074
        %1198 = vmatpush1.xpose.msra.mxu0 %v1073
        %1199 = vmatprep.subr.mxu0 %v1078
        %1200 = vmatpush1.xpose.msra.mxu0 %v1077
        %1201 = vmatprep.subr.mxu0 %v1082
        %1202 = vmatpush1.xpose.msra.mxu0 %v1081
        %1203 = vmatprep.subr.mxu0 %v1086
        %1204 = vmatpush1.xpose.msra.mxu0 %v1085
        %1205 = vmatprep.subr.mxu0 %v1090
        %1206 = vmatpush1.xpose.msra.mxu0 %v1089
        %1207 = vmatprep.subr.mxu0 %v1094
        %1208 = vmatpush1.xpose.msra.mxu0 %v1093
        %1209 = vmatprep.subr.mxu0 %v1098
        %1210 = vmatpush1.xpose.msra.mxu0 %v1097
        %1211 = vmatprep.subr.mxu0 %v1102
        %1212 = vmatpush1.xpose.msra.mxu0 %v1101
        %1213 = vmatprep.subr.mxu0 %v1106
        %1214 = vmatpush1.xpose.msra.mxu0 %v1105
        %1215 = vmatprep.subr.mxu0 %v1110
        %1216 = vmatpush1.xpose.msra.mxu0 %v1109
        %1217 = vmatprep.subr.mxu0 %v1114
        %1218 = vmatpush1.xpose.msra.mxu0 %v1113
        %1219 = vmatprep.subr.mxu0 %v1118
        %1220 = vmatpush1.xpose.msra.mxu0 %v1117
        %1221 = vmatprep.subr.mxu0 %v1122
        %1222 = vmatpush1.xpose.msra.mxu0 %v1121
        %1223 = vmatprep.subr.mxu0 %v1126
        %1224 = vmatpush1.xpose.msra.mxu0 %v1125
        %1225 = vmatprep.subr.mxu0 %v1130
        %1226 = vmatpush1.xpose.msra.mxu0 %v1129
        %1227 = vmatprep.subr.mxu0 %v1134
        %1228 = vmatpush1.xpose.msra.mxu0 %v1133
        %1229 = vmatprep.subr.mxu0 %v1138
        %1230 = vmatpush1.xpose.msra.mxu0 %v1137
        %1231 = vmatprep.subr.mxu0 %v1142
        %1232 = vmatpush1.xpose.msra.mxu0 %v1141
        %1233 = vmatprep.subr.mxu0 %v1146
        %1234 = vmatpush1.xpose.msra.mxu0 %v1145
        %1235 = vmatprep.subr.mxu0 %v1150
        %1236 = vmatpush1.xpose.msra.mxu0 %v1149
        %1237 = vmatprep.subr.mxu0 %v1154
        %1238 = vmatpush1.xpose.msra.mxu0 %v1153
        %1239 = vmatprep.mubr.f32.mxu0 %v1171
        %1240 = vmatmul.mubr.f32.gmra.mrb[0].mxu0 %v735
        %v1241 = vpop.f32.mrb[0].mxu0
        %v1242 = vadd.f32 %v1162, %v1241
        %v1243 = vpop.f32.mrb[0].mxu0
        %v1244 = vadd.f32 %v1166, %v1243
        %1245 = vdwg.mxu0
        %1246 = vmatprep.subr.mxu0 %v1032
        %1247 = vmatpush1.xpose.msra.mxu0 %v1031
        %1248 = vmatprep.subr.mxu0 %v1036
        %1249 = vmatpush1.xpose.msra.mxu0 %v1035
        %1250 = vmatprep.subr.mxu0 %v1040
        %1251 = vmatpush1.xpose.msra.mxu0 %v1039
        %1252 = vmatprep.subr.mxu0 %v1044
        %1253 = vmatpush1.xpose.msra.mxu0 %v1043
        %1254 = vmatprep.subr.mxu0 %v1048
        %1255 = vmatpush1.xpose.msra.mxu0 %v1047
        %1256 = vmatprep.subr.mxu0 %v1052
        %1257 = vmatpush1.xpose.msra.mxu0 %v1051
        %1258 = vmatprep.subr.mxu0 %v1056
        %1259 = vmatpush1.xpose.msra.mxu0 %v1055
        %1260 = vmatprep.subr.mxu0 %v1060
        %1261 = vmatpush1.xpose.msra.mxu0 %v1059
        %1262 = vmatprep.subr.mxu0 %v1064
        %1263 = vmatpush1.xpose.msra.mxu0 %v1063
        %1264 = vmatprep.subr.mxu0 %v1068
        %1265 = vmatpush1.xpose.msra.mxu0 %v1067
        %1266 = vmatprep.subr.mxu0 %v1072
        %1267 = vmatpush1.xpose.msra.mxu0 %v1071
        %1268 = vmatprep.subr.mxu0 %v1076
        %1269 = vmatpush1.xpose.msra.mxu0 %v1075
        %1270 = vmatprep.subr.mxu0 %v1080
        %1271 = vmatpush1.xpose.msra.mxu0 %v1079
        %1272 = vmatprep.subr.mxu0 %v1084
        %1273 = vmatpush1.xpose.msra.mxu0 %v1083
        %1274 = vmatprep.subr.mxu0 %v1088
        %1275 = vmatpush1.xpose.msra.mxu0 %v1087
        %1276 = vmatprep.subr.mxu0 %v1092
        %1277 = vmatpush1.xpose.msra.mxu0 %v1091
        %1278 = vmatprep.subr.mxu0 %v1096
        %1279 = vmatpush1.xpose.msra.mxu0 %v1095
        %1280 = vmatprep.subr.mxu0 %v1100
        %1281 = vmatpush1.xpose.msra.mxu0 %v1099
        %1282 = vmatprep.subr.mxu0 %v1104
        %1283 = vmatpush1.xpose.msra.mxu0 %v1103
        %1284 = vmatprep.subr.mxu0 %v1108
        %1285 = vmatpush1.xpose.msra.mxu0 %v1107
        %1286 = vmatprep.subr.mxu0 %v1112
        %1287 = vmatpush1.xpose.msra.mxu0 %v1111
        %1288 = vmatprep.subr.mxu0 %v1116
        %1289 = vmatpush1.xpose.msra.mxu0 %v1115
        %1290 = vmatprep.subr.mxu0 %v1120
        %1291 = vmatpush1.xpose.msra.mxu0 %v1119
        %1292 = vmatprep.subr.mxu0 %v1124
        %1293 = vmatpush1.xpose.msra.mxu0 %v1123
        %1294 = vmatprep.subr.mxu0 %v1128
        %1295 = vmatpush1.xpose.msra.mxu0 %v1127
        %1296 = vmatprep.subr.mxu0 %v1132
        %1297 = vmatpush1.xpose.msra.mxu0 %v1131
        %1298 = vmatprep.subr.mxu0 %v1136
        %1299 = vmatpush1.xpose.msra.mxu0 %v1135
        %1300 = vmatprep.subr.mxu0 %v1140
        %1301 = vmatpush1.xpose.msra.mxu0 %v1139
        %1302 = vmatprep.subr.mxu0 %v1144
        %1303 = vmatpush1.xpose.msra.mxu0 %v1143
        %1304 = vmatprep.subr.mxu0 %v1148
        %1305 = vmatpush1.xpose.msra.mxu0 %v1147
        %1306 = vmatprep.subr.mxu0 %v1152
        %1307 = vmatpush1.xpose.msra.mxu0 %v1151
        %1308 = vmatprep.subr.mxu0 %v1156
        %1309 = vmatpush1.xpose.msra.mxu0 %v1155
        %1310 = vmatprep.mubr.f32.mxu0 %v1172
        %1311 = vmatmul.mubr.f32.gmra.mrb[0].mxu0 %v736
        %v1312 = vpop.f32.mrb[0].mxu0
        %v1313 = vadd.f32 %v1242, %v1312
        %v1314 = vpop.f32.mrb[0].mxu0
        %v1315 = vadd.f32 %v1244, %v1314
        %1316 = vdwg.mxu0
        %v1317 = vmax.f32 %v1313, 0.0
        %v1318 = vmax.f32 %v1315, 0.0
        %v1319 = vld [vmem:[%s641] sm:$0xff]
        %v1320 = vld [vmem:[%s641 + $0x8] sm:$0xff]
        %v1321 = vld [vmem:[%s641 + $0x10] sm:$0xff]
        %v1322 = vld [vmem:[%s641 + $0x18] sm:$0xff]
        %v1323 = vld [vmem:[%s641 + $0x20] sm:$0xff]
        %v1324 = vld [vmem:[%s641 + $0x28] sm:$0xff]
        %v1325 = vld [vmem:[%s641 + $0x30] sm:$0xff]
        %v1326 = vld [vmem:[%s641 + $0x38] sm:$0xff]
        %v1327 = vld [vmem:[%s641 + $0x40] sm:$0xff]
        %v1328 = vld [vmem:[%s641 + $0x48] sm:$0xff]
        %v1329 = vld [vmem:[%s641 + $0x50] sm:$0xff]
        %v1330 = vld [vmem:[%s641 + $0x58] sm:$0xff]
        %v1331 = vld [vmem:[%s641 + $0x60] sm:$0xff]
        %v1332 = vld [vmem:[%s641 + $0x68] sm:$0xff]
        %v1333 = vld [vmem:[%s641 + $0x70] sm:$0xff]
        %v1334 = vld [vmem:[%s641 + $0x78] sm:$0xff]
        %v1335 = vld [vmem:[%s641 + $0x80] sm:$0xff]
        %v1336 = vld [vmem:[%s641 + $0x88] sm:$0xff]
        %v1337 = vld [vmem:[%s641 + $0x90] sm:$0xff]
        %v1338 = vld [vmem:[%s641 + $0x98] sm:$0xff]
        %v1339 = vld [vmem:[%s641 + $0xa0] sm:$0xff]
        %v1340 = vld [vmem:[%s641 + $0xa8] sm:$0xff]
        %v1341 = vld [vmem:[%s641 + $0xb0] sm:$0xff]
        %v1342 = vld [vmem:[%s641 + $0xb8] sm:$0xff]
        %v1343 = vld [vmem:[%s641 + $0xc0] sm:$0xff]
        %v1344 = vld [vmem:[%s641 + $0xc8] sm:$0xff]
        %v1345 = vld [vmem:[%s641 + $0xd0] sm:$0xff]
        %v1346 = vld [vmem:[%s641 + $0xd8] sm:$0xff]
        %v1347 = vld [vmem:[%s641 + $0xe0] sm:$0xff]
        %v1348 = vld [vmem:[%s641 + $0xe8] sm:$0xff]
        %v1349 = vld [vmem:[%s641 + $0xf0] sm:$0xff]
        %v1350 = vld [vmem:[%s641 + $0xf8] sm:$0xff]
        %v1351 = vld [vmem:[%s641 + $0x100] sm:$0xff]
        %v1352 = vld [vmem:[%s641 + $0x108] sm:$0xff]
        %v1353 = vld [vmem:[%s641 + $0x110] sm:$0xff]
        %v1354 = vld [vmem:[%s641 + $0x118] sm:$0xff]
        %v1355 = vld [vmem:[%s641 + $0x120] sm:$0xff]
        %v1356 = vld [vmem:[%s641 + $0x128] sm:$0xff]
        %v1357 = vld [vmem:[%s641 + $0x130] sm:$0xff]
        %v1358 = vld [vmem:[%s641 + $0x138] sm:$0xff]
        %v1359 = vld [vmem:[%s641 + $0x140] sm:$0xff]
        %v1360 = vld [vmem:[%s641 + $0x148] sm:$0xff]
        %v1361 = vld [vmem:[%s641 + $0x150] sm:$0xff]
        %v1362 = vld [vmem:[%s641 + $0x158] sm:$0xff]
        %v1363 = vld [vmem:[%s641 + $0x160] sm:$0xff]
        %v1364 = vld [vmem:[%s641 + $0x168] sm:$0xff]
        %v1365 = vld [vmem:[%s641 + $0x170] sm:$0xff]
        %v1366 = vld [vmem:[%s641 + $0x178] sm:$0xff]
        %v1367 = vld [vmem:[%s641 + $0x180] sm:$0xff]
        %v1368 = vld [vmem:[%s641 + $0x188] sm:$0xff]
        %v1369 = vld [vmem:[%s641 + $0x190] sm:$0xff]
        %v1370 = vld [vmem:[%s641 + $0x198] sm:$0xff]
        %v1371 = vld [vmem:[%s641 + $0x1a0] sm:$0xff]
        %v1372 = vld [vmem:[%s641 + $0x1a8] sm:$0xff]
        %v1373 = vld [vmem:[%s641 + $0x1b0] sm:$0xff]
        %v1374 = vld [vmem:[%s641 + $0x1b8] sm:$0xff]
        %v1375 = vld [vmem:[%s641 + $0x1c0] sm:$0xff]
        %v1376 = vld [vmem:[%s641 + $0x1c8] sm:$0xff]
        %v1377 = vld [vmem:[%s641 + $0x1d0] sm:$0xff]
        %v1378 = vld [vmem:[%s641 + $0x1d8] sm:$0xff]
        %v1379 = vld [vmem:[%s641 + $0x1e0] sm:$0xff]
        %v1380 = vld [vmem:[%s641 + $0x1e8] sm:$0xff]
        %v1381 = vld [vmem:[%s641 + $0x1f0] sm:$0xff]
        %v1382 = vld [vmem:[%s641 + $0x1f8] sm:$0xff]
        %v1383 = vld [vmem:[%s641 + $0x200] sm:$0xff]
        %v1384 = vld [vmem:[%s641 + $0x208] sm:$0xff]
        %v1385 = vld [vmem:[%s641 + $0x210] sm:$0xff]
        %v1386 = vld [vmem:[%s641 + $0x218] sm:$0xff]
        %v1387 = vld [vmem:[%s641 + $0x220] sm:$0xff]
        %v1388 = vld [vmem:[%s641 + $0x228] sm:$0xff]
        %v1389 = vld [vmem:[%s641 + $0x230] sm:$0xff]
        %v1390 = vld [vmem:[%s641 + $0x238] sm:$0xff]
        %v1391 = vld [vmem:[%s641 + $0x240] sm:$0xff]
        %v1392 = vld [vmem:[%s641 + $0x248] sm:$0xff]
        %v1393 = vld [vmem:[%s641 + $0x250] sm:$0xff]
        %v1394 = vld [vmem:[%s641 + $0x258] sm:$0xff]
        %v1395 = vld [vmem:[%s641 + $0x260] sm:$0xff]
        %v1396 = vld [vmem:[%s641 + $0x268] sm:$0xff]
        %v1397 = vld [vmem:[%s641 + $0x270] sm:$0xff]
        %v1398 = vld [vmem:[%s641 + $0x278] sm:$0xff]
        %v1399 = vld [vmem:[%s641 + $0x280] sm:$0xff]
        %v1400 = vld [vmem:[%s641 + $0x288] sm:$0xff]
        %v1401 = vld [vmem:[%s641 + $0x290] sm:$0xff]
        %v1402 = vld [vmem:[%s641 + $0x298] sm:$0xff]
        %v1403 = vld [vmem:[%s641 + $0x2a0] sm:$0xff]
        %v1404 = vld [vmem:[%s641 + $0x2a8] sm:$0xff]
        %v1405 = vld [vmem:[%s641 + $0x2b0] sm:$0xff]
        %v1406 = vld [vmem:[%s641 + $0x2b8] sm:$0xff]
        %v1407 = vld [vmem:[%s641 + $0x2c0] sm:$0xff]
        %v1408 = vld [vmem:[%s641 + $0x2c8] sm:$0xff]
        %v1409 = vld [vmem:[%s641 + $0x2d0] sm:$0xff]
        %v1410 = vld [vmem:[%s641 + $0x2d8] sm:$0xff]
        %v1411 = vld [vmem:[%s641 + $0x2e0] sm:$0xff]
        %v1412 = vld [vmem:[%s641 + $0x2e8] sm:$0xff]
        %v1413 = vld [vmem:[%s641 + $0x2f0] sm:$0xff]
        %v1414 = vld [vmem:[%s641 + $0x2f8] sm:$0xff]
        %v1415 = vld [vmem:[%s641 + $0x300] sm:$0xff]
        %v1416 = vld [vmem:[%s641 + $0x308] sm:$0xff]
        %v1417 = vld [vmem:[%s641 + $0x310] sm:$0xff]
        %v1418 = vld [vmem:[%s641 + $0x318] sm:$0xff]
        %v1419 = vld [vmem:[%s641 + $0x320] sm:$0xff]
        %v1420 = vld [vmem:[%s641 + $0x328] sm:$0xff]
        %v1421 = vld [vmem:[%s641 + $0x330] sm:$0xff]
        %v1422 = vld [vmem:[%s641 + $0x338] sm:$0xff]
        %v1423 = vld [vmem:[%s641 + $0x340] sm:$0xff]
        %v1424 = vld [vmem:[%s641 + $0x348] sm:$0xff]
        %v1425 = vld [vmem:[%s641 + $0x350] sm:$0xff]
        %v1426 = vld [vmem:[%s641 + $0x358] sm:$0xff]
        %v1427 = vld [vmem:[%s641 + $0x360] sm:$0xff]
        %v1428 = vld [vmem:[%s641 + $0x368] sm:$0xff]
        %v1429 = vld [vmem:[%s641 + $0x370] sm:$0xff]
        %v1430 = vld [vmem:[%s641 + $0x378] sm:$0xff]
        %v1431 = vld [vmem:[%s641 + $0x380] sm:$0xff]
        %v1432 = vld [vmem:[%s641 + $0x388] sm:$0xff]
        %v1433 = vld [vmem:[%s641 + $0x390] sm:$0xff]
        %v1434 = vld [vmem:[%s641 + $0x398] sm:$0xff]
        %v1435 = vld [vmem:[%s641 + $0x3a0] sm:$0xff]
        %v1436 = vld [vmem:[%s641 + $0x3a8] sm:$0xff]
        %v1437 = vld [vmem:[%s641 + $0x3b0] sm:$0xff]
        %v1438 = vld [vmem:[%s641 + $0x3b8] sm:$0xff]
        %v1439 = vld [vmem:[%s641 + $0x3c0] sm:$0xff]
        %v1440 = vld [vmem:[%s641 + $0x3c8] sm:$0xff]
        %v1441 = vld [vmem:[%s641 + $0x3d0] sm:$0xff]
        %v1442 = vld [vmem:[%s641 + $0x3d8] sm:$0xff]
        %v1443 = vld [vmem:[%s641 + $0x3e0] sm:$0xff]
        %v1444 = vld [vmem:[%s641 + $0x3e8] sm:$0xff]
        %v1445 = vld [vmem:[%s641 + $0x3f0] sm:$0xff]
        %v1446 = vld [vmem:[%s641 + $0x3f8] sm:$0xff]
        %v1447 = vld [vmem:[%s650] ss:$4 sm:$0x3]
        %v1449 = vlaneseq
        %v1450 = vshrl.u32 %v1449, 7
        %v1451 = vsub.s32 0, %v1450
        %v1452 = vrot.slane %v1447, %v1451
        %v1453 = vlaneseq
        %v1454 = vshrl.u32 %v1453, 7
        %v1455 = vsub.s32 1, %v1454
        %v1456 = vrot.slane %v1447, %v1455
        %v1461 = vcombine.high %v737, %v737
        %v1462 = vcombine.high %v738, %v738
        %1465 = vmatprep.subr.mxu0 %v1320
        %1466 = vmatpush1.xpose.msra.mxu0 %v1319
        %1467 = vmatprep.subr.mxu0 %v1324
        %1468 = vmatpush1.xpose.msra.mxu0 %v1323
        %1469 = vmatprep.subr.mxu0 %v1328
        %1470 = vmatpush1.xpose.msra.mxu0 %v1327
        %1471 = vmatprep.subr.mxu0 %v1332
        %1472 = vmatpush1.xpose.msra.mxu0 %v1331
        %1473 = vmatprep.subr.mxu0 %v1336
        %1474 = vmatpush1.xpose.msra.mxu0 %v1335
        %1475 = vmatprep.subr.mxu0 %v1340
        %1476 = vmatpush1.xpose.msra.mxu0 %v1339
        %1477 = vmatprep.subr.mxu0 %v1344
        %1478 = vmatpush1.xpose.msra.mxu0 %v1343
        %1479 = vmatprep.subr.mxu0 %v1348
        %1480 = vmatpush1.xpose.msra.mxu0 %v1347
        %1481 = vmatprep.subr.mxu0 %v1352
        %1482 = vmatpush1.xpose.msra.mxu0 %v1351
        %1483 = vmatprep.subr.mxu0 %v1356
        %1484 = vmatpush1.xpose.msra.mxu0 %v1355
        %1485 = vmatprep.subr.mxu0 %v1360
        %1486 = vmatpush1.xpose.msra.mxu0 %v1359
        %1487 = vmatprep.subr.mxu0 %v1364
        %1488 = vmatpush1.xpose.msra.mxu0 %v1363
        %1489 = vmatprep.subr.mxu0 %v1368
        %1490 = vmatpush1.xpose.msra.mxu0 %v1367
        %1491 = vmatprep.subr.mxu0 %v1372
        %1492 = vmatpush1.xpose.msra.mxu0 %v1371
        %1493 = vmatprep.subr.mxu0 %v1376
        %1494 = vmatpush1.xpose.msra.mxu0 %v1375
        %1495 = vmatprep.subr.mxu0 %v1380
        %1496 = vmatpush1.xpose.msra.mxu0 %v1379
        %1497 = vmatprep.subr.mxu0 %v1384
        %1498 = vmatpush1.xpose.msra.mxu0 %v1383
        %1499 = vmatprep.subr.mxu0 %v1388
        %1500 = vmatpush1.xpose.msra.mxu0 %v1387
        %1501 = vmatprep.subr.mxu0 %v1392
        %1502 = vmatpush1.xpose.msra.mxu0 %v1391
        %1503 = vmatprep.subr.mxu0 %v1396
        %1504 = vmatpush1.xpose.msra.mxu0 %v1395
        %1505 = vmatprep.subr.mxu0 %v1400
        %1506 = vmatpush1.xpose.msra.mxu0 %v1399
        %1507 = vmatprep.subr.mxu0 %v1404
        %1508 = vmatpush1.xpose.msra.mxu0 %v1403
        %1509 = vmatprep.subr.mxu0 %v1408
        %1510 = vmatpush1.xpose.msra.mxu0 %v1407
        %1511 = vmatprep.subr.mxu0 %v1412
        %1512 = vmatpush1.xpose.msra.mxu0 %v1411
        %1513 = vmatprep.subr.mxu0 %v1416
        %1514 = vmatpush1.xpose.msra.mxu0 %v1415
        %1515 = vmatprep.subr.mxu0 %v1420
        %1516 = vmatpush1.xpose.msra.mxu0 %v1419
        %1517 = vmatprep.subr.mxu0 %v1424
        %1518 = vmatpush1.xpose.msra.mxu0 %v1423
        %1519 = vmatprep.subr.mxu0 %v1428
        %1520 = vmatpush1.xpose.msra.mxu0 %v1427
        %1521 = vmatprep.subr.mxu0 %v1432
        %1522 = vmatpush1.xpose.msra.mxu0 %v1431
        %1523 = vmatprep.subr.mxu0 %v1436
        %1524 = vmatpush1.xpose.msra.mxu0 %v1435
        %1525 = vmatprep.subr.mxu0 %v1440
        %1526 = vmatpush1.xpose.msra.mxu0 %v1439
        %1527 = vmatprep.subr.mxu0 %v1444
        %1528 = vmatpush1.xpose.msra.mxu0 %v1443
        %1529 = vmatprep.mubr.f32.mxu0 %v1461
        %1530 = vmatmul.mubr.f32.gmra.mrb[0].mxu0 %v737
        %v1531 = vpop.f32.mrb[0].mxu0
        %v1532 = vadd.f32 %v1452, %v1531
        %v1533 = vpop.f32.mrb[0].mxu0
        %v1534 = vadd.f32 %v1456, %v1533
        %1535 = vdwg.mxu0
        %1536 = vmatprep.subr.mxu0 %v1322
        %1537 = vmatpush1.xpose.msra.mxu0 %v1321
        %1538 = vmatprep.subr.mxu0 %v1326
        %1539 = vmatpush1.xpose.msra.mxu0 %v1325
        %1540 = vmatprep.subr.mxu0 %v1330
        %1541 = vmatpush1.xpose.msra.mxu0 %v1329
        %1542 = vmatprep.subr.mxu0 %v1334
        %1543 = vmatpush1.xpose.msra.mxu0 %v1333
        %1544 = vmatprep.subr.mxu0 %v1338
        %1545 = vmatpush1.xpose.msra.mxu0 %v1337
        %1546 = vmatprep.subr.mxu0 %v1342
        %1547 = vmatpush1.xpose.msra.mxu0 %v1341
        %1548 = vmatprep.subr.mxu0 %v1346
        %1549 = vmatpush1.xpose.msra.mxu0 %v1345
        %1550 = vmatprep.subr.mxu0 %v1350
        %1551 = vmatpush1.xpose.msra.mxu0 %v1349
        %1552 = vmatprep.subr.mxu0 %v1354
        %1553 = vmatpush1.xpose.msra.mxu0 %v1353
        %1554 = vmatprep.subr.mxu0 %v1358
        %1555 = vmatpush1.xpose.msra.mxu0 %v1357
        %1556 = vmatprep.subr.mxu0 %v1362
        %1557 = vmatpush1.xpose.msra.mxu0 %v1361
        %1558 = vmatprep.subr.mxu0 %v1366
        %1559 = vmatpush1.xpose.msra.mxu0 %v1365
        %1560 = vmatprep.subr.mxu0 %v1370
        %1561 = vmatpush1.xpose.msra.mxu0 %v1369
        %1562 = vmatprep.subr.mxu0 %v1374
        %1563 = vmatpush1.xpose.msra.mxu0 %v1373
        %1564 = vmatprep.subr.mxu0 %v1378
        %1565 = vmatpush1.xpose.msra.mxu0 %v1377
        %1566 = vmatprep.subr.mxu0 %v1382
        %1567 = vmatpush1.xpose.msra.mxu0 %v1381
        %1568 = vmatprep.subr.mxu0 %v1386
        %1569 = vmatpush1.xpose.msra.mxu0 %v1385
        %1570 = vmatprep.subr.mxu0 %v1390
        %1571 = vmatpush1.xpose.msra.mxu0 %v1389
        %1572 = vmatprep.subr.mxu0 %v1394
        %1573 = vmatpush1.xpose.msra.mxu0 %v1393
        %1574 = vmatprep.subr.mxu0 %v1398
        %1575 = vmatpush1.xpose.msra.mxu0 %v1397
        %1576 = vmatprep.subr.mxu0 %v1402
        %1577 = vmatpush1.xpose.msra.mxu0 %v1401
        %1578 = vmatprep.subr.mxu0 %v1406
        %1579 = vmatpush1.xpose.msra.mxu0 %v1405
        %1580 = vmatprep.subr.mxu0 %v1410
        %1581 = vmatpush1.xpose.msra.mxu0 %v1409
        %1582 = vmatprep.subr.mxu0 %v1414
        %1583 = vmatpush1.xpose.msra.mxu0 %v1413
        %1584 = vmatprep.subr.mxu0 %v1418
        %1585 = vmatpush1.xpose.msra.mxu0 %v1417
        %1586 = vmatprep.subr.mxu0 %v1422
        %1587 = vmatpush1.xpose.msra.mxu0 %v1421
        %1588 = vmatprep.subr.mxu0 %v1426
        %1589 = vmatpush1.xpose.msra.mxu0 %v1425
        %1590 = vmatprep.subr.mxu0 %v1430
        %1591 = vmatpush1.xpose.msra.mxu0 %v1429
        %1592 = vmatprep.subr.mxu0 %v1434
        %1593 = vmatpush1.xpose.msra.mxu0 %v1433
        %1594 = vmatprep.subr.mxu0 %v1438
        %1595 = vmatpush1.xpose.msra.mxu0 %v1437
        %1596 = vmatprep.subr.mxu0 %v1442
        %1597 = vmatpush1.xpose.msra.mxu0 %v1441
        %1598 = vmatprep.subr.mxu0 %v1446
        %1599 = vmatpush1.xpose.msra.mxu0 %v1445
        %1600 = vmatprep.mubr.f32.mxu0 %v1462
        %1601 = vmatmul.mubr.f32.gmra.mrb[0].mxu0 %v738
        %v1602 = vpop.f32.mrb[0].mxu0
        %v1603 = vadd.f32 %v1532, %v1602
        %v1604 = vpop.f32.mrb[0].mxu0
        %v1605 = vadd.f32 %v1534, %v1604
        %1606 = vdwg.mxu0
        %v1607 = vmax.f32 %v1603, 0.0
        %v1608 = vmax.f32 %v1605, 0.0
        %v1609 = vmul.f32 %v1027, %v1317
        %v1610 = vmul.f32 %v1028, %v1318
        %v1611 = vmul.f32 %v1609, %v1607
        %v1612 = vmul.f32 %v1610, %v1608
        %s1613 = scalar_lea.vmem %s605, 1024 [#allocation8]
        %v1614 = vld [vmem:[%s1613] sm:$0xff]
        %v1615 = vld [vmem:[%s1613 + $0x8] sm:$0xff]
        %v1616 = vld [vmem:[%s1613 + $0x10] sm:$0xff]
        %v1617 = vld [vmem:[%s1613 + $0x18] sm:$0xff]
        %v1618 = vld [vmem:[%s1613 + $0x20] sm:$0xff]
        %v1619 = vld [vmem:[%s1613 + $0x28] sm:$0xff]
        %v1620 = vld [vmem:[%s1613 + $0x30] sm:$0xff]
        %v1621 = vld [vmem:[%s1613 + $0x38] sm:$0xff]
        %v1622 = vld [vmem:[%s1613 + $0x40] sm:$0xff]
        %v1623 = vld [vmem:[%s1613 + $0x48] sm:$0xff]
        %v1624 = vld [vmem:[%s1613 + $0x50] sm:$0xff]
        %v1625 = vld [vmem:[%s1613 + $0x58] sm:$0xff]
        %v1626 = vld [vmem:[%s1613 + $0x60] sm:$0xff]
        %v1627 = vld [vmem:[%s1613 + $0x68] sm:$0xff]
        %v1628 = vld [vmem:[%s1613 + $0x70] sm:$0xff]
        %v1629 = vld [vmem:[%s1613 + $0x78] sm:$0xff]
        %v1630 = vld [vmem:[%s1613 + $0x80] sm:$0xff]
        %v1631 = vld [vmem:[%s1613 + $0x88] sm:$0xff]
        %v1632 = vld [vmem:[%s1613 + $0x90] sm:$0xff]
        %v1633 = vld [vmem:[%s1613 + $0x98] sm:$0xff]
        %v1634 = vld [vmem:[%s1613 + $0xa0] sm:$0xff]
        %v1635 = vld [vmem:[%s1613 + $0xa8] sm:$0xff]
        %v1636 = vld [vmem:[%s1613 + $0xb0] sm:$0xff]
        %v1637 = vld [vmem:[%s1613 + $0xb8] sm:$0xff]
        %v1638 = vld [vmem:[%s1613 + $0xc0] sm:$0xff]
        %v1639 = vld [vmem:[%s1613 + $0xc8] sm:$0xff]
        %v1640 = vld [vmem:[%s1613 + $0xd0] sm:$0xff]
        %v1641 = vld [vmem:[%s1613 + $0xd8] sm:$0xff]
        %v1642 = vld [vmem:[%s1613 + $0xe0] sm:$0xff]
        %v1643 = vld [vmem:[%s1613 + $0xe8] sm:$0xff]
        %v1644 = vld [vmem:[%s1613 + $0xf0] sm:$0xff]
        %v1645 = vld [vmem:[%s1613 + $0xf8] sm:$0xff]
        %v1646 = vld [vmem:[%s1613 + $0x100] sm:$0xff]
        %v1647 = vld [vmem:[%s1613 + $0x108] sm:$0xff]
        %v1648 = vld [vmem:[%s1613 + $0x110] sm:$0xff]
        %v1649 = vld [vmem:[%s1613 + $0x118] sm:$0xff]
        %v1650 = vld [vmem:[%s1613 + $0x120] sm:$0xff]
        %v1651 = vld [vmem:[%s1613 + $0x128] sm:$0xff]
        %v1652 = vld [vmem:[%s1613 + $0x130] sm:$0xff]
        %v1653 = vld [vmem:[%s1613 + $0x138] sm:$0xff]
        %v1654 = vld [vmem:[%s1613 + $0x140] sm:$0xff]
        %v1655 = vld [vmem:[%s1613 + $0x148] sm:$0xff]
        %v1656 = vld [vmem:[%s1613 + $0x150] sm:$0xff]
        %v1657 = vld [vmem:[%s1613 + $0x158] sm:$0xff]
        %v1658 = vld [vmem:[%s1613 + $0x160] sm:$0xff]
        %v1659 = vld [vmem:[%s1613 + $0x168] sm:$0xff]
        %v1660 = vld [vmem:[%s1613 + $0x170] sm:$0xff]
        %v1661 = vld [vmem:[%s1613 + $0x178] sm:$0xff]
        %v1662 = vld [vmem:[%s1613 + $0x180] sm:$0xff]
        %v1663 = vld [vmem:[%s1613 + $0x188] sm:$0xff]
        %v1664 = vld [vmem:[%s1613 + $0x190] sm:$0xff]
        %v1665 = vld [vmem:[%s1613 + $0x198] sm:$0xff]
        %v1666 = vld [vmem:[%s1613 + $0x1a0] sm:$0xff]
        %v1667 = vld [vmem:[%s1613 + $0x1a8] sm:$0xff]
        %v1668 = vld [vmem:[%s1613 + $0x1b0] sm:$0xff]
        %v1669 = vld [vmem:[%s1613 + $0x1b8] sm:$0xff]
        %v1670 = vld [vmem:[%s1613 + $0x1c0] sm:$0xff]
        %v1671 = vld [vmem:[%s1613 + $0x1c8] sm:$0xff]
        %v1672 = vld [vmem:[%s1613 + $0x1d0] sm:$0xff]
        %v1673 = vld [vmem:[%s1613 + $0x1d8] sm:$0xff]
        %v1674 = vld [vmem:[%s1613 + $0x1e0] sm:$0xff]
        %v1675 = vld [vmem:[%s1613 + $0x1e8] sm:$0xff]
        %v1676 = vld [vmem:[%s1613 + $0x1f0] sm:$0xff]
        %v1677 = vld [vmem:[%s1613 + $0x1f8] sm:$0xff]
        %v1678 = vld [vmem:[%s1613 + $0x200] sm:$0xff]
        %v1679 = vld [vmem:[%s1613 + $0x208] sm:$0xff]
        %v1680 = vld [vmem:[%s1613 + $0x210] sm:$0xff]
        %v1681 = vld [vmem:[%s1613 + $0x218] sm:$0xff]
        %v1682 = vld [vmem:[%s1613 + $0x220] sm:$0xff]
        %v1683 = vld [vmem:[%s1613 + $0x228] sm:$0xff]
        %v1684 = vld [vmem:[%s1613 + $0x230] sm:$0xff]
        %v1685 = vld [vmem:[%s1613 + $0x238] sm:$0xff]
        %v1686 = vld [vmem:[%s1613 + $0x240] sm:$0xff]
        %v1687 = vld [vmem:[%s1613 + $0x248] sm:$0xff]
        %v1688 = vld [vmem:[%s1613 + $0x250] sm:$0xff]
        %v1689 = vld [vmem:[%s1613 + $0x258] sm:$0xff]
        %v1690 = vld [vmem:[%s1613 + $0x260] sm:$0xff]
        %v1691 = vld [vmem:[%s1613 + $0x268] sm:$0xff]
        %v1692 = vld [vmem:[%s1613 + $0x270] sm:$0xff]
        %v1693 = vld [vmem:[%s1613 + $0x278] sm:$0xff]
        %v1694 = vld [vmem:[%s1613 + $0x280] sm:$0xff]
        %v1695 = vld [vmem:[%s1613 + $0x288] sm:$0xff]
        %v1696 = vld [vmem:[%s1613 + $0x290] sm:$0xff]
        %v1697 = vld [vmem:[%s1613 + $0x298] sm:$0xff]
        %v1698 = vld [vmem:[%s1613 + $0x2a0] sm:$0xff]
        %v1699 = vld [vmem:[%s1613 + $0x2a8] sm:$0xff]
        %v1700 = vld [vmem:[%s1613 + $0x2b0] sm:$0xff]
        %v1701 = vld [vmem:[%s1613 + $0x2b8] sm:$0xff]
        %v1702 = vld [vmem:[%s1613 + $0x2c0] sm:$0xff]
        %v1703 = vld [vmem:[%s1613 + $0x2c8] sm:$0xff]
        %v1704 = vld [vmem:[%s1613 + $0x2d0] sm:$0xff]
        %v1705 = vld [vmem:[%s1613 + $0x2d8] sm:$0xff]
        %v1706 = vld [vmem:[%s1613 + $0x2e0] sm:$0xff]
        %v1707 = vld [vmem:[%s1613 + $0x2e8] sm:$0xff]
        %v1708 = vld [vmem:[%s1613 + $0x2f0] sm:$0xff]
        %v1709 = vld [vmem:[%s1613 + $0x2f8] sm:$0xff]
        %v1710 = vld [vmem:[%s1613 + $0x300] sm:$0xff]
        %v1711 = vld [vmem:[%s1613 + $0x308] sm:$0xff]
        %v1712 = vld [vmem:[%s1613 + $0x310] sm:$0xff]
        %v1713 = vld [vmem:[%s1613 + $0x318] sm:$0xff]
        %v1714 = vld [vmem:[%s1613 + $0x320] sm:$0xff]
        %v1715 = vld [vmem:[%s1613 + $0x328] sm:$0xff]
        %v1716 = vld [vmem:[%s1613 + $0x330] sm:$0xff]
        %v1717 = vld [vmem:[%s1613 + $0x338] sm:$0xff]
        %v1718 = vld [vmem:[%s1613 + $0x340] sm:$0xff]
        %v1719 = vld [vmem:[%s1613 + $0x348] sm:$0xff]
        %v1720 = vld [vmem:[%s1613 + $0x350] sm:$0xff]
        %v1721 = vld [vmem:[%s1613 + $0x358] sm:$0xff]
        %v1722 = vld [vmem:[%s1613 + $0x360] sm:$0xff]
        %v1723 = vld [vmem:[%s1613 + $0x368] sm:$0xff]
        %v1724 = vld [vmem:[%s1613 + $0x370] sm:$0xff]
        %v1725 = vld [vmem:[%s1613 + $0x378] sm:$0xff]
        %v1726 = vld [vmem:[%s1613 + $0x380] sm:$0xff]
        %v1727 = vld [vmem:[%s1613 + $0x388] sm:$0xff]
        %v1728 = vld [vmem:[%s1613 + $0x390] sm:$0xff]
        %v1729 = vld [vmem:[%s1613 + $0x398] sm:$0xff]
        %v1730 = vld [vmem:[%s1613 + $0x3a0] sm:$0xff]
        %v1731 = vld [vmem:[%s1613 + $0x3a8] sm:$0xff]
        %v1732 = vld [vmem:[%s1613 + $0x3b0] sm:$0xff]
        %v1733 = vld [vmem:[%s1613 + $0x3b8] sm:$0xff]
        %v1734 = vld [vmem:[%s1613 + $0x3c0] sm:$0xff]
        %v1735 = vld [vmem:[%s1613 + $0x3c8] sm:$0xff]
        %v1736 = vld [vmem:[%s1613 + $0x3d0] sm:$0xff]
        %v1737 = vld [vmem:[%s1613 + $0x3d8] sm:$0xff]
        %v1738 = vld [vmem:[%s1613 + $0x3e0] sm:$0xff]
        %v1739 = vld [vmem:[%s1613 + $0x3e8] sm:$0xff]
        %v1740 = vld [vmem:[%s1613 + $0x3f0] sm:$0xff]
        %v1741 = vld [vmem:[%s1613 + $0x3f8] sm:$0xff]
        %s1742 = scalar_lea.vmem %s614, 1 [#allocation10]
        %v1743 = vld [vmem:[%s1742] ss:$4 sm:$0x3]
        %v1745 = vlaneseq
        %v1746 = vshrl.u32 %v1745, 7
        %v1747 = vsub.s32 0, %v1746
        %v1748 = vrot.slane %v1743, %v1747
        %v1749 = vlaneseq
        %v1750 = vshrl.u32 %v1749, 7
        %v1751 = vsub.s32 1, %v1750
        %v1752 = vrot.slane %v1743, %v1751
        %1755 = vmatprep.subr.mxu0 %v1615
        %1756 = vmatpush1.xpose.msra.mxu0 %v1614
        %1757 = vmatprep.subr.mxu0 %v1619
        %1758 = vmatpush1.xpose.msra.mxu0 %v1618
        %1759 = vmatprep.subr.mxu0 %v1623
        %1760 = vmatpush1.xpose.msra.mxu0 %v1622
        %1761 = vmatprep.subr.mxu0 %v1627
        %1762 = vmatpush1.xpose.msra.mxu0 %v1626
        %1763 = vmatprep.subr.mxu0 %v1631
        %1764 = vmatpush1.xpose.msra.mxu0 %v1630
        %1765 = vmatprep.subr.mxu0 %v1635
        %1766 = vmatpush1.xpose.msra.mxu0 %v1634
        %1767 = vmatprep.subr.mxu0 %v1639
        %1768 = vmatpush1.xpose.msra.mxu0 %v1638
        %1769 = vmatprep.subr.mxu0 %v1643
        %1770 = vmatpush1.xpose.msra.mxu0 %v1642
        %1771 = vmatprep.subr.mxu0 %v1647
        %1772 = vmatpush1.xpose.msra.mxu0 %v1646
        %1773 = vmatprep.subr.mxu0 %v1651
        %1774 = vmatpush1.xpose.msra.mxu0 %v1650
        %1775 = vmatprep.subr.mxu0 %v1655
        %1776 = vmatpush1.xpose.msra.mxu0 %v1654
        %1777 = vmatprep.subr.mxu0 %v1659
        %1778 = vmatpush1.xpose.msra.mxu0 %v1658
        %1779 = vmatprep.subr.mxu0 %v1663
        %1780 = vmatpush1.xpose.msra.mxu0 %v1662
        %1781 = vmatprep.subr.mxu0 %v1667
        %1782 = vmatpush1.xpose.msra.mxu0 %v1666
        %1783 = vmatprep.subr.mxu0 %v1671
        %1784 = vmatpush1.xpose.msra.mxu0 %v1670
        %1785 = vmatprep.subr.mxu0 %v1675
        %1786 = vmatpush1.xpose.msra.mxu0 %v1674
        %1787 = vmatprep.subr.mxu0 %v1679
        %1788 = vmatpush1.xpose.msra.mxu0 %v1678
        %1789 = vmatprep.subr.mxu0 %v1683
        %1790 = vmatpush1.xpose.msra.mxu0 %v1682
        %1791 = vmatprep.subr.mxu0 %v1687
        %1792 = vmatpush1.xpose.msra.mxu0 %v1686
        %1793 = vmatprep.subr.mxu0 %v1691
        %1794 = vmatpush1.xpose.msra.mxu0 %v1690
        %1795 = vmatprep.subr.mxu0 %v1695
        %1796 = vmatpush1.xpose.msra.mxu0 %v1694
        %1797 = vmatprep.subr.mxu0 %v1699
        %1798 = vmatpush1.xpose.msra.mxu0 %v1698
        %1799 = vmatprep.subr.mxu0 %v1703
        %1800 = vmatpush1.xpose.msra.mxu0 %v1702
        %1801 = vmatprep.subr.mxu0 %v1707
        %1802 = vmatpush1.xpose.msra.mxu0 %v1706
        %1803 = vmatprep.subr.mxu0 %v1711
        %1804 = vmatpush1.xpose.msra.mxu0 %v1710
        %1805 = vmatprep.subr.mxu0 %v1715
        %1806 = vmatpush1.xpose.msra.mxu0 %v1714
        %1807 = vmatprep.subr.mxu0 %v1719
        %1808 = vmatpush1.xpose.msra.mxu0 %v1718
        %1809 = vmatprep.subr.mxu0 %v1723
        %1810 = vmatpush1.xpose.msra.mxu0 %v1722
        %1811 = vmatprep.subr.mxu0 %v1727
        %1812 = vmatpush1.xpose.msra.mxu0 %v1726
        %1813 = vmatprep.subr.mxu0 %v1731
        %1814 = vmatpush1.xpose.msra.mxu0 %v1730
        %1815 = vmatprep.subr.mxu0 %v1735
        %1816 = vmatpush1.xpose.msra.mxu0 %v1734
        %1817 = vmatprep.subr.mxu0 %v1739
        %1818 = vmatpush1.xpose.msra.mxu0 %v1738
        %1819 = vmatprep.mubr.f32.mxu0 %v881
        %1820 = vmatmul.mubr.f32.gmra.mrb[0].mxu0 %v733
        %v1821 = vpop.f32.mrb[0].mxu0
        %v1822 = vadd.f32 %v1748, %v1821
        %v1823 = vpop.f32.mrb[0].mxu0
        %v1824 = vadd.f32 %v1752, %v1823
        %1825 = vdwg.mxu0
        %1826 = vmatprep.subr.mxu0 %v1617
        %1827 = vmatpush1.xpose.msra.mxu0 %v1616
        %1828 = vmatprep.subr.mxu0 %v1621
        %1829 = vmatpush1.xpose.msra.mxu0 %v1620
        %1830 = vmatprep.subr.mxu0 %v1625
        %1831 = vmatpush1.xpose.msra.mxu0 %v1624
        %1832 = vmatprep.subr.mxu0 %v1629
        %1833 = vmatpush1.xpose.msra.mxu0 %v1628
        %1834 = vmatprep.subr.mxu0 %v1633
        %1835 = vmatpush1.xpose.msra.mxu0 %v1632
        %1836 = vmatprep.subr.mxu0 %v1637
        %1837 = vmatpush1.xpose.msra.mxu0 %v1636
        %1838 = vmatprep.subr.mxu0 %v1641
        %1839 = vmatpush1.xpose.msra.mxu0 %v1640
        %1840 = vmatprep.subr.mxu0 %v1645
        %1841 = vmatpush1.xpose.msra.mxu0 %v1644
        %1842 = vmatprep.subr.mxu0 %v1649
        %1843 = vmatpush1.xpose.msra.mxu0 %v1648
        %1844 = vmatprep.subr.mxu0 %v1653
        %1845 = vmatpush1.xpose.msra.mxu0 %v1652
        %1846 = vmatprep.subr.mxu0 %v1657
        %1847 = vmatpush1.xpose.msra.mxu0 %v1656
        %1848 = vmatprep.subr.mxu0 %v1661
        %1849 = vmatpush1.xpose.msra.mxu0 %v1660
        %1850 = vmatprep.subr.mxu0 %v1665
        %1851 = vmatpush1.xpose.msra.mxu0 %v1664
        %1852 = vmatprep.subr.mxu0 %v1669
        %1853 = vmatpush1.xpose.msra.mxu0 %v1668
        %1854 = vmatprep.subr.mxu0 %v1673
        %1855 = vmatpush1.xpose.msra.mxu0 %v1672
        %1856 = vmatprep.subr.mxu0 %v1677
        %1857 = vmatpush1.xpose.msra.mxu0 %v1676
        %1858 = vmatprep.subr.mxu0 %v1681
        %1859 = vmatpush1.xpose.msra.mxu0 %v1680
        %1860 = vmatprep.subr.mxu0 %v1685
        %1861 = vmatpush1.xpose.msra.mxu0 %v1684
        %1862 = vmatprep.subr.mxu0 %v1689
        %1863 = vmatpush1.xpose.msra.mxu0 %v1688
        %1864 = vmatprep.subr.mxu0 %v1693
        %1865 = vmatpush1.xpose.msra.mxu0 %v1692
        %1866 = vmatprep.subr.mxu0 %v1697
        %1867 = vmatpush1.xpose.msra.mxu0 %v1696
        %1868 = vmatprep.subr.mxu0 %v1701
        %1869 = vmatpush1.xpose.msra.mxu0 %v1700
        %1870 = vmatprep.subr.mxu0 %v1705
        %1871 = vmatpush1.xpose.msra.mxu0 %v1704
        %1872 = vmatprep.subr.mxu0 %v1709
        %1873 = vmatpush1.xpose.msra.mxu0 %v1708
        %1874 = vmatprep.subr.mxu0 %v1713
        %1875 = vmatpush1.xpose.msra.mxu0 %v1712
        %1876 = vmatprep.subr.mxu0 %v1717
        %1877 = vmatpush1.xpose.msra.mxu0 %v1716
        %1878 = vmatprep.subr.mxu0 %v1721
        %1879 = vmatpush1.xpose.msra.mxu0 %v1720
        %1880 = vmatprep.subr.mxu0 %v1725
        %1881 = vmatpush1.xpose.msra.mxu0 %v1724
        %1882 = vmatprep.subr.mxu0 %v1729
        %1883 = vmatpush1.xpose.msra.mxu0 %v1728
        %1884 = vmatprep.subr.mxu0 %v1733
        %1885 = vmatpush1.xpose.msra.mxu0 %v1732
        %1886 = vmatprep.subr.mxu0 %v1737
        %1887 = vmatpush1.xpose.msra.mxu0 %v1736
        %1888 = vmatprep.subr.mxu0 %v1741
        %1889 = vmatpush1.xpose.msra.mxu0 %v1740
        %1890 = vmatprep.mubr.f32.mxu0 %v882
        %1891 = vmatmul.mubr.f32.gmra.mrb[0].mxu0 %v734
        %v1892 = vpop.f32.mrb[0].mxu0
        %v1893 = vadd.f32 %v1822, %v1892
        %v1894 = vpop.f32.mrb[0].mxu0
        %v1895 = vadd.f32 %v1824, %v1894
        %1896 = vdwg.mxu0
        %v1897 = vmax.f32 %v1893, 0.0
        %v1898 = vmax.f32 %v1895, 0.0
        %s1899 = scalar_lea.vmem %s623, 1024 [#allocation11]
        %v1900 = vld [vmem:[%s1899] sm:$0xff]
        %v1901 = vld [vmem:[%s1899 + $0x8] sm:$0xff]
        %v1902 = vld [vmem:[%s1899 + $0x10] sm:$0xff]
        %v1903 = vld [vmem:[%s1899 + $0x18] sm:$0xff]
        %v1904 = vld [vmem:[%s1899 + $0x20] sm:$0xff]
        %v1905 = vld [vmem:[%s1899 + $0x28] sm:$0xff]
        %v1906 = vld [vmem:[%s1899 + $0x30] sm:$0xff]
        %v1907 = vld [vmem:[%s1899 + $0x38] sm:$0xff]
        %v1908 = vld [vmem:[%s1899 + $0x40] sm:$0xff]
        %v1909 = vld [vmem:[%s1899 + $0x48] sm:$0xff]
        %v1910 = vld [vmem:[%s1899 + $0x50] sm:$0xff]
        %v1911 = vld [vmem:[%s1899 + $0x58] sm:$0xff]
        %v1912 = vld [vmem:[%s1899 + $0x60] sm:$0xff]
        %v1913 = vld [vmem:[%s1899 + $0x68] sm:$0xff]
        %v1914 = vld [vmem:[%s1899 + $0x70] sm:$0xff]
        %v1915 = vld [vmem:[%s1899 + $0x78] sm:$0xff]
        %v1916 = vld [vmem:[%s1899 + $0x80] sm:$0xff]
        %v1917 = vld [vmem:[%s1899 + $0x88] sm:$0xff]
        %v1918 = vld [vmem:[%s1899 + $0x90] sm:$0xff]
        %v1919 = vld [vmem:[%s1899 + $0x98] sm:$0xff]
        %v1920 = vld [vmem:[%s1899 + $0xa0] sm:$0xff]
        %v1921 = vld [vmem:[%s1899 + $0xa8] sm:$0xff]
        %v1922 = vld [vmem:[%s1899 + $0xb0] sm:$0xff]
        %v1923 = vld [vmem:[%s1899 + $0xb8] sm:$0xff]
        %v1924 = vld [vmem:[%s1899 + $0xc0] sm:$0xff]
        %v1925 = vld [vmem:[%s1899 + $0xc8] sm:$0xff]
        %v1926 = vld [vmem:[%s1899 + $0xd0] sm:$0xff]
        %v1927 = vld [vmem:[%s1899 + $0xd8] sm:$0xff]
        %v1928 = vld [vmem:[%s1899 + $0xe0] sm:$0xff]
        %v1929 = vld [vmem:[%s1899 + $0xe8] sm:$0xff]
        %v1930 = vld [vmem:[%s1899 + $0xf0] sm:$0xff]
        %v1931 = vld [vmem:[%s1899 + $0xf8] sm:$0xff]
        %v1932 = vld [vmem:[%s1899 + $0x100] sm:$0xff]
        %v1933 = vld [vmem:[%s1899 + $0x108] sm:$0xff]
        %v1934 = vld [vmem:[%s1899 + $0x110] sm:$0xff]
        %v1935 = vld [vmem:[%s1899 + $0x118] sm:$0xff]
        %v1936 = vld [vmem:[%s1899 + $0x120] sm:$0xff]
        %v1937 = vld [vmem:[%s1899 + $0x128] sm:$0xff]
        %v1938 = vld [vmem:[%s1899 + $0x130] sm:$0xff]
        %v1939 = vld [vmem:[%s1899 + $0x138] sm:$0xff]
        %v1940 = vld [vmem:[%s1899 + $0x140] sm:$0xff]
        %v1941 = vld [vmem:[%s1899 + $0x148] sm:$0xff]
        %v1942 = vld [vmem:[%s1899 + $0x150] sm:$0xff]
        %v1943 = vld [vmem:[%s1899 + $0x158] sm:$0xff]
        %v1944 = vld [vmem:[%s1899 + $0x160] sm:$0xff]
        %v1945 = vld [vmem:[%s1899 + $0x168] sm:$0xff]
        %v1946 = vld [vmem:[%s1899 + $0x170] sm:$0xff]
        %v1947 = vld [vmem:[%s1899 + $0x178] sm:$0xff]
        %v1948 = vld [vmem:[%s1899 + $0x180] sm:$0xff]
        %v1949 = vld [vmem:[%s1899 + $0x188] sm:$0xff]
        %v1950 = vld [vmem:[%s1899 + $0x190] sm:$0xff]
        %v1951 = vld [vmem:[%s1899 + $0x198] sm:$0xff]
        %v1952 = vld [vmem:[%s1899 + $0x1a0] sm:$0xff]
        %v1953 = vld [vmem:[%s1899 + $0x1a8] sm:$0xff]
        %v1954 = vld [vmem:[%s1899 + $0x1b0] sm:$0xff]
        %v1955 = vld [vmem:[%s1899 + $0x1b8] sm:$0xff]
        %v1956 = vld [vmem:[%s1899 + $0x1c0] sm:$0xff]
        %v1957 = vld [vmem:[%s1899 + $0x1c8] sm:$0xff]
        %v1958 = vld [vmem:[%s1899 + $0x1d0] sm:$0xff]
        %v1959 = vld [vmem:[%s1899 + $0x1d8] sm:$0xff]
        %v1960 = vld [vmem:[%s1899 + $0x1e0] sm:$0xff]
        %v1961 = vld [vmem:[%s1899 + $0x1e8] sm:$0xff]
        %v1962 = vld [vmem:[%s1899 + $0x1f0] sm:$0xff]
        %v1963 = vld [vmem:[%s1899 + $0x1f8] sm:$0xff]
        %v1964 = vld [vmem:[%s1899 + $0x200] sm:$0xff]
        %v1965 = vld [vmem:[%s1899 + $0x208] sm:$0xff]
        %v1966 = vld [vmem:[%s1899 + $0x210] sm:$0xff]
        %v1967 = vld [vmem:[%s1899 + $0x218] sm:$0xff]
        %v1968 = vld [vmem:[%s1899 + $0x220] sm:$0xff]
        %v1969 = vld [vmem:[%s1899 + $0x228] sm:$0xff]
        %v1970 = vld [vmem:[%s1899 + $0x230] sm:$0xff]
        %v1971 = vld [vmem:[%s1899 + $0x238] sm:$0xff]
        %v1972 = vld [vmem:[%s1899 + $0x240] sm:$0xff]
        %v1973 = vld [vmem:[%s1899 + $0x248] sm:$0xff]
        %v1974 = vld [vmem:[%s1899 + $0x250] sm:$0xff]
        %v1975 = vld [vmem:[%s1899 + $0x258] sm:$0xff]
        %v1976 = vld [vmem:[%s1899 + $0x260] sm:$0xff]
        %v1977 = vld [vmem:[%s1899 + $0x268] sm:$0xff]
        %v1978 = vld [vmem:[%s1899 + $0x270] sm:$0xff]
        %v1979 = vld [vmem:[%s1899 + $0x278] sm:$0xff]
        %v1980 = vld [vmem:[%s1899 + $0x280] sm:$0xff]
        %v1981 = vld [vmem:[%s1899 + $0x288] sm:$0xff]
        %v1982 = vld [vmem:[%s1899 + $0x290] sm:$0xff]
        %v1983 = vld [vmem:[%s1899 + $0x298] sm:$0xff]
        %v1984 = vld [vmem:[%s1899 + $0x2a0] sm:$0xff]
        %v1985 = vld [vmem:[%s1899 + $0x2a8] sm:$0xff]
        %v1986 = vld [vmem:[%s1899 + $0x2b0] sm:$0xff]
        %v1987 = vld [vmem:[%s1899 + $0x2b8] sm:$0xff]
        %v1988 = vld [vmem:[%s1899 + $0x2c0] sm:$0xff]
        %v1989 = vld [vmem:[%s1899 + $0x2c8] sm:$0xff]
        %v1990 = vld [vmem:[%s1899 + $0x2d0] sm:$0xff]
        %v1991 = vld [vmem:[%s1899 + $0x2d8] sm:$0xff]
        %v1992 = vld [vmem:[%s1899 + $0x2e0] sm:$0xff]
        %v1993 = vld [vmem:[%s1899 + $0x2e8] sm:$0xff]
        %v1994 = vld [vmem:[%s1899 + $0x2f0] sm:$0xff]
        %v1995 = vld [vmem:[%s1899 + $0x2f8] sm:$0xff]
        %v1996 = vld [vmem:[%s1899 + $0x300] sm:$0xff]
        %v1997 = vld [vmem:[%s1899 + $0x308] sm:$0xff]
        %v1998 = vld [vmem:[%s1899 + $0x310] sm:$0xff]
        %v1999 = vld [vmem:[%s1899 + $0x318] sm:$0xff]
        %v2000 = vld [vmem:[%s1899 + $0x320] sm:$0xff]
        %v2001 = vld [vmem:[%s1899 + $0x328] sm:$0xff]
        %v2002 = vld [vmem:[%s1899 + $0x330] sm:$0xff]
        %v2003 = vld [vmem:[%s1899 + $0x338] sm:$0xff]
        %v2004 = vld [vmem:[%s1899 + $0x340] sm:$0xff]
        %v2005 = vld [vmem:[%s1899 + $0x348] sm:$0xff]
        %v2006 = vld [vmem:[%s1899 + $0x350] sm:$0xff]
        %v2007 = vld [vmem:[%s1899 + $0x358] sm:$0xff]
        %v2008 = vld [vmem:[%s1899 + $0x360] sm:$0xff]
        %v2009 = vld [vmem:[%s1899 + $0x368] sm:$0xff]
        %v2010 = vld [vmem:[%s1899 + $0x370] sm:$0xff]
        %v2011 = vld [vmem:[%s1899 + $0x378] sm:$0xff]
        %v2012 = vld [vmem:[%s1899 + $0x380] sm:$0xff]
        %v2013 = vld [vmem:[%s1899 + $0x388] sm:$0xff]
        %v2014 = vld [vmem:[%s1899 + $0x390] sm:$0xff]
        %v2015 = vld [vmem:[%s1899 + $0x398] sm:$0xff]
        %v2016 = vld [vmem:[%s1899 + $0x3a0] sm:$0xff]
        %v2017 = vld [vmem:[%s1899 + $0x3a8] sm:$0xff]
        %v2018 = vld [vmem:[%s1899 + $0x3b0] sm:$0xff]
        %v2019 = vld [vmem:[%s1899 + $0x3b8] sm:$0xff]
        %v2020 = vld [vmem:[%s1899 + $0x3c0] sm:$0xff]
        %v2021 = vld [vmem:[%s1899 + $0x3c8] sm:$0xff]
        %v2022 = vld [vmem:[%s1899 + $0x3d0] sm:$0xff]
        %v2023 = vld [vmem:[%s1899 + $0x3d8] sm:$0xff]
        %v2024 = vld [vmem:[%s1899 + $0x3e0] sm:$0xff]
        %v2025 = vld [vmem:[%s1899 + $0x3e8] sm:$0xff]
        %v2026 = vld [vmem:[%s1899 + $0x3f0] sm:$0xff]
        %v2027 = vld [vmem:[%s1899 + $0x3f8] sm:$0xff]
        %s2028 = scalar_lea.vmem %s632, 1 [#allocation13]
        %v2029 = vld [vmem:[%s2028] ss:$4 sm:$0x3]
        %v2031 = vlaneseq
        %v2032 = vshrl.u32 %v2031, 7
        %v2033 = vsub.s32 0, %v2032
        %v2034 = vrot.slane %v2029, %v2033
        %v2035 = vlaneseq
        %v2036 = vshrl.u32 %v2035, 7
        %v2037 = vsub.s32 1, %v2036
        %v2038 = vrot.slane %v2029, %v2037
        %2041 = vmatprep.subr.mxu0 %v1901
        %2042 = vmatpush1.xpose.msra.mxu0 %v1900
        %2043 = vmatprep.subr.mxu0 %v1905
        %2044 = vmatpush1.xpose.msra.mxu0 %v1904
        %2045 = vmatprep.subr.mxu0 %v1909
        %2046 = vmatpush1.xpose.msra.mxu0 %v1908
        %2047 = vmatprep.subr.mxu0 %v1913
        %2048 = vmatpush1.xpose.msra.mxu0 %v1912
        %2049 = vmatprep.subr.mxu0 %v1917
        %2050 = vmatpush1.xpose.msra.mxu0 %v1916
        %2051 = vmatprep.subr.mxu0 %v1921
        %2052 = vmatpush1.xpose.msra.mxu0 %v1920
        %2053 = vmatprep.subr.mxu0 %v1925
        %2054 = vmatpush1.xpose.msra.mxu0 %v1924
        %2055 = vmatprep.subr.mxu0 %v1929
        %2056 = vmatpush1.xpose.msra.mxu0 %v1928
        %2057 = vmatprep.subr.mxu0 %v1933
        %2058 = vmatpush1.xpose.msra.mxu0 %v1932
        %2059 = vmatprep.subr.mxu0 %v1937
        %2060 = vmatpush1.xpose.msra.mxu0 %v1936
        %2061 = vmatprep.subr.mxu0 %v1941
        %2062 = vmatpush1.xpose.msra.mxu0 %v1940
        %2063 = vmatprep.subr.mxu0 %v1945
        %2064 = vmatpush1.xpose.msra.mxu0 %v1944
        %2065 = vmatprep.subr.mxu0 %v1949
        %2066 = vmatpush1.xpose.msra.mxu0 %v1948
        %2067 = vmatprep.subr.mxu0 %v1953
        %2068 = vmatpush1.xpose.msra.mxu0 %v1952
        %2069 = vmatprep.subr.mxu0 %v1957
        %2070 = vmatpush1.xpose.msra.mxu0 %v1956
        %2071 = vmatprep.subr.mxu0 %v1961
        %2072 = vmatpush1.xpose.msra.mxu0 %v1960
        %2073 = vmatprep.subr.mxu0 %v1965
        %2074 = vmatpush1.xpose.msra.mxu0 %v1964
        %2075 = vmatprep.subr.mxu0 %v1969
        %2076 = vmatpush1.xpose.msra.mxu0 %v1968
        %2077 = vmatprep.subr.mxu0 %v1973
        %2078 = vmatpush1.xpose.msra.mxu0 %v1972
        %2079 = vmatprep.subr.mxu0 %v1977
        %2080 = vmatpush1.xpose.msra.mxu0 %v1976
        %2081 = vmatprep.subr.mxu0 %v1981
        %2082 = vmatpush1.xpose.msra.mxu0 %v1980
        %2083 = vmatprep.subr.mxu0 %v1985
        %2084 = vmatpush1.xpose.msra.mxu0 %v1984
        %2085 = vmatprep.subr.mxu0 %v1989
        %2086 = vmatpush1.xpose.msra.mxu0 %v1988
        %2087 = vmatprep.subr.mxu0 %v1993
        %2088 = vmatpush1.xpose.msra.mxu0 %v1992
        %2089 = vmatprep.subr.mxu0 %v1997
        %2090 = vmatpush1.xpose.msra.mxu0 %v1996
        %2091 = vmatprep.subr.mxu0 %v2001
        %2092 = vmatpush1.xpose.msra.mxu0 %v2000
        %2093 = vmatprep.subr.mxu0 %v2005
        %2094 = vmatpush1.xpose.msra.mxu0 %v2004
        %2095 = vmatprep.subr.mxu0 %v2009
        %2096 = vmatpush1.xpose.msra.mxu0 %v2008
        %2097 = vmatprep.subr.mxu0 %v2013
        %2098 = vmatpush1.xpose.msra.mxu0 %v2012
        %2099 = vmatprep.subr.mxu0 %v2017
        %2100 = vmatpush1.xpose.msra.mxu0 %v2016
        %2101 = vmatprep.subr.mxu0 %v2021
        %2102 = vmatpush1.xpose.msra.mxu0 %v2020
        %2103 = vmatprep.subr.mxu0 %v2025
        %2104 = vmatpush1.xpose.msra.mxu0 %v2024
        %2105 = vmatprep.mubr.f32.mxu0 %v1171
        %2106 = vmatmul.mubr.f32.gmra.mrb[0].mxu0 %v735
        %v2107 = vpop.f32.mrb[0].mxu0
        %v2108 = vadd.f32 %v2034, %v2107
        %v2109 = vpop.f32.mrb[0].mxu0
        %v2110 = vadd.f32 %v2038, %v2109
        %2111 = vdwg.mxu0
        %2112 = vmatprep.subr.mxu0 %v1903
        %2113 = vmatpush1.xpose.msra.mxu0 %v1902
        %2114 = vmatprep.subr.mxu0 %v1907
        %2115 = vmatpush1.xpose.msra.mxu0 %v1906
        %2116 = vmatprep.subr.mxu0 %v1911
        %2117 = vmatpush1.xpose.msra.mxu0 %v1910
        %2118 = vmatprep.subr.mxu0 %v1915
        %2119 = vmatpush1.xpose.msra.mxu0 %v1914
        %2120 = vmatprep.subr.mxu0 %v1919
        %2121 = vmatpush1.xpose.msra.mxu0 %v1918
        %2122 = vmatprep.subr.mxu0 %v1923
        %2123 = vmatpush1.xpose.msra.mxu0 %v1922
        %2124 = vmatprep.subr.mxu0 %v1927
        %2125 = vmatpush1.xpose.msra.mxu0 %v1926
        %2126 = vmatprep.subr.mxu0 %v1931
        %2127 = vmatpush1.xpose.msra.mxu0 %v1930
        %2128 = vmatprep.subr.mxu0 %v1935
        %2129 = vmatpush1.xpose.msra.mxu0 %v1934
        %2130 = vmatprep.subr.mxu0 %v1939
        %2131 = vmatpush1.xpose.msra.mxu0 %v1938
        %2132 = vmatprep.subr.mxu0 %v1943
        %2133 = vmatpush1.xpose.msra.mxu0 %v1942
        %2134 = vmatprep.subr.mxu0 %v1947
        %2135 = vmatpush1.xpose.msra.mxu0 %v1946
        %2136 = vmatprep.subr.mxu0 %v1951
        %2137 = vmatpush1.xpose.msra.mxu0 %v1950
        %2138 = vmatprep.subr.mxu0 %v1955
        %2139 = vmatpush1.xpose.msra.mxu0 %v1954
        %2140 = vmatprep.subr.mxu0 %v1959
        %2141 = vmatpush1.xpose.msra.mxu0 %v1958
        %2142 = vmatprep.subr.mxu0 %v1963
        %2143 = vmatpush1.xpose.msra.mxu0 %v1962
        %2144 = vmatprep.subr.mxu0 %v1967
        %2145 = vmatpush1.xpose.msra.mxu0 %v1966
        %2146 = vmatprep.subr.mxu0 %v1971
        %2147 = vmatpush1.xpose.msra.mxu0 %v1970
        %2148 = vmatprep.subr.mxu0 %v1975
        %2149 = vmatpush1.xpose.msra.mxu0 %v1974
        %2150 = vmatprep.subr.mxu0 %v1979
        %2151 = vmatpush1.xpose.msra.mxu0 %v1978
        %2152 = vmatprep.subr.mxu0 %v1983
        %2153 = vmatpush1.xpose.msra.mxu0 %v1982
        %2154 = vmatprep.subr.mxu0 %v1987
        %2155 = vmatpush1.xpose.msra.mxu0 %v1986
        %2156 = vmatprep.subr.mxu0 %v1991
        %2157 = vmatpush1.xpose.msra.mxu0 %v1990
        %2158 = vmatprep.subr.mxu0 %v1995
        %2159 = vmatpush1.xpose.msra.mxu0 %v1994
        %2160 = vmatprep.subr.mxu0 %v1999
        %2161 = vmatpush1.xpose.msra.mxu0 %v1998
        %2162 = vmatprep.subr.mxu0 %v2003
        %2163 = vmatpush1.xpose.msra.mxu0 %v2002
        %2164 = vmatprep.subr.mxu0 %v2007
        %2165 = vmatpush1.xpose.msra.mxu0 %v2006
        %2166 = vmatprep.subr.mxu0 %v2011
        %2167 = vmatpush1.xpose.msra.mxu0 %v2010
        %2168 = vmatprep.subr.mxu0 %v2015
        %2169 = vmatpush1.xpose.msra.mxu0 %v2014
        %2170 = vmatprep.subr.mxu0 %v2019
        %2171 = vmatpush1.xpose.msra.mxu0 %v2018
        %2172 = vmatprep.subr.mxu0 %v2023
        %2173 = vmatpush1.xpose.msra.mxu0 %v2022
        %2174 = vmatprep.subr.mxu0 %v2027
        %2175 = vmatpush1.xpose.msra.mxu0 %v2026
        %2176 = vmatprep.mubr.f32.mxu0 %v1172
        %2177 = vmatmul.mubr.f32.gmra.mrb[0].mxu0 %v736
        %v2178 = vpop.f32.mrb[0].mxu0
        %v2179 = vadd.f32 %v2108, %v2178
        %v2180 = vpop.f32.mrb[0].mxu0
        %v2181 = vadd.f32 %v2110, %v2180
        %2182 = vdwg.mxu0
        %v2183 = vmax.f32 %v2179, 0.0
        %v2184 = vmax.f32 %v2181, 0.0
        %s2185 = scalar_lea.vmem %s641, 1024 [#allocation14]
        %v2186 = vld [vmem:[%s2185] sm:$0xff]
        %v2187 = vld [vmem:[%s2185 + $0x8] sm:$0xff]
        %v2188 = vld [vmem:[%s2185 + $0x10] sm:$0xff]
        %v2189 = vld [vmem:[%s2185 + $0x18] sm:$0xff]
        %v2190 = vld [vmem:[%s2185 + $0x20] sm:$0xff]
        %v2191 = vld [vmem:[%s2185 + $0x28] sm:$0xff]
        %v2192 = vld [vmem:[%s2185 + $0x30] sm:$0xff]
        %v2193 = vld [vmem:[%s2185 + $0x38] sm:$0xff]
        %v2194 = vld [vmem:[%s2185 + $0x40] sm:$0xff]
        %v2195 = vld [vmem:[%s2185 + $0x48] sm:$0xff]
        %v2196 = vld [vmem:[%s2185 + $0x50] sm:$0xff]
        %v2197 = vld [vmem:[%s2185 + $0x58] sm:$0xff]
        %v2198 = vld [vmem:[%s2185 + $0x60] sm:$0xff]
        %v2199 = vld [vmem:[%s2185 + $0x68] sm:$0xff]
        %v2200 = vld [vmem:[%s2185 + $0x70] sm:$0xff]
        %v2201 = vld [vmem:[%s2185 + $0x78] sm:$0xff]
        %v2202 = vld [vmem:[%s2185 + $0x80] sm:$0xff]
        %v2203 = vld [vmem:[%s2185 + $0x88] sm:$0xff]
        %v2204 = vld [vmem:[%s2185 + $0x90] sm:$0xff]
        %v2205 = vld [vmem:[%s2185 + $0x98] sm:$0xff]
        %v2206 = vld [vmem:[%s2185 + $0xa0] sm:$0xff]
        %v2207 = vld [vmem:[%s2185 + $0xa8] sm:$0xff]
        %v2208 = vld [vmem:[%s2185 + $0xb0] sm:$0xff]
        %v2209 = vld [vmem:[%s2185 + $0xb8] sm:$0xff]
        %v2210 = vld [vmem:[%s2185 + $0xc0] sm:$0xff]
        %v2211 = vld [vmem:[%s2185 + $0xc8] sm:$0xff]
        %v2212 = vld [vmem:[%s2185 + $0xd0] sm:$0xff]
        %v2213 = vld [vmem:[%s2185 + $0xd8] sm:$0xff]
        %v2214 = vld [vmem:[%s2185 + $0xe0] sm:$0xff]
        %v2215 = vld [vmem:[%s2185 + $0xe8] sm:$0xff]
        %v2216 = vld [vmem:[%s2185 + $0xf0] sm:$0xff]
        %v2217 = vld [vmem:[%s2185 + $0xf8] sm:$0xff]
        %v2218 = vld [vmem:[%s2185 + $0x100] sm:$0xff]
        %v2219 = vld [vmem:[%s2185 + $0x108] sm:$0xff]
        %v2220 = vld [vmem:[%s2185 + $0x110] sm:$0xff]
        %v2221 = vld [vmem:[%s2185 + $0x118] sm:$0xff]
        %v2222 = vld [vmem:[%s2185 + $0x120] sm:$0xff]
        %v2223 = vld [vmem:[%s2185 + $0x128] sm:$0xff]
        %v2224 = vld [vmem:[%s2185 + $0x130] sm:$0xff]
        %v2225 = vld [vmem:[%s2185 + $0x138] sm:$0xff]
        %v2226 = vld [vmem:[%s2185 + $0x140] sm:$0xff]
        %v2227 = vld [vmem:[%s2185 + $0x148] sm:$0xff]
        %v2228 = vld [vmem:[%s2185 + $0x150] sm:$0xff]
        %v2229 = vld [vmem:[%s2185 + $0x158] sm:$0xff]
        %v2230 = vld [vmem:[%s2185 + $0x160] sm:$0xff]
        %v2231 = vld [vmem:[%s2185 + $0x168] sm:$0xff]
        %v2232 = vld [vmem:[%s2185 + $0x170] sm:$0xff]
        %v2233 = vld [vmem:[%s2185 + $0x178] sm:$0xff]
        %v2234 = vld [vmem:[%s2185 + $0x180] sm:$0xff]
        %v2235 = vld [vmem:[%s2185 + $0x188] sm:$0xff]
        %v2236 = vld [vmem:[%s2185 + $0x190] sm:$0xff]
        %v2237 = vld [vmem:[%s2185 + $0x198] sm:$0xff]
        %v2238 = vld [vmem:[%s2185 + $0x1a0] sm:$0xff]
        %v2239 = vld [vmem:[%s2185 + $0x1a8] sm:$0xff]
        %v2240 = vld [vmem:[%s2185 + $0x1b0] sm:$0xff]
        %v2241 = vld [vmem:[%s2185 + $0x1b8] sm:$0xff]
        %v2242 = vld [vmem:[%s2185 + $0x1c0] sm:$0xff]
        %v2243 = vld [vmem:[%s2185 + $0x1c8] sm:$0xff]
        %v2244 = vld [vmem:[%s2185 + $0x1d0] sm:$0xff]
        %v2245 = vld [vmem:[%s2185 + $0x1d8] sm:$0xff]
        %v2246 = vld [vmem:[%s2185 + $0x1e0] sm:$0xff]
        %v2247 = vld [vmem:[%s2185 + $0x1e8] sm:$0xff]
        %v2248 = vld [vmem:[%s2185 + $0x1f0] sm:$0xff]
        %v2249 = vld [vmem:[%s2185 + $0x1f8] sm:$0xff]
        %v2250 = vld [vmem:[%s2185 + $0x200] sm:$0xff]
        %v2251 = vld [vmem:[%s2185 + $0x208] sm:$0xff]
        %v2252 = vld [vmem:[%s2185 + $0x210] sm:$0xff]
        %v2253 = vld [vmem:[%s2185 + $0x218] sm:$0xff]
        %v2254 = vld [vmem:[%s2185 + $0x220] sm:$0xff]
        %v2255 = vld [vmem:[%s2185 + $0x228] sm:$0xff]
        %v2256 = vld [vmem:[%s2185 + $0x230] sm:$0xff]
        %v2257 = vld [vmem:[%s2185 + $0x238] sm:$0xff]
        %v2258 = vld [vmem:[%s2185 + $0x240] sm:$0xff]
        %v2259 = vld [vmem:[%s2185 + $0x248] sm:$0xff]
        %v2260 = vld [vmem:[%s2185 + $0x250] sm:$0xff]
        %v2261 = vld [vmem:[%s2185 + $0x258] sm:$0xff]
        %v2262 = vld [vmem:[%s2185 + $0x260] sm:$0xff]
        %v2263 = vld [vmem:[%s2185 + $0x268] sm:$0xff]
        %v2264 = vld [vmem:[%s2185 + $0x270] sm:$0xff]
        %v2265 = vld [vmem:[%s2185 + $0x278] sm:$0xff]
        %v2266 = vld [vmem:[%s2185 + $0x280] sm:$0xff]
        %v2267 = vld [vmem:[%s2185 + $0x288] sm:$0xff]
        %v2268 = vld [vmem:[%s2185 + $0x290] sm:$0xff]
        %v2269 = vld [vmem:[%s2185 + $0x298] sm:$0xff]
        %v2270 = vld [vmem:[%s2185 + $0x2a0] sm:$0xff]
        %v2271 = vld [vmem:[%s2185 + $0x2a8] sm:$0xff]
        %v2272 = vld [vmem:[%s2185 + $0x2b0] sm:$0xff]
        %v2273 = vld [vmem:[%s2185 + $0x2b8] sm:$0xff]
        %v2274 = vld [vmem:[%s2185 + $0x2c0] sm:$0xff]
        %v2275 = vld [vmem:[%s2185 + $0x2c8] sm:$0xff]
        %v2276 = vld [vmem:[%s2185 + $0x2d0] sm:$0xff]
        %v2277 = vld [vmem:[%s2185 + $0x2d8] sm:$0xff]
        %v2278 = vld [vmem:[%s2185 + $0x2e0] sm:$0xff]
        %v2279 = vld [vmem:[%s2185 + $0x2e8] sm:$0xff]
        %v2280 = vld [vmem:[%s2185 + $0x2f0] sm:$0xff]
        %v2281 = vld [vmem:[%s2185 + $0x2f8] sm:$0xff]
        %v2282 = vld [vmem:[%s2185 + $0x300] sm:$0xff]
        %v2283 = vld [vmem:[%s2185 + $0x308] sm:$0xff]
        %v2284 = vld [vmem:[%s2185 + $0x310] sm:$0xff]
        %v2285 = vld [vmem:[%s2185 + $0x318] sm:$0xff]
        %v2286 = vld [vmem:[%s2185 + $0x320] sm:$0xff]
        %v2287 = vld [vmem:[%s2185 + $0x328] sm:$0xff]
        %v2288 = vld [vmem:[%s2185 + $0x330] sm:$0xff]
        %v2289 = vld [vmem:[%s2185 + $0x338] sm:$0xff]
        %v2290 = vld [vmem:[%s2185 + $0x340] sm:$0xff]
        %v2291 = vld [vmem:[%s2185 + $0x348] sm:$0xff]
        %v2292 = vld [vmem:[%s2185 + $0x350] sm:$0xff]
        %v2293 = vld [vmem:[%s2185 + $0x358] sm:$0xff]
        %v2294 = vld [vmem:[%s2185 + $0x360] sm:$0xff]
        %v2295 = vld [vmem:[%s2185 + $0x368] sm:$0xff]
        %v2296 = vld [vmem:[%s2185 + $0x370] sm:$0xff]
        %v2297 = vld [vmem:[%s2185 + $0x378] sm:$0xff]
        %v2298 = vld [vmem:[%s2185 + $0x380] sm:$0xff]
        %v2299 = vld [vmem:[%s2185 + $0x388] sm:$0xff]
        %v2300 = vld [vmem:[%s2185 + $0x390] sm:$0xff]
        %v2301 = vld [vmem:[%s2185 + $0x398] sm:$0xff]
        %v2302 = vld [vmem:[%s2185 + $0x3a0] sm:$0xff]
        %v2303 = vld [vmem:[%s2185 + $0x3a8] sm:$0xff]
        %v2304 = vld [vmem:[%s2185 + $0x3b0] sm:$0xff]
        %v2305 = vld [vmem:[%s2185 + $0x3b8] sm:$0xff]
        %v2306 = vld [vmem:[%s2185 + $0x3c0] sm:$0xff]
        %v2307 = vld [vmem:[%s2185 + $0x3c8] sm:$0xff]
        %v2308 = vld [vmem:[%s2185 + $0x3d0] sm:$0xff]
        %v2309 = vld [vmem:[%s2185 + $0x3d8] sm:$0xff]
        %v2310 = vld [vmem:[%s2185 + $0x3e0] sm:$0xff]
        %v2311 = vld [vmem:[%s2185 + $0x3e8] sm:$0xff]
        %v2312 = vld [vmem:[%s2185 + $0x3f0] sm:$0xff]
        %v2313 = vld [vmem:[%s2185 + $0x3f8] sm:$0xff]
        %s2314 = scalar_lea.vmem %s650, 1 [#allocation16]
        %v2315 = vld [vmem:[%s2314] ss:$4 sm:$0x3]
        %v2317 = vlaneseq
        %v2318 = vshrl.u32 %v2317, 7
        %v2319 = vsub.s32 0, %v2318
        %v2320 = vrot.slane %v2315, %v2319
        %v2321 = vlaneseq
        %v2322 = vshrl.u32 %v2321, 7
        %v2323 = vsub.s32 1, %v2322
        %v2324 = vrot.slane %v2315, %v2323
        %2327 = vmatprep.subr.mxu0 %v2187
        %2328 = vmatpush1.xpose.msra.mxu0 %v2186
        %2329 = vmatprep.subr.mxu0 %v2191
        %2330 = vmatpush1.xpose.msra.mxu0 %v2190
        %2331 = vmatprep.subr.mxu0 %v2195
        %2332 = vmatpush1.xpose.msra.mxu0 %v2194
        %2333 = vmatprep.subr.mxu0 %v2199
        %2334 = vmatpush1.xpose.msra.mxu0 %v2198
        %2335 = vmatprep.subr.mxu0 %v2203
        %2336 = vmatpush1.xpose.msra.mxu0 %v2202
        %2337 = vmatprep.subr.mxu0 %v2207
        %2338 = vmatpush1.xpose.msra.mxu0 %v2206
        %2339 = vmatprep.subr.mxu0 %v2211
        %2340 = vmatpush1.xpose.msra.mxu0 %v2210
        %2341 = vmatprep.subr.mxu0 %v2215
        %2342 = vmatpush1.xpose.msra.mxu0 %v2214
        %2343 = vmatprep.subr.mxu0 %v2219
        %2344 = vmatpush1.xpose.msra.mxu0 %v2218
        %2345 = vmatprep.subr.mxu0 %v2223
        %2346 = vmatpush1.xpose.msra.mxu0 %v2222
        %2347 = vmatprep.subr.mxu0 %v2227
        %2348 = vmatpush1.xpose.msra.mxu0 %v2226
        %2349 = vmatprep.subr.mxu0 %v2231
        %2350 = vmatpush1.xpose.msra.mxu0 %v2230
        %2351 = vmatprep.subr.mxu0 %v2235
        %2352 = vmatpush1.xpose.msra.mxu0 %v2234
        %2353 = vmatprep.subr.mxu0 %v2239
        %2354 = vmatpush1.xpose.msra.mxu0 %v2238
        %2355 = vmatprep.subr.mxu0 %v2243
        %2356 = vmatpush1.xpose.msra.mxu0 %v2242
        %2357 = vmatprep.subr.mxu0 %v2247
        %2358 = vmatpush1.xpose.msra.mxu0 %v2246
        %2359 = vmatprep.subr.mxu0 %v2251
        %2360 = vmatpush1.xpose.msra.mxu0 %v2250
        %2361 = vmatprep.subr.mxu0 %v2255
        %2362 = vmatpush1.xpose.msra.mxu0 %v2254
        %2363 = vmatprep.subr.mxu0 %v2259
        %2364 = vmatpush1.xpose.msra.mxu0 %v2258
        %2365 = vmatprep.subr.mxu0 %v2263
        %2366 = vmatpush1.xpose.msra.mxu0 %v2262
        %2367 = vmatprep.subr.mxu0 %v2267
        %2368 = vmatpush1.xpose.msra.mxu0 %v2266
        %2369 = vmatprep.subr.mxu0 %v2271
        %2370 = vmatpush1.xpose.msra.mxu0 %v2270
        %2371 = vmatprep.subr.mxu0 %v2275
        %2372 = vmatpush1.xpose.msra.mxu0 %v2274
        %2373 = vmatprep.subr.mxu0 %v2279
        %2374 = vmatpush1.xpose.msra.mxu0 %v2278
        %2375 = vmatprep.subr.mxu0 %v2283
        %2376 = vmatpush1.xpose.msra.mxu0 %v2282
        %2377 = vmatprep.subr.mxu0 %v2287
        %2378 = vmatpush1.xpose.msra.mxu0 %v2286
        %2379 = vmatprep.subr.mxu0 %v2291
        %2380 = vmatpush1.xpose.msra.mxu0 %v2290
        %2381 = vmatprep.subr.mxu0 %v2295
        %2382 = vmatpush1.xpose.msra.mxu0 %v2294
        %2383 = vmatprep.subr.mxu0 %v2299
        %2384 = vmatpush1.xpose.msra.mxu0 %v2298
        %2385 = vmatprep.subr.mxu0 %v2303
        %2386 = vmatpush1.xpose.msra.mxu0 %v2302
        %2387 = vmatprep.subr.mxu0 %v2307
        %2388 = vmatpush1.xpose.msra.mxu0 %v2306
        %2389 = vmatprep.subr.mxu0 %v2311
        %2390 = vmatpush1.xpose.msra.mxu0 %v2310
        %2391 = vmatprep.mubr.f32.mxu0 %v1461
        %2392 = vmatmul.mubr.f32.gmra.mrb[0].mxu0 %v737
        %v2393 = vpop.f32.mrb[0].mxu0
        %v2394 = vadd.f32 %v2320, %v2393
        %v2395 = vpop.f32.mrb[0].mxu0
        %v2396 = vadd.f32 %v2324, %v2395
        %2397 = vdwg.mxu0
        %2398 = vmatprep.subr.mxu0 %v2189
        %2399 = vmatpush1.xpose.msra.mxu0 %v2188
        %2400 = vmatprep.subr.mxu0 %v2193
        %2401 = vmatpush1.xpose.msra.mxu0 %v2192
        %2402 = vmatprep.subr.mxu0 %v2197
        %2403 = vmatpush1.xpose.msra.mxu0 %v2196
        %2404 = vmatprep.subr.mxu0 %v2201
        %2405 = vmatpush1.xpose.msra.mxu0 %v2200
        %2406 = vmatprep.subr.mxu0 %v2205
        %2407 = vmatpush1.xpose.msra.mxu0 %v2204
        %2408 = vmatprep.subr.mxu0 %v2209
        %2409 = vmatpush1.xpose.msra.mxu0 %v2208
        %2410 = vmatprep.subr.mxu0 %v2213
        %2411 = vmatpush1.xpose.msra.mxu0 %v2212
        %2412 = vmatprep.subr.mxu0 %v2217
        %2413 = vmatpush1.xpose.msra.mxu0 %v2216
        %2414 = vmatprep.subr.mxu0 %v2221
        %2415 = vmatpush1.xpose.msra.mxu0 %v2220
        %2416 = vmatprep.subr.mxu0 %v2225
        %2417 = vmatpush1.xpose.msra.mxu0 %v2224
        %2418 = vmatprep.subr.mxu0 %v2229
        %2419 = vmatpush1.xpose.msra.mxu0 %v2228
        %2420 = vmatprep.subr.mxu0 %v2233
        %2421 = vmatpush1.xpose.msra.mxu0 %v2232
        %2422 = vmatprep.subr.mxu0 %v2237
        %2423 = vmatpush1.xpose.msra.mxu0 %v2236
        %2424 = vmatprep.subr.mxu0 %v2241
        %2425 = vmatpush1.xpose.msra.mxu0 %v2240
        %2426 = vmatprep.subr.mxu0 %v2245
        %2427 = vmatpush1.xpose.msra.mxu0 %v2244
        %2428 = vmatprep.subr.mxu0 %v2249
        %2429 = vmatpush1.xpose.msra.mxu0 %v2248
        %2430 = vmatprep.subr.mxu0 %v2253
        %2431 = vmatpush1.xpose.msra.mxu0 %v2252
        %2432 = vmatprep.subr.mxu0 %v2257
        %2433 = vmatpush1.xpose.msra.mxu0 %v2256
        %2434 = vmatprep.subr.mxu0 %v2261
        %2435 = vmatpush1.xpose.msra.mxu0 %v2260
        %2436 = vmatprep.subr.mxu0 %v2265
        %2437 = vmatpush1.xpose.msra.mxu0 %v2264
        %2438 = vmatprep.subr.mxu0 %v2269
        %2439 = vmatpush1.xpose.msra.mxu0 %v2268
        %2440 = vmatprep.subr.mxu0 %v2273
        %2441 = vmatpush1.xpose.msra.mxu0 %v2272
        %2442 = vmatprep.subr.mxu0 %v2277
        %2443 = vmatpush1.xpose.msra.mxu0 %v2276
        %2444 = vmatprep.subr.mxu0 %v2281
        %2445 = vmatpush1.xpose.msra.mxu0 %v2280
        %2446 = vmatprep.subr.mxu0 %v2285
        %2447 = vmatpush1.xpose.msra.mxu0 %v2284
        %2448 = vmatprep.subr.mxu0 %v2289
        %2449 = vmatpush1.xpose.msra.mxu0 %v2288
        %2450 = vmatprep.subr.mxu0 %v2293
        %2451 = vmatpush1.xpose.msra.mxu0 %v2292
        %2452 = vmatprep.subr.mxu0 %v2297
        %2453 = vmatpush1.xpose.msra.mxu0 %v2296
        %2454 = vmatprep.subr.mxu0 %v2301
        %2455 = vmatpush1.xpose.msra.mxu0 %v2300
        %2456 = vmatprep.subr.mxu0 %v2305
        %2457 = vmatpush1.xpose.msra.mxu0 %v2304
        %2458 = vmatprep.subr.mxu0 %v2309
        %2459 = vmatpush1.xpose.msra.mxu0 %v2308
        %2460 = vmatprep.subr.mxu0 %v2313
        %2461 = vmatpush1.xpose.msra.mxu0 %v2312
        %2462 = vmatprep.mubr.f32.mxu0 %v1462
        %2463 = vmatmul.mubr.f32.gmra.mrb[0].mxu0 %v738
        %v2464 = vpop.f32.mrb[0].mxu0
        %v2465 = vadd.f32 %v2394, %v2464
        %v2466 = vpop.f32.mrb[0].mxu0
        %v2467 = vadd.f32 %v2396, %v2466
        %2468 = vdwg.mxu0
        %v2469 = vmax.f32 %v2465, 0.0
        %v2470 = vmax.f32 %v2467, 0.0
        %v2471 = vmul.f32 %v1897, %v2183
        %v2472 = vmul.f32 %v1898, %v2184
        %v2473 = vmul.f32 %v2471, %v2469
        %v2474 = vmul.f32 %v2472, %v2470
        %v2475 = vadd.f32 %v1611, %v2473
        %v2476 = vadd.f32 %v1612, %v2474
        %s2477 = scalar_lea.vmem %s605, 2048 [#allocation8]
        %v2478 = vld [vmem:[%s2477] sm:$0xff]
        %v2479 = vld [vmem:[%s2477 + $0x8] sm:$0xff]
        %v2480 = vld [vmem:[%s2477 + $0x10] sm:$0xff]
        %v2481 = vld [vmem:[%s2477 + $0x18] sm:$0xff]
        %v2482 = vld [vmem:[%s2477 + $0x20] sm:$0xff]
        %v2483 = vld [vmem:[%s2477 + $0x28] sm:$0xff]
        %v2484 = vld [vmem:[%s2477 + $0x30] sm:$0xff]
        %v2485 = vld [vmem:[%s2477 + $0x38] sm:$0xff]
        %v2486 = vld [vmem:[%s2477 + $0x40] sm:$0xff]
        %v2487 = vld [vmem:[%s2477 + $0x48] sm:$0xff]
        %v2488 = vld [vmem:[%s2477 + $0x50] sm:$0xff]
        %v2489 = vld [vmem:[%s2477 + $0x58] sm:$0xff]
        %v2490 = vld [vmem:[%s2477 + $0x60] sm:$0xff]
        %v2491 = vld [vmem:[%s2477 + $0x68] sm:$0xff]
        %v2492 = vld [vmem:[%s2477 + $0x70] sm:$0xff]
        %v2493 = vld [vmem:[%s2477 + $0x78] sm:$0xff]
        %v2494 = vld [vmem:[%s2477 + $0x80] sm:$0xff]
        %v2495 = vld [vmem:[%s2477 + $0x88] sm:$0xff]
        %v2496 = vld [vmem:[%s2477 + $0x90] sm:$0xff]
        %v2497 = vld [vmem:[%s2477 + $0x98] sm:$0xff]
        %v2498 = vld [vmem:[%s2477 + $0xa0] sm:$0xff]
        %v2499 = vld [vmem:[%s2477 + $0xa8] sm:$0xff]
        %v2500 = vld [vmem:[%s2477 + $0xb0] sm:$0xff]
        %v2501 = vld [vmem:[%s2477 + $0xb8] sm:$0xff]
        %v2502 = vld [vmem:[%s2477 + $0xc0] sm:$0xff]
        %v2503 = vld [vmem:[%s2477 + $0xc8] sm:$0xff]
        %v2504 = vld [vmem:[%s2477 + $0xd0] sm:$0xff]
        %v2505 = vld [vmem:[%s2477 + $0xd8] sm:$0xff]
        %v2506 = vld [vmem:[%s2477 + $0xe0] sm:$0xff]
        %v2507 = vld [vmem:[%s2477 + $0xe8] sm:$0xff]
        %v2508 = vld [vmem:[%s2477 + $0xf0] sm:$0xff]
        %v2509 = vld [vmem:[%s2477 + $0xf8] sm:$0xff]
        %v2510 = vld [vmem:[%s2477 + $0x100] sm:$0xff]
        %v2511 = vld [vmem:[%s2477 + $0x108] sm:$0xff]
        %v2512 = vld [vmem:[%s2477 + $0x110] sm:$0xff]
        %v2513 = vld [vmem:[%s2477 + $0x118] sm:$0xff]
        %v2514 = vld [vmem:[%s2477 + $0x120] sm:$0xff]
        %v2515 = vld [vmem:[%s2477 + $0x128] sm:$0xff]
        %v2516 = vld [vmem:[%s2477 + $0x130] sm:$0xff]
        %v2517 = vld [vmem:[%s2477 + $0x138] sm:$0xff]
        %v2518 = vld [vmem:[%s2477 + $0x140] sm:$0xff]
        %v2519 = vld [vmem:[%s2477 + $0x148] sm:$0xff]
        %v2520 = vld [vmem:[%s2477 + $0x150] sm:$0xff]
        %v2521 = vld [vmem:[%s2477 + $0x158] sm:$0xff]
        %v2522 = vld [vmem:[%s2477 + $0x160] sm:$0xff]
        %v2523 = vld [vmem:[%s2477 + $0x168] sm:$0xff]
        %v2524 = vld [vmem:[%s2477 + $0x170] sm:$0xff]
        %v2525 = vld [vmem:[%s2477 + $0x178] sm:$0xff]
        %v2526 = vld [vmem:[%s2477 + $0x180] sm:$0xff]
        %v2527 = vld [vmem:[%s2477 + $0x188] sm:$0xff]
        %v2528 = vld [vmem:[%s2477 + $0x190] sm:$0xff]
        %v2529 = vld [vmem:[%s2477 + $0x198] sm:$0xff]
        %v2530 = vld [vmem:[%s2477 + $0x1a0] sm:$0xff]
        %v2531 = vld [vmem:[%s2477 + $0x1a8] sm:$0xff]
        %v2532 = vld [vmem:[%s2477 + $0x1b0] sm:$0xff]
        %v2533 = vld [vmem:[%s2477 + $0x1b8] sm:$0xff]
        %v2534 = vld [vmem:[%s2477 + $0x1c0] sm:$0xff]
        %v2535 = vld [vmem:[%s2477 + $0x1c8] sm:$0xff]
        %v2536 = vld [vmem:[%s2477 + $0x1d0] sm:$0xff]
        %v2537 = vld [vmem:[%s2477 + $0x1d8] sm:$0xff]
        %v2538 = vld [vmem:[%s2477 + $0x1e0] sm:$0xff]
        %v2539 = vld [vmem:[%s2477 + $0x1e8] sm:$0xff]
        %v2540 = vld [vmem:[%s2477 + $0x1f0] sm:$0xff]
        %v2541 = vld [vmem:[%s2477 + $0x1f8] sm:$0xff]
        %v2542 = vld [vmem:[%s2477 + $0x200] sm:$0xff]
        %v2543 = vld [vmem:[%s2477 + $0x208] sm:$0xff]
        %v2544 = vld [vmem:[%s2477 + $0x210] sm:$0xff]
        %v2545 = vld [vmem:[%s2477 + $0x218] sm:$0xff]
        %v2546 = vld [vmem:[%s2477 + $0x220] sm:$0xff]
        %v2547 = vld [vmem:[%s2477 + $0x228] sm:$0xff]
        %v2548 = vld [vmem:[%s2477 + $0x230] sm:$0xff]
        %v2549 = vld [vmem:[%s2477 + $0x238] sm:$0xff]
        %v2550 = vld [vmem:[%s2477 + $0x240] sm:$0xff]
        %v2551 = vld [vmem:[%s2477 + $0x248] sm:$0xff]
        %v2552 = vld [vmem:[%s2477 + $0x250] sm:$0xff]
        %v2553 = vld [vmem:[%s2477 + $0x258] sm:$0xff]
        %v2554 = vld [vmem:[%s2477 + $0x260] sm:$0xff]
        %v2555 = vld [vmem:[%s2477 + $0x268] sm:$0xff]
        %v2556 = vld [vmem:[%s2477 + $0x270] sm:$0xff]
        %v2557 = vld [vmem:[%s2477 + $0x278] sm:$0xff]
        %v2558 = vld [vmem:[%s2477 + $0x280] sm:$0xff]
        %v2559 = vld [vmem:[%s2477 + $0x288] sm:$0xff]
        %v2560 = vld [vmem:[%s2477 + $0x290] sm:$0xff]
        %v2561 = vld [vmem:[%s2477 + $0x298] sm:$0xff]
        %v2562 = vld [vmem:[%s2477 + $0x2a0] sm:$0xff]
        %v2563 = vld [vmem:[%s2477 + $0x2a8] sm:$0xff]
        %v2564 = vld [vmem:[%s2477 + $0x2b0] sm:$0xff]
        %v2565 = vld [vmem:[%s2477 + $0x2b8] sm:$0xff]
        %v2566 = vld [vmem:[%s2477 + $0x2c0] sm:$0xff]
        %v2567 = vld [vmem:[%s2477 + $0x2c8] sm:$0xff]
        %v2568 = vld [vmem:[%s2477 + $0x2d0] sm:$0xff]
        %v2569 = vld [vmem:[%s2477 + $0x2d8] sm:$0xff]
        %v2570 = vld [vmem:[%s2477 + $0x2e0] sm:$0xff]
        %v2571 = vld [vmem:[%s2477 + $0x2e8] sm:$0xff]
        %v2572 = vld [vmem:[%s2477 + $0x2f0] sm:$0xff]
        %v2573 = vld [vmem:[%s2477 + $0x2f8] sm:$0xff]
        %v2574 = vld [vmem:[%s2477 + $0x300] sm:$0xff]
        %v2575 = vld [vmem:[%s2477 + $0x308] sm:$0xff]
        %v2576 = vld [vmem:[%s2477 + $0x310] sm:$0xff]
        %v2577 = vld [vmem:[%s2477 + $0x318] sm:$0xff]
        %v2578 = vld [vmem:[%s2477 + $0x320] sm:$0xff]
        %v2579 = vld [vmem:[%s2477 + $0x328] sm:$0xff]
        %v2580 = vld [vmem:[%s2477 + $0x330] sm:$0xff]
        %v2581 = vld [vmem:[%s2477 + $0x338] sm:$0xff]
        %v2582 = vld [vmem:[%s2477 + $0x340] sm:$0xff]
        %v2583 = vld [vmem:[%s2477 + $0x348] sm:$0xff]
        %v2584 = vld [vmem:[%s2477 + $0x350] sm:$0xff]
        %v2585 = vld [vmem:[%s2477 + $0x358] sm:$0xff]
        %v2586 = vld [vmem:[%s2477 + $0x360] sm:$0xff]
        %v2587 = vld [vmem:[%s2477 + $0x368] sm:$0xff]
        %v2588 = vld [vmem:[%s2477 + $0x370] sm:$0xff]
        %v2589 = vld [vmem:[%s2477 + $0x378] sm:$0xff]
        %v2590 = vld [vmem:[%s2477 + $0x380] sm:$0xff]
        %v2591 = vld [vmem:[%s2477 + $0x388] sm:$0xff]
        %v2592 = vld [vmem:[%s2477 + $0x390] sm:$0xff]
        %v2593 = vld [vmem:[%s2477 + $0x398] sm:$0xff]
        %v2594 = vld [vmem:[%s2477 + $0x3a0] sm:$0xff]
        %v2595 = vld [vmem:[%s2477 + $0x3a8] sm:$0xff]
        %v2596 = vld [vmem:[%s2477 + $0x3b0] sm:$0xff]
        %v2597 = vld [vmem:[%s2477 + $0x3b8] sm:$0xff]
        %v2598 = vld [vmem:[%s2477 + $0x3c0] sm:$0xff]
        %v2599 = vld [vmem:[%s2477 + $0x3c8] sm:$0xff]
        %v2600 = vld [vmem:[%s2477 + $0x3d0] sm:$0xff]
        %v2601 = vld [vmem:[%s2477 + $0x3d8] sm:$0xff]
        %v2602 = vld [vmem:[%s2477 + $0x3e0] sm:$0xff]
        %v2603 = vld [vmem:[%s2477 + $0x3e8] sm:$0xff]
        %v2604 = vld [vmem:[%s2477 + $0x3f0] sm:$0xff]
        %v2605 = vld [vmem:[%s2477 + $0x3f8] sm:$0xff]
        %s2606 = scalar_lea.vmem %s614, 2 [#allocation10]
        %v2607 = vld [vmem:[%s2606] ss:$4 sm:$0x3]
        %v2609 = vlaneseq
        %v2610 = vshrl.u32 %v2609, 7
        %v2611 = vsub.s32 0, %v2610
        %v2612 = vrot.slane %v2607, %v2611
        %v2613 = vlaneseq
        %v2614 = vshrl.u32 %v2613, 7
        %v2615 = vsub.s32 1, %v2614
        %v2616 = vrot.slane %v2607, %v2615
        %2619 = vmatprep.subr.mxu0 %v2479
        %2620 = vmatpush1.xpose.msra.mxu0 %v2478
        %2621 = vmatprep.subr.mxu0 %v2483
        %2622 = vmatpush1.xpose.msra.mxu0 %v2482
        %2623 = vmatprep.subr.mxu0 %v2487
        %2624 = vmatpush1.xpose.msra.mxu0 %v2486
        %2625 = vmatprep.subr.mxu0 %v2491
        %2626 = vmatpush1.xpose.msra.mxu0 %v2490
        %2627 = vmatprep.subr.mxu0 %v2495
        %2628 = vmatpush1.xpose.msra.mxu0 %v2494
        %2629 = vmatprep.subr.mxu0 %v2499
        %2630 = vmatpush1.xpose.msra.mxu0 %v2498
        %2631 = vmatprep.subr.mxu0 %v2503
        %2632 = vmatpush1.xpose.msra.mxu0 %v2502
        %2633 = vmatprep.subr.mxu0 %v2507
        %2634 = vmatpush1.xpose.msra.mxu0 %v2506
        %2635 = vmatprep.subr.mxu0 %v2511
        %2636 = vmatpush1.xpose.msra.mxu0 %v2510
        %2637 = vmatprep.subr.mxu0 %v2515
        %2638 = vmatpush1.xpose.msra.mxu0 %v2514
        %2639 = vmatprep.subr.mxu0 %v2519
        %2640 = vmatpush1.xpose.msra.mxu0 %v2518
        %2641 = vmatprep.subr.mxu0 %v2523
        %2642 = vmatpush1.xpose.msra.mxu0 %v2522
        %2643 = vmatprep.subr.mxu0 %v2527
        %2644 = vmatpush1.xpose.msra.mxu0 %v2526
        %2645 = vmatprep.subr.mxu0 %v2531
        %2646 = vmatpush1.xpose.msra.mxu0 %v2530
        %2647 = vmatprep.subr.mxu0 %v2535
        %2648 = vmatpush1.xpose.msra.mxu0 %v2534
        %2649 = vmatprep.subr.mxu0 %v2539
        %2650 = vmatpush1.xpose.msra.mxu0 %v2538
        %2651 = vmatprep.subr.mxu0 %v2543
        %2652 = vmatpush1.xpose.msra.mxu0 %v2542
        %2653 = vmatprep.subr.mxu0 %v2547
        %2654 = vmatpush1.xpose.msra.mxu0 %v2546
        %2655 = vmatprep.subr.mxu0 %v2551
        %2656 = vmatpush1.xpose.msra.mxu0 %v2550
        %2657 = vmatprep.subr.mxu0 %v2555
        %2658 = vmatpush1.xpose.msra.mxu0 %v2554
        %2659 = vmatprep.subr.mxu0 %v2559
        %2660 = vmatpush1.xpose.msra.mxu0 %v2558
        %2661 = vmatprep.subr.mxu0 %v2563
        %2662 = vmatpush1.xpose.msra.mxu0 %v2562
        %2663 = vmatprep.subr.mxu0 %v2567
        %2664 = vmatpush1.xpose.msra.mxu0 %v2566
        %2665 = vmatprep.subr.mxu0 %v2571
        %2666 = vmatpush1.xpose.msra.mxu0 %v2570
        %2667 = vmatprep.subr.mxu0 %v2575
        %2668 = vmatpush1.xpose.msra.mxu0 %v2574
        %2669 = vmatprep.subr.mxu0 %v2579
        %2670 = vmatpush1.xpose.msra.mxu0 %v2578
        %2671 = vmatprep.subr.mxu0 %v2583
        %2672 = vmatpush1.xpose.msra.mxu0 %v2582
        %2673 = vmatprep.subr.mxu0 %v2587
        %2674 = vmatpush1.xpose.msra.mxu0 %v2586
        %2675 = vmatprep.subr.mxu0 %v2591
        %2676 = vmatpush1.xpose.msra.mxu0 %v2590
        %2677 = vmatprep.subr.mxu0 %v2595
        %2678 = vmatpush1.xpose.msra.mxu0 %v2594
        %2679 = vmatprep.subr.mxu0 %v2599
        %2680 = vmatpush1.xpose.msra.mxu0 %v2598
        %2681 = vmatprep.subr.mxu0 %v2603
        %2682 = vmatpush1.xpose.msra.mxu0 %v2602
        %2683 = vmatprep.mubr.f32.mxu0 %v881
        %2684 = vmatmul.mubr.f32.gmra.mrb[0].mxu0 %v733
        %v2685 = vpop.f32.mrb[0].mxu0
        %v2686 = vadd.f32 %v2612, %v2685
        %v2687 = vpop.f32.mrb[0].mxu0
        %v2688 = vadd.f32 %v2616, %v2687
        %2689 = vdwg.mxu0
        %2690 = vmatprep.subr.mxu0 %v2481
        %2691 = vmatpush1.xpose.msra.mxu0 %v2480
        %2692 = vmatprep.subr.mxu0 %v2485
        %2693 = vmatpush1.xpose.msra.mxu0 %v2484
        %2694 = vmatprep.subr.mxu0 %v2489
        %2695 = vmatpush1.xpose.msra.mxu0 %v2488
        %2696 = vmatprep.subr.mxu0 %v2493
        %2697 = vmatpush1.xpose.msra.mxu0 %v2492
        %2698 = vmatprep.subr.mxu0 %v2497
        %2699 = vmatpush1.xpose.msra.mxu0 %v2496
        %2700 = vmatprep.subr.mxu0 %v2501
        %2701 = vmatpush1.xpose.msra.mxu0 %v2500
        %2702 = vmatprep.subr.mxu0 %v2505
        %2703 = vmatpush1.xpose.msra.mxu0 %v2504
        %2704 = vmatprep.subr.mxu0 %v2509
        %2705 = vmatpush1.xpose.msra.mxu0 %v2508
        %2706 = vmatprep.subr.mxu0 %v2513
        %2707 = vmatpush1.xpose.msra.mxu0 %v2512
        %2708 = vmatprep.subr.mxu0 %v2517
        %2709 = vmatpush1.xpose.msra.mxu0 %v2516
        %2710 = vmatprep.subr.mxu0 %v2521
        %2711 = vmatpush1.xpose.msra.mxu0 %v2520
        %2712 = vmatprep.subr.mxu0 %v2525
        %2713 = vmatpush1.xpose.msra.mxu0 %v2524
        %2714 = vmatprep.subr.mxu0 %v2529
        %2715 = vmatpush1.xpose.msra.mxu0 %v2528
        %2716 = vmatprep.subr.mxu0 %v2533
        %2717 = vmatpush1.xpose.msra.mxu0 %v2532
        %2718 = vmatprep.subr.mxu0 %v2537
        %2719 = vmatpush1.xpose.msra.mxu0 %v2536
        %2720 = vmatprep.subr.mxu0 %v2541
        %2721 = vmatpush1.xpose.msra.mxu0 %v2540
        %2722 = vmatprep.subr.mxu0 %v2545
        %2723 = vmatpush1.xpose.msra.mxu0 %v2544
        %2724 = vmatprep.subr.mxu0 %v2549
        %2725 = vmatpush1.xpose.msra.mxu0 %v2548
        %2726 = vmatprep.subr.mxu0 %v2553
        %2727 = vmatpush1.xpose.msra.mxu0 %v2552
        %2728 = vmatprep.subr.mxu0 %v2557
        %2729 = vmatpush1.xpose.msra.mxu0 %v2556
        %2730 = vmatprep.subr.mxu0 %v2561
        %2731 = vmatpush1.xpose.msra.mxu0 %v2560
        %2732 = vmatprep.subr.mxu0 %v2565
        %2733 = vmatpush1.xpose.msra.mxu0 %v2564
        %2734 = vmatprep.subr.mxu0 %v2569
        %2735 = vmatpush1.xpose.msra.mxu0 %v2568
        %2736 = vmatprep.subr.mxu0 %v2573
        %2737 = vmatpush1.xpose.msra.mxu0 %v2572
        %2738 = vmatprep.subr.mxu0 %v2577
        %2739 = vmatpush1.xpose.msra.mxu0 %v2576
        %2740 = vmatprep.subr.mxu0 %v2581
        %2741 = vmatpush1.xpose.msra.mxu0 %v2580
        %2742 = vmatprep.subr.mxu0 %v2585
        %2743 = vmatpush1.xpose.msra.mxu0 %v2584
        %2744 = vmatprep.subr.mxu0 %v2589
        %2745 = vmatpush1.xpose.msra.mxu0 %v2588
        %2746 = vmatprep.subr.mxu0 %v2593
        %2747 = vmatpush1.xpose.msra.mxu0 %v2592
        %2748 = vmatprep.subr.mxu0 %v2597
        %2749 = vmatpush1.xpose.msra.mxu0 %v2596
        %2750 = vmatprep.subr.mxu0 %v2601
        %2751 = vmatpush1.xpose.msra.mxu0 %v2600
        %2752 = vmatprep.subr.mxu0 %v2605
        %2753 = vmatpush1.xpose.msra.mxu0 %v2604
        %2754 = vmatprep.mubr.f32.mxu0 %v882
        %2755 = vmatmul.mubr.f32.gmra.mrb[0].mxu0 %v734
        %v2756 = vpop.f32.mrb[0].mxu0
        %v2757 = vadd.f32 %v2686, %v2756
        %v2758 = vpop.f32.mrb[0].mxu0
        %v2759 = vadd.f32 %v2688, %v2758
        %2760 = vdwg.mxu0
        %v2761 = vmax.f32 %v2757, 0.0
        %v2762 = vmax.f32 %v2759, 0.0
        %s2763 = scalar_lea.vmem %s623, 2048 [#allocation11]
        %v2764 = vld [vmem:[%s2763] sm:$0xff]
        %v2765 = vld [vmem:[%s2763 + $0x8] sm:$0xff]
        %v2766 = vld [vmem:[%s2763 + $0x10] sm:$0xff]
        %v2767 = vld [vmem:[%s2763 + $0x18] sm:$0xff]
        %v2768 = vld [vmem:[%s2763 + $0x20] sm:$0xff]
        %v2769 = vld [vmem:[%s2763 + $0x28] sm:$0xff]
        %v2770 = vld [vmem:[%s2763 + $0x30] sm:$0xff]
        %v2771 = vld [vmem:[%s2763 + $0x38] sm:$0xff]
        %v2772 = vld [vmem:[%s2763 + $0x40] sm:$0xff]
        %v2773 = vld [vmem:[%s2763 + $0x48] sm:$0xff]
        %v2774 = vld [vmem:[%s2763 + $0x50] sm:$0xff]
        %v2775 = vld [vmem:[%s2763 + $0x58] sm:$0xff]
        %v2776 = vld [vmem:[%s2763 + $0x60] sm:$0xff]
        %v2777 = vld [vmem:[%s2763 + $0x68] sm:$0xff]
        %v2778 = vld [vmem:[%s2763 + $0x70] sm:$0xff]
        %v2779 = vld [vmem:[%s2763 + $0x78] sm:$0xff]
        %v2780 = vld [vmem:[%s2763 + $0x80] sm:$0xff]
        %v2781 = vld [vmem:[%s2763 + $0x88] sm:$0xff]
        %v2782 = vld [vmem:[%s2763 + $0x90] sm:$0xff]
        %v2783 = vld [vmem:[%s2763 + $0x98] sm:$0xff]
        %v2784 = vld [vmem:[%s2763 + $0xa0] sm:$0xff]
        %v2785 = vld [vmem:[%s2763 + $0xa8] sm:$0xff]
        %v2786 = vld [vmem:[%s2763 + $0xb0] sm:$0xff]
        %v2787 = vld [vmem:[%s2763 + $0xb8] sm:$0xff]
        %v2788 = vld [vmem:[%s2763 + $0xc0] sm:$0xff]
        %v2789 = vld [vmem:[%s2763 + $0xc8] sm:$0xff]
        %v2790 = vld [vmem:[%s2763 + $0xd0] sm:$0xff]
        %v2791 = vld [vmem:[%s2763 + $0xd8] sm:$0xff]
        %v2792 = vld [vmem:[%s2763 + $0xe0] sm:$0xff]
        %v2793 = vld [vmem:[%s2763 + $0xe8] sm:$0xff]
        %v2794 = vld [vmem:[%s2763 + $0xf0] sm:$0xff]
        %v2795 = vld [vmem:[%s2763 + $0xf8] sm:$0xff]
        %v2796 = vld [vmem:[%s2763 + $0x100] sm:$0xff]
        %v2797 = vld [vmem:[%s2763 + $0x108] sm:$0xff]
        %v2798 = vld [vmem:[%s2763 + $0x110] sm:$0xff]
        %v2799 = vld [vmem:[%s2763 + $0x118] sm:$0xff]
        %v2800 = vld [vmem:[%s2763 + $0x120] sm:$0xff]
        %v2801 = vld [vmem:[%s2763 + $0x128] sm:$0xff]
        %v2802 = vld [vmem:[%s2763 + $0x130] sm:$0xff]
        %v2803 = vld [vmem:[%s2763 + $0x138] sm:$0xff]
        %v2804 = vld [vmem:[%s2763 + $0x140] sm:$0xff]
        %v2805 = vld [vmem:[%s2763 + $0x148] sm:$0xff]
        %v2806 = vld [vmem:[%s2763 + $0x150] sm:$0xff]
        %v2807 = vld [vmem:[%s2763 + $0x158] sm:$0xff]
        %v2808 = vld [vmem:[%s2763 + $0x160] sm:$0xff]
        %v2809 = vld [vmem:[%s2763 + $0x168] sm:$0xff]
        %v2810 = vld [vmem:[%s2763 + $0x170] sm:$0xff]
        %v2811 = vld [vmem:[%s2763 + $0x178] sm:$0xff]
        %v2812 = vld [vmem:[%s2763 + $0x180] sm:$0xff]
        %v2813 = vld [vmem:[%s2763 + $0x188] sm:$0xff]
        %v2814 = vld [vmem:[%s2763 + $0x190] sm:$0xff]
        %v2815 = vld [vmem:[%s2763 + $0x198] sm:$0xff]
        %v2816 = vld [vmem:[%s2763 + $0x1a0] sm:$0xff]
        %v2817 = vld [vmem:[%s2763 + $0x1a8] sm:$0xff]
        %v2818 = vld [vmem:[%s2763 + $0x1b0] sm:$0xff]
        %v2819 = vld [vmem:[%s2763 + $0x1b8] sm:$0xff]
        %v2820 = vld [vmem:[%s2763 + $0x1c0] sm:$0xff]
        %v2821 = vld [vmem:[%s2763 + $0x1c8] sm:$0xff]
        %v2822 = vld [vmem:[%s2763 + $0x1d0] sm:$0xff]
        %v2823 = vld [vmem:[%s2763 + $0x1d8] sm:$0xff]
        %v2824 = vld [vmem:[%s2763 + $0x1e0] sm:$0xff]
        %v2825 = vld [vmem:[%s2763 + $0x1e8] sm:$0xff]
        %v2826 = vld [vmem:[%s2763 + $0x1f0] sm:$0xff]
        %v2827 = vld [vmem:[%s2763 + $0x1f8] sm:$0xff]
        %v2828 = vld [vmem:[%s2763 + $0x200] sm:$0xff]
        %v2829 = vld [vmem:[%s2763 + $0x208] sm:$0xff]
        %v2830 = vld [vmem:[%s2763 + $0x210] sm:$0xff]
        %v2831 = vld [vmem:[%s2763 + $0x218] sm:$0xff]
        %v2832 = vld [vmem:[%s2763 + $0x220] sm:$0xff]
        %v2833 = vld [vmem:[%s2763 + $0x228] sm:$0xff]
        %v2834 = vld [vmem:[%s2763 + $0x230] sm:$0xff]
        %v2835 = vld [vmem:[%s2763 + $0x238] sm:$0xff]
        %v2836 = vld [vmem:[%s2763 + $0x240] sm:$0xff]
        %v2837 = vld [vmem:[%s2763 + $0x248] sm:$0xff]
        %v2838 = vld [vmem:[%s2763 + $0x250] sm:$0xff]
        %v2839 = vld [vmem:[%s2763 + $0x258] sm:$0xff]
        %v2840 = vld [vmem:[%s2763 + $0x260] sm:$0xff]
        %v2841 = vld [vmem:[%s2763 + $0x268] sm:$0xff]
        %v2842 = vld [vmem:[%s2763 + $0x270] sm:$0xff]
        %v2843 = vld [vmem:[%s2763 + $0x278] sm:$0xff]
        %v2844 = vld [vmem:[%s2763 + $0x280] sm:$0xff]
        %v2845 = vld [vmem:[%s2763 + $0x288] sm:$0xff]
        %v2846 = vld [vmem:[%s2763 + $0x290] sm:$0xff]
        %v2847 = vld [vmem:[%s2763 + $0x298] sm:$0xff]
        %v2848 = vld [vmem:[%s2763 + $0x2a0] sm:$0xff]
        %v2849 = vld [vmem:[%s2763 + $0x2a8] sm:$0xff]
        %v2850 = vld [vmem:[%s2763 + $0x2b0] sm:$0xff]
        %v2851 = vld [vmem:[%s2763 + $0x2b8] sm:$0xff]
        %v2852 = vld [vmem:[%s2763 + $0x2c0] sm:$0xff]
        %v2853 = vld [vmem:[%s2763 + $0x2c8] sm:$0xff]
        %v2854 = vld [vmem:[%s2763 + $0x2d0] sm:$0xff]
        %v2855 = vld [vmem:[%s2763 + $0x2d8] sm:$0xff]
        %v2856 = vld [vmem:[%s2763 + $0x2e0] sm:$0xff]
        %v2857 = vld [vmem:[%s2763 + $0x2e8] sm:$0xff]
        %v2858 = vld [vmem:[%s2763 + $0x2f0] sm:$0xff]
        %v2859 = vld [vmem:[%s2763 + $0x2f8] sm:$0xff]
        %v2860 = vld [vmem:[%s2763 + $0x300] sm:$0xff]
        %v2861 = vld [vmem:[%s2763 + $0x308] sm:$0xff]
        %v2862 = vld [vmem:[%s2763 + $0x310] sm:$0xff]
        %v2863 = vld [vmem:[%s2763 + $0x318] sm:$0xff]
        %v2864 = vld [vmem:[%s2763 + $0x320] sm:$0xff]
        %v2865 = vld [vmem:[%s2763 + $0x328] sm:$0xff]
        %v2866 = vld [vmem:[%s2763 + $0x330] sm:$0xff]
        %v2867 = vld [vmem:[%s2763 + $0x338] sm:$0xff]
        %v2868 = vld [vmem:[%s2763 + $0x340] sm:$0xff]
        %v2869 = vld [vmem:[%s2763 + $0x348] sm:$0xff]
        %v2870 = vld [vmem:[%s2763 + $0x350] sm:$0xff]
        %v2871 = vld [vmem:[%s2763 + $0x358] sm:$0xff]
        %v2872 = vld [vmem:[%s2763 + $0x360] sm:$0xff]
        %v2873 = vld [vmem:[%s2763 + $0x368] sm:$0xff]
        %v2874 = vld [vmem:[%s2763 + $0x370] sm:$0xff]
        %v2875 = vld [vmem:[%s2763 + $0x378] sm:$0xff]
        %v2876 = vld [vmem:[%s2763 + $0x380] sm:$0xff]
        %v2877 = vld [vmem:[%s2763 + $0x388] sm:$0xff]
        %v2878 = vld [vmem:[%s2763 + $0x390] sm:$0xff]
        %v2879 = vld [vmem:[%s2763 + $0x398] sm:$0xff]
        %v2880 = vld [vmem:[%s2763 + $0x3a0] sm:$0xff]
        %v2881 = vld [vmem:[%s2763 + $0x3a8] sm:$0xff]
        %v2882 = vld [vmem:[%s2763 + $0x3b0] sm:$0xff]
        %v2883 = vld [vmem:[%s2763 + $0x3b8] sm:$0xff]
        %v2884 = vld [vmem:[%s2763 + $0x3c0] sm:$0xff]
        %v2885 = vld [vmem:[%s2763 + $0x3c8] sm:$0xff]
        %v2886 = vld [vmem:[%s2763 + $0x3d0] sm:$0xff]
        %v2887 = vld [vmem:[%s2763 + $0x3d8] sm:$0xff]
        %v2888 = vld [vmem:[%s2763 + $0x3e0] sm:$0xff]
        %v2889 = vld [vmem:[%s2763 + $0x3e8] sm:$0xff]
        %v2890 = vld [vmem:[%s2763 + $0x3f0] sm:$0xff]
        %v2891 = vld [vmem:[%s2763 + $0x3f8] sm:$0xff]
        %s2892 = scalar_lea.vmem %s632, 2 [#allocation13]
        %v2893 = vld [vmem:[%s2892] ss:$4 sm:$0x3]
        %v2895 = vlaneseq
        %v2896 = vshrl.u32 %v2895, 7
        %v2897 = vsub.s32 0, %v2896
        %v2898 = vrot.slane %v2893, %v2897
        %v2899 = vlaneseq
        %v2900 = vshrl.u32 %v2899, 7
        %v2901 = vsub.s32 1, %v2900
        %v2902 = vrot.slane %v2893, %v2901
        %2905 = vmatprep.subr.mxu0 %v2765
        %2906 = vmatpush1.xpose.msra.mxu0 %v2764
        %2907 = vmatprep.subr.mxu0 %v2769
        %2908 = vmatpush1.xpose.msra.mxu0 %v2768
        %2909 = vmatprep.subr.mxu0 %v2773
        %2910 = vmatpush1.xpose.msra.mxu0 %v2772
        %2911 = vmatprep.subr.mxu0 %v2777
        %2912 = vmatpush1.xpose.msra.mxu0 %v2776
        %2913 = vmatprep.subr.mxu0 %v2781
        %2914 = vmatpush1.xpose.msra.mxu0 %v2780
        %2915 = vmatprep.subr.mxu0 %v2785
        %2916 = vmatpush1.xpose.msra.mxu0 %v2784
        %2917 = vmatprep.subr.mxu0 %v2789
        %2918 = vmatpush1.xpose.msra.mxu0 %v2788
        %2919 = vmatprep.subr.mxu0 %v2793
        %2920 = vmatpush1.xpose.msra.mxu0 %v2792
        %2921 = vmatprep.subr.mxu0 %v2797
        %2922 = vmatpush1.xpose.msra.mxu0 %v2796
        %2923 = vmatprep.subr.mxu0 %v2801
        %2924 = vmatpush1.xpose.msra.mxu0 %v2800
        %2925 = vmatprep.subr.mxu0 %v2805
        %2926 = vmatpush1.xpose.msra.mxu0 %v2804
        %2927 = vmatprep.subr.mxu0 %v2809
        %2928 = vmatpush1.xpose.msra.mxu0 %v2808
        %2929 = vmatprep.subr.mxu0 %v2813
        %2930 = vmatpush1.xpose.msra.mxu0 %v2812
        %2931 = vmatprep.subr.mxu0 %v2817
        %2932 = vmatpush1.xpose.msra.mxu0 %v2816
        %2933 = vmatprep.subr.mxu0 %v2821
        %2934 = vmatpush1.xpose.msra.mxu0 %v2820
        %2935 = vmatprep.subr.mxu0 %v2825
        %2936 = vmatpush1.xpose.msra.mxu0 %v2824
        %2937 = vmatprep.subr.mxu0 %v2829
        %2938 = vmatpush1.xpose.msra.mxu0 %v2828
        %2939 = vmatprep.subr.mxu0 %v2833
        %2940 = vmatpush1.xpose.msra.mxu0 %v2832
        %2941 = vmatprep.subr.mxu0 %v2837
        %2942 = vmatpush1.xpose.msra.mxu0 %v2836
        %2943 = vmatprep.subr.mxu0 %v2841
        %2944 = vmatpush1.xpose.msra.mxu0 %v2840
        %2945 = vmatprep.subr.mxu0 %v2845
        %2946 = vmatpush1.xpose.msra.mxu0 %v2844
        %2947 = vmatprep.subr.mxu0 %v2849
        %2948 = vmatpush1.xpose.msra.mxu0 %v2848
        %2949 = vmatprep.subr.mxu0 %v2853
        %2950 = vmatpush1.xpose.msra.mxu0 %v2852
        %2951 = vmatprep.subr.mxu0 %v2857
        %2952 = vmatpush1.xpose.msra.mxu0 %v2856
        %2953 = vmatprep.subr.mxu0 %v2861
        %2954 = vmatpush1.xpose.msra.mxu0 %v2860
        %2955 = vmatprep.subr.mxu0 %v2865
        %2956 = vmatpush1.xpose.msra.mxu0 %v2864
        %2957 = vmatprep.subr.mxu0 %v2869
        %2958 = vmatpush1.xpose.msra.mxu0 %v2868
        %2959 = vmatprep.subr.mxu0 %v2873
        %2960 = vmatpush1.xpose.msra.mxu0 %v2872
        %2961 = vmatprep.subr.mxu0 %v2877
        %2962 = vmatpush1.xpose.msra.mxu0 %v2876
        %2963 = vmatprep.subr.mxu0 %v2881
        %2964 = vmatpush1.xpose.msra.mxu0 %v2880
        %2965 = vmatprep.subr.mxu0 %v2885
        %2966 = vmatpush1.xpose.msra.mxu0 %v2884
        %2967 = vmatprep.subr.mxu0 %v2889
        %2968 = vmatpush1.xpose.msra.mxu0 %v2888
        %2969 = vmatprep.mubr.f32.mxu0 %v1171
        %2970 = vmatmul.mubr.f32.gmra.mrb[0].mxu0 %v735
        %v2971 = vpop.f32.mrb[0].mxu0
        %v2972 = vadd.f32 %v2898, %v2971
        %v2973 = vpop.f32.mrb[0].mxu0
        %v2974 = vadd.f32 %v2902, %v2973
        %2975 = vdwg.mxu0
        %2976 = vmatprep.subr.mxu0 %v2767
        %2977 = vmatpush1.xpose.msra.mxu0 %v2766
        %2978 = vmatprep.subr.mxu0 %v2771
        %2979 = vmatpush1.xpose.msra.mxu0 %v2770
        %2980 = vmatprep.subr.mxu0 %v2775
        %2981 = vmatpush1.xpose.msra.mxu0 %v2774
        %2982 = vmatprep.subr.mxu0 %v2779
        %2983 = vmatpush1.xpose.msra.mxu0 %v2778
        %2984 = vmatprep.subr.mxu0 %v2783
        %2985 = vmatpush1.xpose.msra.mxu0 %v2782
        %2986 = vmatprep.subr.mxu0 %v2787
        %2987 = vmatpush1.xpose.msra.mxu0 %v2786
        %2988 = vmatprep.subr.mxu0 %v2791
        %2989 = vmatpush1.xpose.msra.mxu0 %v2790
        %2990 = vmatprep.subr.mxu0 %v2795
        %2991 = vmatpush1.xpose.msra.mxu0 %v2794
        %2992 = vmatprep.subr.mxu0 %v2799
        %2993 = vmatpush1.xpose.msra.mxu0 %v2798
        %2994 = vmatprep.subr.mxu0 %v2803
        %2995 = vmatpush1.xpose.msra.mxu0 %v2802
        %2996 = vmatprep.subr.mxu0 %v2807
        %2997 = vmatpush1.xpose.msra.mxu0 %v2806
        %2998 = vmatprep.subr.mxu0 %v2811
        %2999 = vmatpush1.xpose.msra.mxu0 %v2810
        %3000 = vmatprep.subr.mxu0 %v2815
        %3001 = vmatpush1.xpose.msra.mxu0 %v2814
        %3002 = vmatprep.subr.mxu0 %v2819
        %3003 = vmatpush1.xpose.msra.mxu0 %v2818
        %3004 = vmatprep.subr.mxu0 %v2823
        %3005 = vmatpush1.xpose.msra.mxu0 %v2822
        %3006 = vmatprep.subr.mxu0 %v2827
        %3007 = vmatpush1.xpose.msra.mxu0 %v2826
        %3008 = vmatprep.subr.mxu0 %v2831
        %3009 = vmatpush1.xpose.msra.mxu0 %v2830
        %3010 = vmatprep.subr.mxu0 %v2835
        %3011 = vmatpush1.xpose.msra.mxu0 %v2834
        %3012 = vmatprep.subr.mxu0 %v2839
        %3013 = vmatpush1.xpose.msra.mxu0 %v2838
        %3014 = vmatprep.subr.mxu0 %v2843
        %3015 = vmatpush1.xpose.msra.mxu0 %v2842
        %3016 = vmatprep.subr.mxu0 %v2847
        %3017 = vmatpush1.xpose.msra.mxu0 %v2846
        %3018 = vmatprep.subr.mxu0 %v2851
        %3019 = vmatpush1.xpose.msra.mxu0 %v2850
        %3020 = vmatprep.subr.mxu0 %v2855
        %3021 = vmatpush1.xpose.msra.mxu0 %v2854
        %3022 = vmatprep.subr.mxu0 %v2859
        %3023 = vmatpush1.xpose.msra.mxu0 %v2858
        %3024 = vmatprep.subr.mxu0 %v2863
        %3025 = vmatpush1.xpose.msra.mxu0 %v2862
        %3026 = vmatprep.subr.mxu0 %v2867
        %3027 = vmatpush1.xpose.msra.mxu0 %v2866
        %3028 = vmatprep.subr.mxu0 %v2871
        %3029 = vmatpush1.xpose.msra.mxu0 %v2870
        %3030 = vmatprep.subr.mxu0 %v2875
        %3031 = vmatpush1.xpose.msra.mxu0 %v2874
        %3032 = vmatprep.subr.mxu0 %v2879
        %3033 = vmatpush1.xpose.msra.mxu0 %v2878
        %3034 = vmatprep.subr.mxu0 %v2883
        %3035 = vmatpush1.xpose.msra.mxu0 %v2882
        %3036 = vmatprep.subr.mxu0 %v2887
        %3037 = vmatpush1.xpose.msra.mxu0 %v2886
        %3038 = vmatprep.subr.mxu0 %v2891
        %3039 = vmatpush1.xpose.msra.mxu0 %v2890
        %3040 = vmatprep.mubr.f32.mxu0 %v1172
        %3041 = vmatmul.mubr.f32.gmra.mrb[0].mxu0 %v736
        %v3042 = vpop.f32.mrb[0].mxu0
        %v3043 = vadd.f32 %v2972, %v3042
        %v3044 = vpop.f32.mrb[0].mxu0
        %v3045 = vadd.f32 %v2974, %v3044
        %3046 = vdwg.mxu0
        %v3047 = vmax.f32 %v3043, 0.0
        %v3048 = vmax.f32 %v3045, 0.0
        %s3049 = scalar_lea.vmem %s641, 2048 [#allocation14]
        %v3050 = vld [vmem:[%s3049] sm:$0xff]
        %v3051 = vld [vmem:[%s3049 + $0x8] sm:$0xff]
        %v3052 = vld [vmem:[%s3049 + $0x10] sm:$0xff]
        %v3053 = vld [vmem:[%s3049 + $0x18] sm:$0xff]
        %v3054 = vld [vmem:[%s3049 + $0x20] sm:$0xff]
        %v3055 = vld [vmem:[%s3049 + $0x28] sm:$0xff]
        %v3056 = vld [vmem:[%s3049 + $0x30] sm:$0xff]
        %v3057 = vld [vmem:[%s3049 + $0x38] sm:$0xff]
        %v3058 = vld [vmem:[%s3049 + $0x40] sm:$0xff]
        %v3059 = vld [vmem:[%s3049 + $0x48] sm:$0xff]
        %v3060 = vld [vmem:[%s3049 + $0x50] sm:$0xff]
        %v3061 = vld [vmem:[%s3049 + $0x58] sm:$0xff]
        %v3062 = vld [vmem:[%s3049 + $0x60] sm:$0xff]
        %v3063 = vld [vmem:[%s3049 + $0x68] sm:$0xff]
        %v3064 = vld [vmem:[%s3049 + $0x70] sm:$0xff]
        %v3065 = vld [vmem:[%s3049 + $0x78] sm:$0xff]
        %v3066 = vld [vmem:[%s3049 + $0x80] sm:$0xff]
        %v3067 = vld [vmem:[%s3049 + $0x88] sm:$0xff]
        %v3068 = vld [vmem:[%s3049 + $0x90] sm:$0xff]
        %v3069 = vld [vmem:[%s3049 + $0x98] sm:$0xff]
        %v3070 = vld [vmem:[%s3049 + $0xa0] sm:$0xff]
        %v3071 = vld [vmem:[%s3049 + $0xa8] sm:$0xff]
        %v3072 = vld [vmem:[%s3049 + $0xb0] sm:$0xff]
        %v3073 = vld [vmem:[%s3049 + $0xb8] sm:$0xff]
        %v3074 = vld [vmem:[%s3049 + $0xc0] sm:$0xff]
        %v3075 = vld [vmem:[%s3049 + $0xc8] sm:$0xff]
        %v3076 = vld [vmem:[%s3049 + $0xd0] sm:$0xff]
        %v3077 = vld [vmem:[%s3049 + $0xd8] sm:$0xff]
        %v3078 = vld [vmem:[%s3049 + $0xe0] sm:$0xff]
        %v3079 = vld [vmem:[%s3049 + $0xe8] sm:$0xff]
        %v3080 = vld [vmem:[%s3049 + $0xf0] sm:$0xff]
        %v3081 = vld [vmem:[%s3049 + $0xf8] sm:$0xff]
        %v3082 = vld [vmem:[%s3049 + $0x100] sm:$0xff]
        %v3083 = vld [vmem:[%s3049 + $0x108] sm:$0xff]
        %v3084 = vld [vmem:[%s3049 + $0x110] sm:$0xff]
        %v3085 = vld [vmem:[%s3049 + $0x118] sm:$0xff]
        %v3086 = vld [vmem:[%s3049 + $0x120] sm:$0xff]
        %v3087 = vld [vmem:[%s3049 + $0x128] sm:$0xff]
        %v3088 = vld [vmem:[%s3049 + $0x130] sm:$0xff]
        %v3089 = vld [vmem:[%s3049 + $0x138] sm:$0xff]
        %v3090 = vld [vmem:[%s3049 + $0x140] sm:$0xff]
        %v3091 = vld [vmem:[%s3049 + $0x148] sm:$0xff]
        %v3092 = vld [vmem:[%s3049 + $0x150] sm:$0xff]
        %v3093 = vld [vmem:[%s3049 + $0x158] sm:$0xff]
        %v3094 = vld [vmem:[%s3049 + $0x160] sm:$0xff]
        %v3095 = vld [vmem:[%s3049 + $0x168] sm:$0xff]
        %v3096 = vld [vmem:[%s3049 + $0x170] sm:$0xff]
        %v3097 = vld [vmem:[%s3049 + $0x178] sm:$0xff]
        %v3098 = vld [vmem:[%s3049 + $0x180] sm:$0xff]
        %v3099 = vld [vmem:[%s3049 + $0x188] sm:$0xff]
        %v3100 = vld [vmem:[%s3049 + $0x190] sm:$0xff]
        %v3101 = vld [vmem:[%s3049 + $0x198] sm:$0xff]
        %v3102 = vld [vmem:[%s3049 + $0x1a0] sm:$0xff]
        %v3103 = vld [vmem:[%s3049 + $0x1a8] sm:$0xff]
        %v3104 = vld [vmem:[%s3049 + $0x1b0] sm:$0xff]
        %v3105 = vld [vmem:[%s3049 + $0x1b8] sm:$0xff]
        %v3106 = vld [vmem:[%s3049 + $0x1c0] sm:$0xff]
        %v3107 = vld [vmem:[%s3049 + $0x1c8] sm:$0xff]
        %v3108 = vld [vmem:[%s3049 + $0x1d0] sm:$0xff]
        %v3109 = vld [vmem:[%s3049 + $0x1d8] sm:$0xff]
        %v3110 = vld [vmem:[%s3049 + $0x1e0] sm:$0xff]
        %v3111 = vld [vmem:[%s3049 + $0x1e8] sm:$0xff]
        %v3112 = vld [vmem:[%s3049 + $0x1f0] sm:$0xff]
        %v3113 = vld [vmem:[%s3049 + $0x1f8] sm:$0xff]
        %v3114 = vld [vmem:[%s3049 + $0x200] sm:$0xff]
        %v3115 = vld [vmem:[%s3049 + $0x208] sm:$0xff]
        %v3116 = vld [vmem:[%s3049 + $0x210] sm:$0xff]
        %v3117 = vld [vmem:[%s3049 + $0x218] sm:$0xff]
        %v3118 = vld [vmem:[%s3049 + $0x220] sm:$0xff]
        %v3119 = vld [vmem:[%s3049 + $0x228] sm:$0xff]
        %v3120 = vld [vmem:[%s3049 + $0x230] sm:$0xff]
        %v3121 = vld [vmem:[%s3049 + $0x238] sm:$0xff]
        %v3122 = vld [vmem:[%s3049 + $0x240] sm:$0xff]
        %v3123 = vld [vmem:[%s3049 + $0x248] sm:$0xff]
        %v3124 = vld [vmem:[%s3049 + $0x250] sm:$0xff]
        %v3125 = vld [vmem:[%s3049 + $0x258] sm:$0xff]
        %v3126 = vld [vmem:[%s3049 + $0x260] sm:$0xff]
        %v3127 = vld [vmem:[%s3049 + $0x268] sm:$0xff]
        %v3128 = vld [vmem:[%s3049 + $0x270] sm:$0xff]
        %v3129 = vld [vmem:[%s3049 + $0x278] sm:$0xff]
        %v3130 = vld [vmem:[%s3049 + $0x280] sm:$0xff]
        %v3131 = vld [vmem:[%s3049 + $0x288] sm:$0xff]
        %v3132 = vld [vmem:[%s3049 + $0x290] sm:$0xff]
        %v3133 = vld [vmem:[%s3049 + $0x298] sm:$0xff]
        %v3134 = vld [vmem:[%s3049 + $0x2a0] sm:$0xff]
        %v3135 = vld [vmem:[%s3049 + $0x2a8] sm:$0xff]
        %v3136 = vld [vmem:[%s3049 + $0x2b0] sm:$0xff]
        %v3137 = vld [vmem:[%s3049 + $0x2b8] sm:$0xff]
        %v3138 = vld [vmem:[%s3049 + $0x2c0] sm:$0xff]
        %v3139 = vld [vmem:[%s3049 + $0x2c8] sm:$0xff]
        %v3140 = vld [vmem:[%s3049 + $0x2d0] sm:$0xff]
        %v3141 = vld [vmem:[%s3049 + $0x2d8] sm:$0xff]
        %v3142 = vld [vmem:[%s3049 + $0x2e0] sm:$0xff]
        %v3143 = vld [vmem:[%s3049 + $0x2e8] sm:$0xff]
        %v3144 = vld [vmem:[%s3049 + $0x2f0] sm:$0xff]
        %v3145 = vld [vmem:[%s3049 + $0x2f8] sm:$0xff]
        %v3146 = vld [vmem:[%s3049 + $0x300] sm:$0xff]
        %v3147 = vld [vmem:[%s3049 + $0x308] sm:$0xff]
        %v3148 = vld [vmem:[%s3049 + $0x310] sm:$0xff]
        %v3149 = vld [vmem:[%s3049 + $0x318] sm:$0xff]
        %v3150 = vld [vmem:[%s3049 + $0x320] sm:$0xff]
        %v3151 = vld [vmem:[%s3049 + $0x328] sm:$0xff]
        %v3152 = vld [vmem:[%s3049 + $0x330] sm:$0xff]
        %v3153 = vld [vmem:[%s3049 + $0x338] sm:$0xff]
        %v3154 = vld [vmem:[%s3049 + $0x340] sm:$0xff]
        %v3155 = vld [vmem:[%s3049 + $0x348] sm:$0xff]
        %v3156 = vld [vmem:[%s3049 + $0x350] sm:$0xff]
        %v3157 = vld [vmem:[%s3049 + $0x358] sm:$0xff]
        %v3158 = vld [vmem:[%s3049 + $0x360] sm:$0xff]
        %v3159 = vld [vmem:[%s3049 + $0x368] sm:$0xff]
        %v3160 = vld [vmem:[%s3049 + $0x370] sm:$0xff]
        %v3161 = vld [vmem:[%s3049 + $0x378] sm:$0xff]
        %v3162 = vld [vmem:[%s3049 + $0x380] sm:$0xff]
        %v3163 = vld [vmem:[%s3049 + $0x388] sm:$0xff]
        %v3164 = vld [vmem:[%s3049 + $0x390] sm:$0xff]
        %v3165 = vld [vmem:[%s3049 + $0x398] sm:$0xff]
        %v3166 = vld [vmem:[%s3049 + $0x3a0] sm:$0xff]
        %v3167 = vld [vmem:[%s3049 + $0x3a8] sm:$0xff]
        %v3168 = vld [vmem:[%s3049 + $0x3b0] sm:$0xff]
        %v3169 = vld [vmem:[%s3049 + $0x3b8] sm:$0xff]
        %v3170 = vld [vmem:[%s3049 + $0x3c0] sm:$0xff]
        %v3171 = vld [vmem:[%s3049 + $0x3c8] sm:$0xff]
        %v3172 = vld [vmem:[%s3049 + $0x3d0] sm:$0xff]
        %v3173 = vld [vmem:[%s3049 + $0x3d8] sm:$0xff]
        %v3174 = vld [vmem:[%s3049 + $0x3e0] sm:$0xff]
        %v3175 = vld [vmem:[%s3049 + $0x3e8] sm:$0xff]
        %v3176 = vld [vmem:[%s3049 + $0x3f0] sm:$0xff]
        %v3177 = vld [vmem:[%s3049 + $0x3f8] sm:$0xff]
        %s3178 = scalar_lea.vmem %s650, 2 [#allocation16]
        %v3179 = vld [vmem:[%s3178] ss:$4 sm:$0x3]
        %v3181 = vlaneseq
        %v3182 = vshrl.u32 %v3181, 7
        %v3183 = vsub.s32 0, %v3182
        %v3184 = vrot.slane %v3179, %v3183
        %v3185 = vlaneseq
        %v3186 = vshrl.u32 %v3185, 7
        %v3187 = vsub.s32 1, %v3186
        %v3188 = vrot.slane %v3179, %v3187
        %3191 = vmatprep.subr.mxu0 %v3051
        %3192 = vmatpush1.xpose.msra.mxu0 %v3050
        %3193 = vmatprep.subr.mxu0 %v3055
        %3194 = vmatpush1.xpose.msra.mxu0 %v3054
        %3195 = vmatprep.subr.mxu0 %v3059
        %3196 = vmatpush1.xpose.msra.mxu0 %v3058
        %3197 = vmatprep.subr.mxu0 %v3063
        %3198 = vmatpush1.xpose.msra.mxu0 %v3062
        %3199 = vmatprep.subr.mxu0 %v3067
        %3200 = vmatpush1.xpose.msra.mxu0 %v3066
        %3201 = vmatprep.subr.mxu0 %v3071
        %3202 = vmatpush1.xpose.msra.mxu0 %v3070
        %3203 = vmatprep.subr.mxu0 %v3075
        %3204 = vmatpush1.xpose.msra.mxu0 %v3074
        %3205 = vmatprep.subr.mxu0 %v3079
        %3206 = vmatpush1.xpose.msra.mxu0 %v3078
        %3207 = vmatprep.subr.mxu0 %v3083
        %3208 = vmatpush1.xpose.msra.mxu0 %v3082
        %3209 = vmatprep.subr.mxu0 %v3087
        %3210 = vmatpush1.xpose.msra.mxu0 %v3086
        %3211 = vmatprep.subr.mxu0 %v3091
        %3212 = vmatpush1.xpose.msra.mxu0 %v3090
        %3213 = vmatprep.subr.mxu0 %v3095
        %3214 = vmatpush1.xpose.msra.mxu0 %v3094
        %3215 = vmatprep.subr.mxu0 %v3099
        %3216 = vmatpush1.xpose.msra.mxu0 %v3098
        %3217 = vmatprep.subr.mxu0 %v3103
        %3218 = vmatpush1.xpose.msra.mxu0 %v3102
        %3219 = vmatprep.subr.mxu0 %v3107
        %3220 = vmatpush1.xpose.msra.mxu0 %v3106
        %3221 = vmatprep.subr.mxu0 %v3111
        %3222 = vmatpush1.xpose.msra.mxu0 %v3110
        %3223 = vmatprep.subr.mxu0 %v3115
        %3224 = vmatpush1.xpose.msra.mxu0 %v3114
        %3225 = vmatprep.subr.mxu0 %v3119
        %3226 = vmatpush1.xpose.msra.mxu0 %v3118
        %3227 = vmatprep.subr.mxu0 %v3123
        %3228 = vmatpush1.xpose.msra.mxu0 %v3122
        %3229 = vmatprep.subr.mxu0 %v3127
        %3230 = vmatpush1.xpose.msra.mxu0 %v3126
        %3231 = vmatprep.subr.mxu0 %v3131
        %3232 = vmatpush1.xpose.msra.mxu0 %v3130
        %3233 = vmatprep.subr.mxu0 %v3135
        %3234 = vmatpush1.xpose.msra.mxu0 %v3134
        %3235 = vmatprep.subr.mxu0 %v3139
        %3236 = vmatpush1.xpose.msra.mxu0 %v3138
        %3237 = vmatprep.subr.mxu0 %v3143
        %3238 = vmatpush1.xpose.msra.mxu0 %v3142
        %3239 = vmatprep.subr.mxu0 %v3147
        %3240 = vmatpush1.xpose.msra.mxu0 %v3146
        %3241 = vmatprep.subr.mxu0 %v3151
        %3242 = vmatpush1.xpose.msra.mxu0 %v3150
        %3243 = vmatprep.subr.mxu0 %v3155
        %3244 = vmatpush1.xpose.msra.mxu0 %v3154
        %3245 = vmatprep.subr.mxu0 %v3159
        %3246 = vmatpush1.xpose.msra.mxu0 %v3158
        %3247 = vmatprep.subr.mxu0 %v3163
        %3248 = vmatpush1.xpose.msra.mxu0 %v3162
        %3249 = vmatprep.subr.mxu0 %v3167
        %3250 = vmatpush1.xpose.msra.mxu0 %v3166
        %3251 = vmatprep.subr.mxu0 %v3171
        %3252 = vmatpush1.xpose.msra.mxu0 %v3170
        %3253 = vmatprep.subr.mxu0 %v3175
        %3254 = vmatpush1.xpose.msra.mxu0 %v3174
        %3255 = vmatprep.mubr.f32.mxu0 %v1461
        %3256 = vmatmul.mubr.f32.gmra.mrb[0].mxu0 %v737
        %v3257 = vpop.f32.mrb[0].mxu0
        %v3258 = vadd.f32 %v3184, %v3257
        %v3259 = vpop.f32.mrb[0].mxu0
        %v3260 = vadd.f32 %v3188, %v3259
        %3261 = vdwg.mxu0
        %3262 = vmatprep.subr.mxu0 %v3053
        %3263 = vmatpush1.xpose.msra.mxu0 %v3052
        %3264 = vmatprep.subr.mxu0 %v3057
        %3265 = vmatpush1.xpose.msra.mxu0 %v3056
        %3266 = vmatprep.subr.mxu0 %v3061
        %3267 = vmatpush1.xpose.msra.mxu0 %v3060
        %3268 = vmatprep.subr.mxu0 %v3065
        %3269 = vmatpush1.xpose.msra.mxu0 %v3064
        %3270 = vmatprep.subr.mxu0 %v3069
        %3271 = vmatpush1.xpose.msra.mxu0 %v3068
        %3272 = vmatprep.subr.mxu0 %v3073
        %3273 = vmatpush1.xpose.msra.mxu0 %v3072
        %3274 = vmatprep.subr.mxu0 %v3077
        %3275 = vmatpush1.xpose.msra.mxu0 %v3076
        %3276 = vmatprep.subr.mxu0 %v3081
        %3277 = vmatpush1.xpose.msra.mxu0 %v3080
        %3278 = vmatprep.subr.mxu0 %v3085
        %3279 = vmatpush1.xpose.msra.mxu0 %v3084
        %3280 = vmatprep.subr.mxu0 %v3089
        %3281 = vmatpush1.xpose.msra.mxu0 %v3088
        %3282 = vmatprep.subr.mxu0 %v3093
        %3283 = vmatpush1.xpose.msra.mxu0 %v3092
        %3284 = vmatprep.subr.mxu0 %v3097
        %3285 = vmatpush1.xpose.msra.mxu0 %v3096
        %3286 = vmatprep.subr.mxu0 %v3101
        %3287 = vmatpush1.xpose.msra.mxu0 %v3100
        %3288 = vmatprep.subr.mxu0 %v3105
        %3289 = vmatpush1.xpose.msra.mxu0 %v3104
        %3290 = vmatprep.subr.mxu0 %v3109
        %3291 = vmatpush1.xpose.msra.mxu0 %v3108
        %3292 = vmatprep.subr.mxu0 %v3113
        %3293 = vmatpush1.xpose.msra.mxu0 %v3112
        %3294 = vmatprep.subr.mxu0 %v3117
        %3295 = vmatpush1.xpose.msra.mxu0 %v3116
        %3296 = vmatprep.subr.mxu0 %v3121
        %3297 = vmatpush1.xpose.msra.mxu0 %v3120
        %3298 = vmatprep.subr.mxu0 %v3125
        %3299 = vmatpush1.xpose.msra.mxu0 %v3124
        %3300 = vmatprep.subr.mxu0 %v3129
        %3301 = vmatpush1.xpose.msra.mxu0 %v3128
        %3302 = vmatprep.subr.mxu0 %v3133
        %3303 = vmatpush1.xpose.msra.mxu0 %v3132
        %3304 = vmatprep.subr.mxu0 %v3137
        %3305 = vmatpush1.xpose.msra.mxu0 %v3136
        %3306 = vmatprep.subr.mxu0 %v3141
        %3307 = vmatpush1.xpose.msra.mxu0 %v3140
        %3308 = vmatprep.subr.mxu0 %v3145
        %3309 = vmatpush1.xpose.msra.mxu0 %v3144
        %3310 = vmatprep.subr.mxu0 %v3149
        %3311 = vmatpush1.xpose.msra.mxu0 %v3148
        %3312 = vmatprep.subr.mxu0 %v3153
        %3313 = vmatpush1.xpose.msra.mxu0 %v3152
        %3314 = vmatprep.subr.mxu0 %v3157
        %3315 = vmatpush1.xpose.msra.mxu0 %v3156
        %3316 = vmatprep.subr.mxu0 %v3161
        %3317 = vmatpush1.xpose.msra.mxu0 %v3160
        %3318 = vmatprep.subr.mxu0 %v3165
        %3319 = vmatpush1.xpose.msra.mxu0 %v3164
        %3320 = vmatprep.subr.mxu0 %v3169
        %3321 = vmatpush1.xpose.msra.mxu0 %v3168
        %3322 = vmatprep.subr.mxu0 %v3173
        %3323 = vmatpush1.xpose.msra.mxu0 %v3172
        %3324 = vmatprep.subr.mxu0 %v3177
        %3325 = vmatpush1.xpose.msra.mxu0 %v3176
        %3326 = vmatprep.mubr.f32.mxu0 %v1462
        %3327 = vmatmul.mubr.f32.gmra.mrb[0].mxu0 %v738
        %v3328 = vpop.f32.mrb[0].mxu0
        %v3329 = vadd.f32 %v3258, %v3328
        %v3330 = vpop.f32.mrb[0].mxu0
        %v3331 = vadd.f32 %v3260, %v3330
        %3332 = vdwg.mxu0
        %v3333 = vmax.f32 %v3329, 0.0
        %v3334 = vmax.f32 %v3331, 0.0
        %v3335 = vmul.f32 %v2761, %v3047
        %v3336 = vmul.f32 %v2762, %v3048
        %v3337 = vmul.f32 %v3335, %v3333
        %v3338 = vmul.f32 %v3336, %v3334
        %v3339 = vadd.f32 %v2475, %v3337
        %v3340 = vadd.f32 %v2476, %v3338
        %v3341 = vmax.f32 %v3339, 0.0
        %v3342 = vmax.f32 %v3340, 0.0
        %v3345 = vcombine.low %v3341, %v3342
        %3347 = vst [vmem:[%s709] sm:$0xff] %v3345
        %v3350 = vcombine.low %v3047, %v3048
        %3352 = vst [vmem:[%s716] sm:$0xff] %v3350
        %v3355 = vcombine.low %v3333, %v3334
        %3357 = vst [vmem:[%s723] sm:$0xff] %v3355
        %s3358 = sand.u32 %s267, 1
        %s3359 = scalar_lea.sflag [#allocation4], %s3358
        %s3360 = sand.u32 %s267, 1
        %s3361 = smul.addr %s3360, 8
        %s3362 = scalar_lea.vmem [#allocation17], %s3361
        %s3363 = sand.u32 %s40, 1
        %s3364 = scalar_lea.sflag [#allocation19], %s3363
        %s3365 = sand.u32 %s293, 1
        %s3366 = smul.addr %s3365, 8
        %s3367 = scalar_lea.vmem [#allocation18], %s3366
        %s3368 = sand.u32 %s40, 1
        %s3369 = scalar_lea.sflag [#allocation19], %s3368
        %s3370 = sand.u32 %s319, 1
        %s3371 = smul.addr %s3370, 8
        %s3372 = scalar_lea.vmem [#allocation20], %s3371
        // Predicated region
        $region93: #{tpu_custom_call.1} parent=55 // pred_check
          %p3373 = pneg %p277
        $region94: #{tpu_custom_call.1} parent=55 // pred_check_branch
          %3375 = sbr.rel (%p3373) target = $region96
        $region95: #{tpu_custom_call.1} parent=55 // pred_region
          %s3376 = smul.u32 2, %s40
          %s3378 = ssub.s32 128, 128
          %3379 = vsyncadd %s3359, %s3378
          %s3380 = smul.addr %s3376, 64
          %s3381 = scalar_lea.hbm %s9, %s3380
          %s3383 = sshll.u32 %s3362, 4
          %s3384 = int_to_ptr.vmem [resolvable:$true] %s3383
          %3386 = dma.vmem_to_hbm [thread:$0]  %s3384, 128, %s3381, %s3359
        $region96: #{tpu_custom_call.1} parent=55 // pred_fallthru
          _
        // Predicated region
        $region97: #{tpu_custom_call.1} parent=55 // pred_check
          %p3387 = pneg %p303
        $region98: #{tpu_custom_call.1} parent=55 // pred_check_branch
          %3389 = sbr.rel (%p3387) target = $region100
        $region99: #{tpu_custom_call.1} parent=55 // pred_region
          %s3390 = smul.u32 2, %s40
          %s3392 = ssub.s32 128, 128
          %3393 = vsyncadd %s3364, %s3392
          %s3394 = smul.addr %s3390, 64
          %s3395 = scalar_lea.hbm %s10, %s3394
          %s3397 = sshll.u32 %s3367, 4
          %s3398 = int_to_ptr.vmem [resolvable:$true] %s3397
          %3400 = dma.vmem_to_hbm [thread:$0]  %s3398, 128, %s3395, %s3364
        $region100: #{tpu_custom_call.1} parent=55 // pred_fallthru
          _
        // Predicated region
        $region101: #{tpu_custom_call.1} parent=55 // pred_check
          %p3401 = pneg %p329
        $region102: #{tpu_custom_call.1} parent=55 // pred_check_branch
          %3403 = sbr.rel (%p3401) target = $region104
        $region103: #{tpu_custom_call.1} parent=55 // pred_region
          %s3404 = smul.u32 2, %s40
          %s3406 = ssub.s32 128, 128
          %3407 = vsyncadd %s3369, %s3406
          %s3408 = smul.addr %s3404, 64
          %s3409 = scalar_lea.hbm %s11, %s3408
          %s3411 = sshll.u32 %s3372, 4
          %s3412 = int_to_ptr.vmem [resolvable:$true] %s3411
          %3414 = dma.vmem_to_hbm [thread:$0]  %s3412, 128, %s3409, %s3369
        $region104: #{tpu_custom_call.1} parent=55 // pred_fallthru
          _
      $region56: #{tpu_custom_call.1} parent=5 // pred_fallthru
        _
      %p3415 = scmp.le.s32.totalorder 2, %s35
      // Predicated region
      $region105: #{tpu_custom_call.1} parent=5 // pred_check
        %p3416 = pneg %p3415
      $region106: #{tpu_custom_call.1} parent=5 // pred_check_branch
        %3418 = sbr.rel (%p3416) target = $region108
      $region107: #{tpu_custom_call.1} parent=5 // pred_region
        %s3419 = ssub.s32 %s35, 2
        // Predicated region
        $region109: #{tpu_custom_call.1} parent=107 // pred_check
          %p3420 = pneg %p283
        $region110: #{tpu_custom_call.1} parent=107 // pred_check_branch
          %3422 = sbr.rel (%p3420) target = $region112
        $region111: #{tpu_custom_call.1} parent=107 // pred_region
          %s3423 = sand.u32 %s268, 1
          %s3424 = scalar_lea.sflag [#allocation4], %s3423
          %s3425 = sand.u32 %s268, 1
          %s3426 = smul.addr %s3425, 8
          %s3427 = scalar_lea.vmem [#allocation17], %s3426
          %3428 = dma.done %s3424, 128
        $region112: #{tpu_custom_call.1} parent=107 // pred_fallthru
          _
        // Predicated region
        $region113: #{tpu_custom_call.1} parent=107 // pred_check
          %p3429 = pneg %p309
        $region114: #{tpu_custom_call.1} parent=107 // pred_check_branch
          %3431 = sbr.rel (%p3429) target = $region116
        $region115: #{tpu_custom_call.1} parent=107 // pred_region
          %s3432 = sand.u32 %s41, 1
          %s3433 = scalar_lea.sflag [#allocation19], %s3432
          %s3434 = sand.u32 %s294, 1
          %s3435 = smul.addr %s3434, 8
          %s3436 = scalar_lea.vmem [#allocation18], %s3435
          %3437 = dma.done %s3433, 128
        $region116: #{tpu_custom_call.1} parent=107 // pred_fallthru
          _
        // Predicated region
        $region117: #{tpu_custom_call.1} parent=107 // pred_check
          %p3438 = pneg %p335
        $region118: #{tpu_custom_call.1} parent=107 // pred_check_branch
          %3440 = sbr.rel (%p3438) target = $region120
        $region119: #{tpu_custom_call.1} parent=107 // pred_region
          %s3441 = sand.u32 %s41, 1
          %s3442 = scalar_lea.sflag [#allocation19], %s3441
          %s3443 = sand.u32 %s320, 1
          %s3444 = smul.addr %s3443, 8
          %s3445 = scalar_lea.vmem [#allocation20], %s3444
          %3446 = dma.done %s3442, 128
        $region120: #{tpu_custom_call.1} parent=107 // pred_fallthru
          _
      $region108: #{tpu_custom_call.1} parent=5 // pred_fallthru
        _
    $region6: #{tpu_custom_call.1} parent=1 // loop_footer
      %s39 = sadd.s32 1, %s35
    $region7: #{tpu_custom_call.1} parent=1 // loop_footer_branch
      %34 = sbr.rel target = $region3
    $region8: #{tpu_custom_call.1} parent=1 // loop_exit
      _
    %3447 = vsyncpa [#allocation3], 1
    %s3448 = scalar_lea.sflag [#allocation3], 1
    %3449 = vsyncpa %s3448, 1
    %3450 = vsyncpa [#allocation6], 1
    %3451 = vsyncpa [#allocation9], 1
    %s3452 = scalar_lea.sflag [#allocation9], 1
    %3453 = vsyncpa %s3452, 1
    %3454 = vsyncpa [#allocation12], 1
    %s3455 = scalar_lea.sflag [#allocation12], 1
    %3456 = vsyncpa %s3455, 1
    %3457 = vsyncpa [#allocation15], 1
    %s3458 = scalar_lea.sflag [#allocation15], 1
    %3459 = vsyncpa %s3458, 1
    %3460 = vsyncpa [#allocation4], 1
    %s3461 = scalar_lea.sflag [#allocation4], 1
    %3462 = vsyncpa %s3461, 1
    %3463 = vsyncpa [#allocation19], 1
    %s3464 = scalar_lea.sflag [#allocation19], 1
    %3465 = vsyncpa %s3464, 1

</llo_original>
